<compile_context>
chip_gen: v7x
topology: tpu7x:2x2x1
jax: 0.10.0
libtpu: 0.0.40
codegen_flags: <defaults>
</compile_context>

<pallas_src>
import functools

import jax
import jax.numpy as jnp
import numpy as np
from jax.experimental import pallas as pl
from jax.experimental.pallas import tpu as pltpu

_BN_EPS = 1e-5
_PAD7 = 6  # (kernel_size - 1) * dilation for the 7x7 directional convs

# ReflectionPad2d corner pads, order matches torch.cat((LU, LD, RU, RD), dim=1).
# NCHW spatial pads: ((top, bottom), (left, right))
_DIR_PADS_HW = (
    ((_PAD7, 0), (_PAD7, 0)),  # LU
    ((0, _PAD7), (_PAD7, 0)),  # LD
    ((_PAD7, 0), (0, _PAD7)),  # RU
    ((0, _PAD7), (0, _PAD7)),  # RD
)
# Same pads in NHWC (used by the pure-JAX reference).
_DIR_PADS_NHWC = (
    ((0, 0), (_PAD7, 0), (_PAD7, 0), (0, 0)),
    ((0, 0), (0, _PAD7), (_PAD7, 0), (0, 0)),
    ((0, 0), (_PAD7, 0), (0, _PAD7), (0, 0)),
    ((0, 0), (0, _PAD7), (0, _PAD7), (0, 0)),
)


def _round_up(x, m):
    return ((x + m - 1) // m) * m


# --------------------------------------------------------------------------
# Pallas kernel: fused (in-VMEM im2col + matmul conv) + BN affine + ReLU
# --------------------------------------------------------------------------
def _conv_bn_relu_kernel(x_ref, w_ref, scale_ref, bias_ref, out_ref, p_ref,
                         *, taps, k_real):
    # x_ref:     (1, 1, Cin, Lhost)  bf16 padded input, channel-major,
    #                                spatially flattened (flat = hp*Wp + wp)
    # w_ref:     (1, Cout, Kpad)     bf16 weights, (tap, cin)-ordered K, zero pad
    # scale_ref: (1, Cout, 1)        f32 folded BN scale
    # bias_ref:  (1, Cout, 1)        f32 folded conv-bias + BN shift
    # out_ref:   (1, 1, Cout, Lout)  lane-dense (Lout is a multiple of 128)
    # p_ref:     (Kpad, Lout)        bf16 VMEM scratch: im2col patch matrix
    cin = x_ref.shape[2]
    lout = out_ref.shape[3]
    kpad = p_ref.shape[0]

    # Build the im2col patch matrix in VMEM: tap t fills rows
    # [t*cin, (t+1)*cin) with the input slab shifted by taps[t] flat positions.
    for t, sh in enumerate(taps):
        p_ref[t * cin:(t + 1) * cin, :] = x_ref[0, 0, :, sh:sh + lout]
    if k_real < kpad:
        # Zero the K-padding rows: matching weight columns are zero, but
        # uninitialized VMEM could hold NaN/Inf (0 * NaN = NaN).
        p_ref[k_real:, :] = jnp.zeros((kpad - k_real, lout), p_ref.dtype)

    # (Cout, Kpad) @ (Kpad, Lout): bf16 operands, f32 MXU accumulation.
    acc = jnp.dot(w_ref[0], p_ref[...], preferred_element_type=jnp.float32)
    y = acc * scale_ref[0] + bias_ref[0]          # f32 epilogue (v5e friendly)
    out_ref[0, 0] = jnp.maximum(y, 0.0).astype(out_ref.dtype)


def conv_bn_relu_pallas(xf, wmat, scale, bias, *, taps, lout, out_dtype):
    """Fused conv(+BN affine+ReLU) over a spatially-flattened, padded input.

    xf:    (D, N, Cin, Lhost)  bf16
    wmat:  (D, Cout, Kpad)     bf16
    scale: (D, Cout, 1)        f32
    bias:  (D, Cout, 1)        f32
    Returns (N, D, Cout, lout) in `out_dtype`; flat position m = h*Wp + w holds
    the conv output at (h, w); other positions are cropped by the caller.
    """
    D, N, Cin, Lhost = xf.shape
    Cout, Kpad = wmat.shape[1], wmat.shape[2]
    kernel = functools.partial(
        _conv_bn_relu_kernel, taps=tuple(int(t) for t in taps),
        k_real=len(taps) * Cin)
    return pl.pallas_call(
        kernel,
        out_shape=jax.ShapeDtypeStruct((N, D, Cout, lout), out_dtype),
        grid=(D, N),
        in_specs=[
            pl.BlockSpec((1, 1, Cin, Lhost), lambda d, n: (d, n, 0, 0)),
            pl.BlockSpec((1, Cout, Kpad), lambda d, n: (d, 0, 0)),
            pl.BlockSpec((1, Cout, 1), lambda d, n: (d, 0, 0)),
            pl.BlockSpec((1, Cout, 1), lambda d, n: (d, 0, 0)),
        ],
        # Direction goes into the channel block of the output so the 4-way
        # channel concat for the final conv is a free reshape (no transpose).
        out_specs=pl.BlockSpec((1, 1, Cout, lout), lambda d, n: (n, d, 0, 0)),
        scratch_shapes=[pltpu.VMEM((Kpad, lout), jnp.bfloat16)],
        compiler_params=pltpu.CompilerParams(
            dimension_semantics=("parallel", "parallel"),
            vmem_limit_bytes=32 * 1024 * 1024,
        ),
    )(xf, wmat, scale, bias)


# --------------------------------------------------------------------------
# JAX glue
# --------------------------------------------------------------------------
def _fold_bn(conv_bias, gamma, beta, mean, var):
    scale = gamma / jnp.sqrt(var + _BN_EPS)
    bias = (conv_bias - mean) * scale + beta
    return scale, bias


def _pad_flatten_chw(x_nchw, pad_hw, lhost, mode):
    """Pad spatially, flatten (Hp, Wp) -> Hp*Wp, zero-pad the flat axis."""
    xp = jnp.pad(x_nchw, ((0, 0), (0, 0), pad_hw[0], pad_hw[1]), mode=mode)
    n, c, hp, wp = xp.shape
    xf = xp.reshape(n, c, hp * wp)
    return jnp.pad(xf, ((0, 0), (0, 0), (0, lhost - hp * wp)))


def init_params(key, ch_in, ch_out):
    ks = jax.random.split(key, 12)
    f32 = jnp.float32
    return {
        # 4 directional bias_convolutions: Conv2d(ch_in, ch_out, 7) + BN
        "w_dir": 0.1 * jax.random.normal(ks[0], (4, 7, 7, ch_in, ch_out), f32),
        "b_dir": 0.1 * jax.random.normal(ks[1], (4, ch_out), f32),
        "gamma_dir": 1.0 + 0.1 * jax.random.normal(ks[2], (4, ch_out), f32),
        "beta_dir": 0.1 * jax.random.normal(ks[3], (4, ch_out), f32),
        "mean_dir": 0.1 * jax.random.normal(ks[4], (4, ch_out), f32),
        "var_dir": 0.5 + jax.random.uniform(ks[5], (4, ch_out), f32),
        # final_conv: Conv2d(4*ch_out, ch_out, 3, padding=1) + BN
        "w_fin": 0.1 * jax.random.normal(ks[6], (3, 3, 4 * ch_out, ch_out), f32),
        "b_fin": 0.1 * jax.random.normal(ks[7], (ch_out,), f32),
        "gamma_fin": 1.0 + 0.1 * jax.random.normal(ks[8], (ch_out,), f32),
        "beta_fin": 0.1 * jax.random.normal(ks[9], (ch_out,), f32),
        "mean_fin": 0.1 * jax.random.normal(ks[10], (ch_out,), f32),
        "var_fin": 0.5 + jax.random.uniform(ks[11], (ch_out,), f32),
    }


def offset_convolution_forward(x, params):
    """x: (N, H, W, Cin) NHWC float32. Returns (N, H, W, Cout) float32."""
    N, H, W, Cin = x.shape
    Cout = params["w_dir"].shape[-1]
    bf16 = jnp.bfloat16

    x_nchw = jnp.transpose(x, (0, 3, 1, 2))

    # ---- four directional 7x7 convs on corner-reflection-padded input ----
    wp1 = W + _PAD7
    taps1 = tuple(kh * wp1 + kw for kh in range(7) for kw in range(7))
    lout1 = _round_up(H * wp1, 128)
    lhost1 = _round_up(lout1 + taps1[-1], 128)
    xf4 = jnp.stack(
        [_pad_flatten_chw(x_nchw, p, lhost1, "reflect") for p in _DIR_PADS_HW],
        axis=0).astype(bf16)                          # (4, N, Cin, lhost1)

    kpad1 = _round_up(49 * Cin, 128)
    w1 = jnp.transpose(params["w_dir"].reshape(4, 49 * Cin, Cout), (0, 2, 1))
    w1 = jnp.pad(w1, ((0, 0), (0, 0), (0, kpad1 - 49 * Cin))).astype(bf16)
    scale_d, bias_d = _fold_bn(params["b_dir"], params["gamma_dir"],
                               params["beta_dir"], params["mean_dir"],
                               params["var_dir"])

    y_dir = conv_bn_relu_pallas(
        xf4, w1, scale_d[:, :, None], bias_d[:, :, None],
        taps=taps1, lout=lout1, out_dtype=bf16)       # (N, 4, Cout, lout1)

    # Direction-major channel concat == free reshape; crop the valid window.
    d_cat = y_dir.reshape(N, 4 * Cout, lout1)[:, :, :H * wp1]
    d_cat = d_cat.reshape(N, 4 * Cout, H, wp1)[:, :, :, :W]  # (N, 4C, H, W)

    # ---- final 3x3 conv (zero padding 1) + BN + ReLU ----
    cin2 = 4 * Cout
    wp2 = W + 2
    taps2 = tuple(kh * wp2 + kw for kh in range(3) for kw in range(3))
    lout2 = _round_up(H * wp2, 128)
    lhost2 = _round_up(lout2 + taps2[-1], 128)
    xf_fin = _pad_flatten_chw(d_cat, ((1, 1), (1, 1)), lhost2, "constant")
    xf_fin = xf_fin.astype(bf16)[None]                # (1, N, 4C, lhost2)

    kpad2 = _round_up(9 * cin2, 128)
    w2 = jnp.transpose(params["w_fin"].reshape(9 * cin2, Cout), (1, 0))
    w2 = jnp.pad(w2, ((0, 0), (0, kpad2 - 9 * cin2)))[None].astype(bf16)
    scale_f, bias_f = _fold_bn(params["b_fin"], params["gamma_fin"],
                               params["beta_fin"], params["mean_fin"],
                               params["var_fin"])

    y = conv_bn_relu_pallas(
        xf_fin, w2, scale_f[None, :, None], bias_f[None, :, None],
        taps=taps2, lout=lout2, out_dtype=jnp.float32)  # (N, 1, Cout, lout2)

    y = y[:, 0, :, :H * wp2].reshape(N, Cout, H, wp2)[:, :, :, :W]
    return jnp.transpose(y, (0, 2, 3, 1))             # NHWC


# --------------------------------------------------------------------------
# Pure-JAX reference (precision-matched: bf16 conv operands, f32 accumulate)
# --------------------------------------------------------------------------
def reference_forward(x, params):
    bf16 = jnp.bfloat16

    def conv(xp, w, b, padding):
        y = jax.lax.conv_general_dilated(
            xp.astype(bf16), w.astype(bf16), window_strides=(1, 1),
            padding=padding, dimension_numbers=("NHWC", "HWIO", "NHWC"),
            preferred_element_type=jnp.float32,
        )
        return y + b

    def bn_relu(y, gamma, beta, mean, var):
        yn = (y - mean) / jnp.sqrt(var + _BN_EPS) * gamma + beta
        return jnp.maximum(yn, 0.0)

    outs = []
    for i, pad in enumerate(_DIR_PADS_NHWC):
        xp = jnp.pad(x, pad, mode="reflect")
        y = conv(xp, params["w_dir"][i], params["b_dir"][i], "VALID")
        outs.append(
            bn_relu(y, params["gamma_dir"][i], params["beta_dir"][i],
                    params["mean_dir"][i], params["var_dir"][i]))
    d = jnp.concatenate(outs, axis=-1)
    y = conv(d, params["w_fin"], params["b_fin"], ((1, 1), (1, 1)))
    return bn_relu(y, params["gamma_fin"], params["beta_fin"],
                   params["mean_fin"], params["var_fin"])


if __name__ == "__main__":
    key = jax.random.PRNGKey(0)
    k_param, k_x = jax.random.split(key)

    ch_in, ch_out = 4, 8
    N, H, W = 2, 16, 16

    params = init_params(k_param, ch_in, ch_out)
    x = jax.random.normal(k_x, (N, H, W, ch_in), jnp.float32)

    out = jax.jit(offset_convolution_forward)(x, params)
    jax.block_until_ready(out)

    ref = reference_forward(x, params)
    np.testing.assert_allclose(np.asarray(out), np.asarray(ref),
                               rtol=5e-3, atol=5e-3)
    print("KERNEL_OK")
</pallas_src>

<mosaic_0001>
module attributes {stable_mosaic.version = 11 : i64} {
  func.func @_conv_bn_relu_kernel(%arg0: i32, %arg1: i32, %arg2: memref<1x1x4x640xbf16, #tpu.memory_space<vmem>>, %arg3: memref<1x8x256xbf16, #tpu.memory_space<vmem>>, %arg4: memref<1x8x1xf32, #tpu.memory_space<vmem>>, %arg5: memref<1x8x1xf32, #tpu.memory_space<vmem>>, %arg6: memref<1x1x8x384xbf16, #tpu.memory_space<vmem>>, %arg7: memref<256x384xbf16, #tpu.memory_space<vmem>>) attributes {dimension_semantics = [#tpu.dimension_semantics<parallel>, #tpu.dimension_semantics<parallel>], iteration_bounds = array<i64: 4, 2>, scalar_prefetch = 0 : i64, scratch_operands = 1 : i64, tpu.core_type = #tpu.core_type<tc>, window_params = [{transform_indices = @transform_0, window_bounds = array<i64: 1, 1, 4, 640>}, {transform_indices = @transform_1, window_bounds = array<i64: 1, 8, 256>}, {transform_indices = @transform_2, window_bounds = array<i64: 1, 8, 1>}, {transform_indices = @transform_3, window_bounds = array<i64: 1, 8, 1>}, {transform_indices = @transform_4, window_bounds = array<i64: 1, 1, 8, 384>}]} {
    %c0 = arith.constant 0 : index
    %c0_0 = arith.constant 0 : index
    %c0_1 = arith.constant 0 : index
    %c0_2 = arith.constant 0 : index
    %0 = vector.load %arg2[%c0, %c0_0, %c0_1, %c0_2] : memref<1x1x4x640xbf16, #tpu.memory_space<vmem>>, vector<1x1x4x384xbf16>
    %1 = vector.shape_cast %0 : vector<1x1x4x384xbf16> to vector<4x384xbf16>
    %c0_3 = arith.constant 0 : index
    %c0_4 = arith.constant 0 : index
    %2 = vector.load %arg7[%c0_3, %c0_4] : memref<256x384xbf16, #tpu.memory_space<vmem>>, vector<4x384xbf16>
    tpu.vector_store %arg7[%c0_3, %c0_4], %1 {strides = array<i32>} : memref<256x384xbf16, #tpu.memory_space<vmem>>, vector<4x384xbf16>,
    %c0_5 = arith.constant 0 : index
    %c0_6 = arith.constant 0 : index
    %c0_7 = arith.constant 0 : index
    %c1 = arith.constant 1 : index
    %3 = vector.load %arg2[%c0_5, %c0_6, %c0_7, %c1] : memref<1x1x4x640xbf16, #tpu.memory_space<vmem>>, vector<1x1x4x384xbf16>
    %4 = vector.shape_cast %3 : vector<1x1x4x384xbf16> to vector<4x384xbf16>
    %c4 = arith.constant 4 : index
    %c0_8 = arith.constant 0 : index
    %5 = vector.load %arg7[%c4, %c0_8] : memref<256x384xbf16, #tpu.memory_space<vmem>>, vector<4x384xbf16>
    tpu.vector_store %arg7[%c4, %c0_8], %4 {strides = array<i32>} : memref<256x384xbf16, #tpu.memory_space<vmem>>, vector<4x384xbf16>,
    %c0_9 = arith.constant 0 : index
    %c0_10 = arith.constant 0 : index
    %c0_11 = arith.constant 0 : index
    %c2 = arith.constant 2 : index
    %6 = vector.load %arg2[%c0_9, %c0_10, %c0_11, %c2] : memref<1x1x4x640xbf16, #tpu.memory_space<vmem>>, vector<1x1x4x384xbf16>
    %7 = vector.shape_cast %6 : vector<1x1x4x384xbf16> to vector<4x384xbf16>
    %c8 = arith.constant 8 : index
    %c0_12 = arith.constant 0 : index
    %8 = vector.load %arg7[%c8, %c0_12] : memref<256x384xbf16, #tpu.memory_space<vmem>>, vector<4x384xbf16>
    tpu.vector_store %arg7[%c8, %c0_12], %7 {strides = array<i32>} : memref<256x384xbf16, #tpu.memory_space<vmem>>, vector<4x384xbf16>,
    %c0_13 = arith.constant 0 : index
    %c0_14 = arith.constant 0 : index
    %c0_15 = arith.constant 0 : index
    %c3 = arith.constant 3 : index
    %9 = vector.load %arg2[%c0_13, %c0_14, %c0_15, %c3] : memref<1x1x4x640xbf16, #tpu.memory_space<vmem>>, vector<1x1x4x384xbf16>
    %10 = vector.shape_cast %9 : vector<1x1x4x384xbf16> to vector<4x384xbf16>
    %c12 = arith.constant 12 : index
    %c0_16 = arith.constant 0 : index
    %11 = vector.load %arg7[%c12, %c0_16] : memref<256x384xbf16, #tpu.memory_space<vmem>>, vector<4x384xbf16>
    tpu.vector_store %arg7[%c12, %c0_16], %10 {strides = array<i32>} : memref<256x384xbf16, #tpu.memory_space<vmem>>, vector<4x384xbf16>,
    %c0_17 = arith.constant 0 : index
    %c0_18 = arith.constant 0 : index
    %c0_19 = arith.constant 0 : index
    %c4_20 = arith.constant 4 : index
    %12 = vector.load %arg2[%c0_17, %c0_18, %c0_19, %c4_20] : memref<1x1x4x640xbf16, #tpu.memory_space<vmem>>, vector<1x1x4x384xbf16>
    %13 = vector.shape_cast %12 : vector<1x1x4x384xbf16> to vector<4x384xbf16>
    %c16 = arith.constant 16 : index
    %c0_21 = arith.constant 0 : index
    %14 = vector.load %arg7[%c16, %c0_21] : memref<256x384xbf16, #tpu.memory_space<vmem>>, vector<4x384xbf16>
    tpu.vector_store %arg7[%c16, %c0_21], %13 {strides = array<i32>} : memref<256x384xbf16, #tpu.memory_space<vmem>>, vector<4x384xbf16>,
    %c0_22 = arith.constant 0 : index
    %c0_23 = arith.constant 0 : index
    %c0_24 = arith.constant 0 : index
    %c5 = arith.constant 5 : index
    %15 = vector.load %arg2[%c0_22, %c0_23, %c0_24, %c5] : memref<1x1x4x640xbf16, #tpu.memory_space<vmem>>, vector<1x1x4x384xbf16>
    %16 = vector.shape_cast %15 : vector<1x1x4x384xbf16> to vector<4x384xbf16>
    %c20 = arith.constant 20 : index
    %c0_25 = arith.constant 0 : index
    %17 = vector.load %arg7[%c20, %c0_25] : memref<256x384xbf16, #tpu.memory_space<vmem>>, vector<4x384xbf16>
    tpu.vector_store %arg7[%c20, %c0_25], %16 {strides = array<i32>} : memref<256x384xbf16, #tpu.memory_space<vmem>>, vector<4x384xbf16>,
    %c0_26 = arith.constant 0 : index
    %c0_27 = arith.constant 0 : index
    %c0_28 = arith.constant 0 : index
    %c6 = arith.constant 6 : index
    %18 = vector.load %arg2[%c0_26, %c0_27, %c0_28, %c6] : memref<1x1x4x640xbf16, #tpu.memory_space<vmem>>, vector<1x1x4x384xbf16>
    %19 = vector.shape_cast %18 : vector<1x1x4x384xbf16> to vector<4x384xbf16>
    %c24 = arith.constant 24 : index
    %c0_29 = arith.constant 0 : index
    %20 = vector.load %arg7[%c24, %c0_29] : memref<256x384xbf16, #tpu.memory_space<vmem>>, vector<4x384xbf16>
    tpu.vector_store %arg7[%c24, %c0_29], %19 {strides = array<i32>} : memref<256x384xbf16, #tpu.memory_space<vmem>>, vector<4x384xbf16>,
    %c0_30 = arith.constant 0 : index
    %c0_31 = arith.constant 0 : index
    %c0_32 = arith.constant 0 : index
    %c22 = arith.constant 22 : index
    %21 = vector.load %arg2[%c0_30, %c0_31, %c0_32, %c22] : memref<1x1x4x640xbf16, #tpu.memory_space<vmem>>, vector<1x1x4x384xbf16>
    %22 = vector.shape_cast %21 : vector<1x1x4x384xbf16> to vector<4x384xbf16>
    %c28 = arith.constant 28 : index
    %c0_33 = arith.constant 0 : index
    %23 = vector.load %arg7[%c28, %c0_33] : memref<256x384xbf16, #tpu.memory_space<vmem>>, vector<4x384xbf16>
    tpu.vector_store %arg7[%c28, %c0_33], %22 {strides = array<i32>} : memref<256x384xbf16, #tpu.memory_space<vmem>>, vector<4x384xbf16>,
    %c0_34 = arith.constant 0 : index
    %c0_35 = arith.constant 0 : index
    %c0_36 = arith.constant 0 : index
    %c23 = arith.constant 23 : index
    %24 = vector.load %arg2[%c0_34, %c0_35, %c0_36, %c23] : memref<1x1x4x640xbf16, #tpu.memory_space<vmem>>, vector<1x1x4x384xbf16>
    %25 = vector.shape_cast %24 : vector<1x1x4x384xbf16> to vector<4x384xbf16>
    %c32 = arith.constant 32 : index
    %c0_37 = arith.constant 0 : index
    %26 = vector.load %arg7[%c32, %c0_37] : memref<256x384xbf16, #tpu.memory_space<vmem>>, vector<4x384xbf16>
    tpu.vector_store %arg7[%c32, %c0_37], %25 {strides = array<i32>} : memref<256x384xbf16, #tpu.memory_space<vmem>>, vector<4x384xbf16>,
    %c0_38 = arith.constant 0 : index
    %c0_39 = arith.constant 0 : index
    %c0_40 = arith.constant 0 : index
    %c24_41 = arith.constant 24 : index
    %27 = vector.load %arg2[%c0_38, %c0_39, %c0_40, %c24_41] : memref<1x1x4x640xbf16, #tpu.memory_space<vmem>>, vector<1x1x4x384xbf16>
    %28 = vector.shape_cast %27 : vector<1x1x4x384xbf16> to vector<4x384xbf16>
    %c36 = arith.constant 36 : index
    %c0_42 = arith.constant 0 : index
    %29 = vector.load %arg7[%c36, %c0_42] : memref<256x384xbf16, #tpu.memory_space<vmem>>, vector<4x384xbf16>
    tpu.vector_store %arg7[%c36, %c0_42], %28 {strides = array<i32>} : memref<256x384xbf16, #tpu.memory_space<vmem>>, vector<4x384xbf16>,
    %c0_43 = arith.constant 0 : index
    %c0_44 = arith.constant 0 : index
    %c0_45 = arith.constant 0 : index
    %c25 = arith.constant 25 : index
    %30 = vector.load %arg2[%c0_43, %c0_44, %c0_45, %c25] : memref<1x1x4x640xbf16, #tpu.memory_space<vmem>>, vector<1x1x4x384xbf16>
    %31 = vector.shape_cast %30 : vector<1x1x4x384xbf16> to vector<4x384xbf16>
    %c40 = arith.constant 40 : index
    %c0_46 = arith.constant 0 : index
    %32 = vector.load %arg7[%c40, %c0_46] : memref<256x384xbf16, #tpu.memory_space<vmem>>, vector<4x384xbf16>
    tpu.vector_store %arg7[%c40, %c0_46], %31 {strides = array<i32>} : memref<256x384xbf16, #tpu.memory_space<vmem>>, vector<4x384xbf16>,
    %c0_47 = arith.constant 0 : index
    %c0_48 = arith.constant 0 : index
    %c0_49 = arith.constant 0 : index
    %c26 = arith.constant 26 : index
    %33 = vector.load %arg2[%c0_47, %c0_48, %c0_49, %c26] : memref<1x1x4x640xbf16, #tpu.memory_space<vmem>>, vector<1x1x4x384xbf16>
    %34 = vector.shape_cast %33 : vector<1x1x4x384xbf16> to vector<4x384xbf16>
    %c44 = arith.constant 44 : index
    %c0_50 = arith.constant 0 : index
    %35 = vector.load %arg7[%c44, %c0_50] : memref<256x384xbf16, #tpu.memory_space<vmem>>, vector<4x384xbf16>
    tpu.vector_store %arg7[%c44, %c0_50], %34 {strides = array<i32>} : memref<256x384xbf16, #tpu.memory_space<vmem>>, vector<4x384xbf16>,
    %c0_51 = arith.constant 0 : index
    %c0_52 = arith.constant 0 : index
    %c0_53 = arith.constant 0 : index
    %c27 = arith.constant 27 : index
    %36 = vector.load %arg2[%c0_51, %c0_52, %c0_53, %c27] : memref<1x1x4x640xbf16, #tpu.memory_space<vmem>>, vector<1x1x4x384xbf16>
    %37 = vector.shape_cast %36 : vector<1x1x4x384xbf16> to vector<4x384xbf16>
    %c48 = arith.constant 48 : index
    %c0_54 = arith.constant 0 : index
    %38 = vector.load %arg7[%c48, %c0_54] : memref<256x384xbf16, #tpu.memory_space<vmem>>, vector<4x384xbf16>
    tpu.vector_store %arg7[%c48, %c0_54], %37 {strides = array<i32>} : memref<256x384xbf16, #tpu.memory_space<vmem>>, vector<4x384xbf16>,
    %c0_55 = arith.constant 0 : index
    %c0_56 = arith.constant 0 : index
    %c0_57 = arith.constant 0 : index
    %c28_58 = arith.constant 28 : index
    %39 = vector.load %arg2[%c0_55, %c0_56, %c0_57, %c28_58] : memref<1x1x4x640xbf16, #tpu.memory_space<vmem>>, vector<1x1x4x384xbf16>
    %40 = vector.shape_cast %39 : vector<1x1x4x384xbf16> to vector<4x384xbf16>
    %c52 = arith.constant 52 : index
    %c0_59 = arith.constant 0 : index
    %41 = vector.load %arg7[%c52, %c0_59] : memref<256x384xbf16, #tpu.memory_space<vmem>>, vector<4x384xbf16>
    tpu.vector_store %arg7[%c52, %c0_59], %40 {strides = array<i32>} : memref<256x384xbf16, #tpu.memory_space<vmem>>, vector<4x384xbf16>,
    %c0_60 = arith.constant 0 : index
    %c0_61 = arith.constant 0 : index
    %c0_62 = arith.constant 0 : index
    %c44_63 = arith.constant 44 : index
    %42 = vector.load %arg2[%c0_60, %c0_61, %c0_62, %c44_63] : memref<1x1x4x640xbf16, #tpu.memory_space<vmem>>, vector<1x1x4x384xbf16>
    %43 = vector.shape_cast %42 : vector<1x1x4x384xbf16> to vector<4x384xbf16>
    %c56 = arith.constant 56 : index
    %c0_64 = arith.constant 0 : index
    %44 = vector.load %arg7[%c56, %c0_64] : memref<256x384xbf16, #tpu.memory_space<vmem>>, vector<4x384xbf16>
    tpu.vector_store %arg7[%c56, %c0_64], %43 {strides = array<i32>} : memref<256x384xbf16, #tpu.memory_space<vmem>>, vector<4x384xbf16>,
    %c0_65 = arith.constant 0 : index
    %c0_66 = arith.constant 0 : index
    %c0_67 = arith.constant 0 : index
    %c45 = arith.constant 45 : index
    %45 = vector.load %arg2[%c0_65, %c0_66, %c0_67, %c45] : memref<1x1x4x640xbf16, #tpu.memory_space<vmem>>, vector<1x1x4x384xbf16>
    %46 = vector.shape_cast %45 : vector<1x1x4x384xbf16> to vector<4x384xbf16>
    %c60 = arith.constant 60 : index
    %c0_68 = arith.constant 0 : index
    %47 = vector.load %arg7[%c60, %c0_68] : memref<256x384xbf16, #tpu.memory_space<vmem>>, vector<4x384xbf16>
    tpu.vector_store %arg7[%c60, %c0_68], %46 {strides = array<i32>} : memref<256x384xbf16, #tpu.memory_space<vmem>>, vector<4x384xbf16>,
    %c0_69 = arith.constant 0 : index
    %c0_70 = arith.constant 0 : index
    %c0_71 = arith.constant 0 : index
    %c46 = arith.constant 46 : index
    %48 = vector.load %arg2[%c0_69, %c0_70, %c0_71, %c46] : memref<1x1x4x640xbf16, #tpu.memory_space<vmem>>, vector<1x1x4x384xbf16>
    %49 = vector.shape_cast %48 : vector<1x1x4x384xbf16> to vector<4x384xbf16>
    %c64 = arith.constant 64 : index
    %c0_72 = arith.constant 0 : index
    %50 = vector.load %arg7[%c64, %c0_72] : memref<256x384xbf16, #tpu.memory_space<vmem>>, vector<4x384xbf16>
    tpu.vector_store %arg7[%c64, %c0_72], %49 {strides = array<i32>} : memref<256x384xbf16, #tpu.memory_space<vmem>>, vector<4x384xbf16>,
    %c0_73 = arith.constant 0 : index
    %c0_74 = arith.constant 0 : index
    %c0_75 = arith.constant 0 : index
    %c47 = arith.constant 47 : index
    %51 = vector.load %arg2[%c0_73, %c0_74, %c0_75, %c47] : memref<1x1x4x640xbf16, #tpu.memory_space<vmem>>, vector<1x1x4x384xbf16>
    %52 = vector.shape_cast %51 : vector<1x1x4x384xbf16> to vector<4x384xbf16>
    %c68 = arith.constant 68 : index
    %c0_76 = arith.constant 0 : index
    %53 = vector.load %arg7[%c68, %c0_76] : memref<256x384xbf16, #tpu.memory_space<vmem>>, vector<4x384xbf16>
    tpu.vector_store %arg7[%c68, %c0_76], %52 {strides = array<i32>} : memref<256x384xbf16, #tpu.memory_space<vmem>>, vector<4x384xbf16>,
    %c0_77 = arith.constant 0 : index
    %c0_78 = arith.constant 0 : index
    %c0_79 = arith.constant 0 : index
    %c48_80 = arith.constant 48 : index
    %54 = vector.load %arg2[%c0_77, %c0_78, %c0_79, %c48_80] : memref<1x1x4x640xbf16, #tpu.memory_space<vmem>>, vector<1x1x4x384xbf16>
    %55 = vector.shape_cast %54 : vector<1x1x4x384xbf16> to vector<4x384xbf16>
    %c72 = arith.constant 72 : index
    %c0_81 = arith.constant 0 : index
    %56 = vector.load %arg7[%c72, %c0_81] : memref<256x384xbf16, #tpu.memory_space<vmem>>, vector<4x384xbf16>
    tpu.vector_store %arg7[%c72, %c0_81], %55 {strides = array<i32>} : memref<256x384xbf16, #tpu.memory_space<vmem>>, vector<4x384xbf16>,
    %c0_82 = arith.constant 0 : index
    %c0_83 = arith.constant 0 : index
    %c0_84 = arith.constant 0 : index
    %c49 = arith.constant 49 : index
    %57 = vector.load %arg2[%c0_82, %c0_83, %c0_84, %c49] : memref<1x1x4x640xbf16, #tpu.memory_space<vmem>>, vector<1x1x4x384xbf16>
    %58 = vector.shape_cast %57 : vector<1x1x4x384xbf16> to vector<4x384xbf16>
    %c76 = arith.constant 76 : index
    %c0_85 = arith.constant 0 : index
    %59 = vector.load %arg7[%c76, %c0_85] : memref<256x384xbf16, #tpu.memory_space<vmem>>, vector<4x384xbf16>
    tpu.vector_store %arg7[%c76, %c0_85], %58 {strides = array<i32>} : memref<256x384xbf16, #tpu.memory_space<vmem>>, vector<4x384xbf16>,
    %c0_86 = arith.constant 0 : index
    %c0_87 = arith.constant 0 : index
    %c0_88 = arith.constant 0 : index
    %c50 = arith.constant 50 : index
    %60 = vector.load %arg2[%c0_86, %c0_87, %c0_88, %c50] : memref<1x1x4x640xbf16, #tpu.memory_space<vmem>>, vector<1x1x4x384xbf16>
    %61 = vector.shape_cast %60 : vector<1x1x4x384xbf16> to vector<4x384xbf16>
    %c80 = arith.constant 80 : index
    %c0_89 = arith.constant 0 : index
    %62 = vector.load %arg7[%c80, %c0_89] : memref<256x384xbf16, #tpu.memory_space<vmem>>, vector<4x384xbf16>
    tpu.vector_store %arg7[%c80, %c0_89], %61 {strides = array<i32>} : memref<256x384xbf16, #tpu.memory_space<vmem>>, vector<4x384xbf16>,
    %c0_90 = arith.constant 0 : index
    %c0_91 = arith.constant 0 : index
    %c0_92 = arith.constant 0 : index
    %c66 = arith.constant 66 : index
    %63 = vector.load %arg2[%c0_90, %c0_91, %c0_92, %c66] : memref<1x1x4x640xbf16, #tpu.memory_space<vmem>>, vector<1x1x4x384xbf16>
    %64 = vector.shape_cast %63 : vector<1x1x4x384xbf16> to vector<4x384xbf16>
    %c84 = arith.constant 84 : index
    %c0_93 = arith.constant 0 : index
    %65 = vector.load %arg7[%c84, %c0_93] : memref<256x384xbf16, #tpu.memory_space<vmem>>, vector<4x384xbf16>
    tpu.vector_store %arg7[%c84, %c0_93], %64 {strides = array<i32>} : memref<256x384xbf16, #tpu.memory_space<vmem>>, vector<4x384xbf16>,
    %c0_94 = arith.constant 0 : index
    %c0_95 = arith.constant 0 : index
    %c0_96 = arith.constant 0 : index
    %c67 = arith.constant 67 : index
    %66 = vector.load %arg2[%c0_94, %c0_95, %c0_96, %c67] : memref<1x1x4x640xbf16, #tpu.memory_space<vmem>>, vector<1x1x4x384xbf16>
    %67 = vector.shape_cast %66 : vector<1x1x4x384xbf16> to vector<4x384xbf16>
    %c88 = arith.constant 88 : index
    %c0_97 = arith.constant 0 : index
    %68 = vector.load %arg7[%c88, %c0_97] : memref<256x384xbf16, #tpu.memory_space<vmem>>, vector<4x384xbf16>
    tpu.vector_store %arg7[%c88, %c0_97], %67 {strides = array<i32>} : memref<256x384xbf16, #tpu.memory_space<vmem>>, vector<4x384xbf16>,
    %c0_98 = arith.constant 0 : index
    %c0_99 = arith.constant 0 : index
    %c0_100 = arith.constant 0 : index
    %c68_101 = arith.constant 68 : index
    %69 = vector.load %arg2[%c0_98, %c0_99, %c0_100, %c68_101] : memref<1x1x4x640xbf16, #tpu.memory_space<vmem>>, vector<1x1x4x384xbf16>
    %70 = vector.shape_cast %69 : vector<1x1x4x384xbf16> to vector<4x384xbf16>
    %c92 = arith.constant 92 : index
    %c0_102 = arith.constant 0 : index
    %71 = vector.load %arg7[%c92, %c0_102] : memref<256x384xbf16, #tpu.memory_space<vmem>>, vector<4x384xbf16>
    tpu.vector_store %arg7[%c92, %c0_102], %70 {strides = array<i32>} : memref<256x384xbf16, #tpu.memory_space<vmem>>, vector<4x384xbf16>,
    %c0_103 = arith.constant 0 : index
    %c0_104 = arith.constant 0 : index
    %c0_105 = arith.constant 0 : index
    %c69 = arith.constant 69 : index
    %72 = vector.load %arg2[%c0_103, %c0_104, %c0_105, %c69] : memref<1x1x4x640xbf16, #tpu.memory_space<vmem>>, vector<1x1x4x384xbf16>
    %73 = vector.shape_cast %72 : vector<1x1x4x384xbf16> to vector<4x384xbf16>
    %c96 = arith.constant 96 : index
    %c0_106 = arith.constant 0 : index
    %74 = vector.load %arg7[%c96, %c0_106] : memref<256x384xbf16, #tpu.memory_space<vmem>>, vector<4x384xbf16>
    tpu.vector_store %arg7[%c96, %c0_106], %73 {strides = array<i32>} : memref<256x384xbf16, #tpu.memory_space<vmem>>, vector<4x384xbf16>,
    %c0_107 = arith.constant 0 : index
    %c0_108 = arith.constant 0 : index
    %c0_109 = arith.constant 0 : index
    %c70 = arith.constant 70 : index
    %75 = vector.load %arg2[%c0_107, %c0_108, %c0_109, %c70] : memref<1x1x4x640xbf16, #tpu.memory_space<vmem>>, vector<1x1x4x384xbf16>
    %76 = vector.shape_cast %75 : vector<1x1x4x384xbf16> to vector<4x384xbf16>
    %c100 = arith.constant 100 : index
    %c0_110 = arith.constant 0 : index
    %77 = vector.load %arg7[%c100, %c0_110] : memref<256x384xbf16, #tpu.memory_space<vmem>>, vector<4x384xbf16>
    tpu.vector_store %arg7[%c100, %c0_110], %76 {strides = array<i32>} : memref<256x384xbf16, #tpu.memory_space<vmem>>, vector<4x384xbf16>,
    %c0_111 = arith.constant 0 : index
    %c0_112 = arith.constant 0 : index
    %c0_113 = arith.constant 0 : index
    %c71 = arith.constant 71 : index
    %78 = vector.load %arg2[%c0_111, %c0_112, %c0_113, %c71] : memref<1x1x4x640xbf16, #tpu.memory_space<vmem>>, vector<1x1x4x384xbf16>
    %79 = vector.shape_cast %78 : vector<1x1x4x384xbf16> to vector<4x384xbf16>
    %c104 = arith.constant 104 : index
    %c0_114 = arith.constant 0 : index
    %80 = vector.load %arg7[%c104, %c0_114] : memref<256x384xbf16, #tpu.memory_space<vmem>>, vector<4x384xbf16>
    tpu.vector_store %arg7[%c104, %c0_114], %79 {strides = array<i32>} : memref<256x384xbf16, #tpu.memory_space<vmem>>, vector<4x384xbf16>,
    %c0_115 = arith.constant 0 : index
    %c0_116 = arith.constant 0 : index
    %c0_117 = arith.constant 0 : index
    %c72_118 = arith.constant 72 : index
    %81 = vector.load %arg2[%c0_115, %c0_116, %c0_117, %c72_118] : memref<1x1x4x640xbf16, #tpu.memory_space<vmem>>, vector<1x1x4x384xbf16>
    %82 = vector.shape_cast %81 : vector<1x1x4x384xbf16> to vector<4x384xbf16>
    %c108 = arith.constant 108 : index
    %c0_119 = arith.constant 0 : index
    %83 = vector.load %arg7[%c108, %c0_119] : memref<256x384xbf16, #tpu.memory_space<vmem>>, vector<4x384xbf16>
    tpu.vector_store %arg7[%c108, %c0_119], %82 {strides = array<i32>} : memref<256x384xbf16, #tpu.memory_space<vmem>>, vector<4x384xbf16>,
    %c0_120 = arith.constant 0 : index
    %c0_121 = arith.constant 0 : index
    %c0_122 = arith.constant 0 : index
    %c88_123 = arith.constant 88 : index
    %84 = vector.load %arg2[%c0_120, %c0_121, %c0_122, %c88_123] : memref<1x1x4x640xbf16, #tpu.memory_space<vmem>>, vector<1x1x4x384xbf16>
    %85 = vector.shape_cast %84 : vector<1x1x4x384xbf16> to vector<4x384xbf16>
    %c112 = arith.constant 112 : index
    %c0_124 = arith.constant 0 : index
    %86 = vector.load %arg7[%c112, %c0_124] : memref<256x384xbf16, #tpu.memory_space<vmem>>, vector<4x384xbf16>
    tpu.vector_store %arg7[%c112, %c0_124], %85 {strides = array<i32>} : memref<256x384xbf16, #tpu.memory_space<vmem>>, vector<4x384xbf16>,
    %c0_125 = arith.constant 0 : index
    %c0_126 = arith.constant 0 : index
    %c0_127 = arith.constant 0 : index
    %c89 = arith.constant 89 : index
    %87 = vector.load %arg2[%c0_125, %c0_126, %c0_127, %c89] : memref<1x1x4x640xbf16, #tpu.memory_space<vmem>>, vector<1x1x4x384xbf16>
    %88 = vector.shape_cast %87 : vector<1x1x4x384xbf16> to vector<4x384xbf16>
    %c116 = arith.constant 116 : index
    %c0_128 = arith.constant 0 : index
    %89 = vector.load %arg7[%c116, %c0_128] : memref<256x384xbf16, #tpu.memory_space<vmem>>, vector<4x384xbf16>
    tpu.vector_store %arg7[%c116, %c0_128], %88 {strides = array<i32>} : memref<256x384xbf16, #tpu.memory_space<vmem>>, vector<4x384xbf16>,
    %c0_129 = arith.constant 0 : index
    %c0_130 = arith.constant 0 : index
    %c0_131 = arith.constant 0 : index
    %c90 = arith.constant 90 : index
    %90 = vector.load %arg2[%c0_129, %c0_130, %c0_131, %c90] : memref<1x1x4x640xbf16, #tpu.memory_space<vmem>>, vector<1x1x4x384xbf16>
    %91 = vector.shape_cast %90 : vector<1x1x4x384xbf16> to vector<4x384xbf16>
    %c120 = arith.constant 120 : index
    %c0_132 = arith.constant 0 : index
    %92 = vector.load %arg7[%c120, %c0_132] : memref<256x384xbf16, #tpu.memory_space<vmem>>, vector<4x384xbf16>
    tpu.vector_store %arg7[%c120, %c0_132], %91 {strides = array<i32>} : memref<256x384xbf16, #tpu.memory_space<vmem>>, vector<4x384xbf16>,
    %c0_133 = arith.constant 0 : index
    %c0_134 = arith.constant 0 : index
    %c0_135 = arith.constant 0 : index
    %c91 = arith.constant 91 : index
    %93 = vector.load %arg2[%c0_133, %c0_134, %c0_135, %c91] : memref<1x1x4x640xbf16, #tpu.memory_space<vmem>>, vector<1x1x4x384xbf16>
    %94 = vector.shape_cast %93 : vector<1x1x4x384xbf16> to vector<4x384xbf16>
    %c124 = arith.constant 124 : index
    %c0_136 = arith.constant 0 : index
    %95 = vector.load %arg7[%c124, %c0_136] : memref<256x384xbf16, #tpu.memory_space<vmem>>, vector<4x384xbf16>
    tpu.vector_store %arg7[%c124, %c0_136], %94 {strides = array<i32>} : memref<256x384xbf16, #tpu.memory_space<vmem>>, vector<4x384xbf16>,
    %c0_137 = arith.constant 0 : index
    %c0_138 = arith.constant 0 : index
    %c0_139 = arith.constant 0 : index
    %c92_140 = arith.constant 92 : index
    %96 = vector.load %arg2[%c0_137, %c0_138, %c0_139, %c92_140] : memref<1x1x4x640xbf16, #tpu.memory_space<vmem>>, vector<1x1x4x384xbf16>
    %97 = vector.shape_cast %96 : vector<1x1x4x384xbf16> to vector<4x384xbf16>
    %c128 = arith.constant 128 : index
    %c0_141 = arith.constant 0 : index
    %98 = vector.load %arg7[%c128, %c0_141] : memref<256x384xbf16, #tpu.memory_space<vmem>>, vector<4x384xbf16>
    tpu.vector_store %arg7[%c128, %c0_141], %97 {strides = array<i32>} : memref<256x384xbf16, #tpu.memory_space<vmem>>, vector<4x384xbf16>,
    %c0_142 = arith.constant 0 : index
    %c0_143 = arith.constant 0 : index
    %c0_144 = arith.constant 0 : index
    %c93 = arith.constant 93 : index
    %99 = vector.load %arg2[%c0_142, %c0_143, %c0_144, %c93] : memref<1x1x4x640xbf16, #tpu.memory_space<vmem>>, vector<1x1x4x384xbf16>
    %100 = vector.shape_cast %99 : vector<1x1x4x384xbf16> to vector<4x384xbf16>
    %c132 = arith.constant 132 : index
    %c0_145 = arith.constant 0 : index
    %101 = vector.load %arg7[%c132, %c0_145] : memref<256x384xbf16, #tpu.memory_space<vmem>>, vector<4x384xbf16>
    tpu.vector_store %arg7[%c132, %c0_145], %100 {strides = array<i32>} : memref<256x384xbf16, #tpu.memory_space<vmem>>, vector<4x384xbf16>,
    %c0_146 = arith.constant 0 : index
    %c0_147 = arith.constant 0 : index
    %c0_148 = arith.constant 0 : index
    %c94 = arith.constant 94 : index
    %102 = vector.load %arg2[%c0_146, %c0_147, %c0_148, %c94] : memref<1x1x4x640xbf16, #tpu.memory_space<vmem>>, vector<1x1x4x384xbf16>
    %103 = vector.shape_cast %102 : vector<1x1x4x384xbf16> to vector<4x384xbf16>
    %c136 = arith.constant 136 : index
    %c0_149 = arith.constant 0 : index
    %104 = vector.load %arg7[%c136, %c0_149] : memref<256x384xbf16, #tpu.memory_space<vmem>>, vector<4x384xbf16>
    tpu.vector_store %arg7[%c136, %c0_149], %103 {strides = array<i32>} : memref<256x384xbf16, #tpu.memory_space<vmem>>, vector<4x384xbf16>,
    %c0_150 = arith.constant 0 : index
    %c0_151 = arith.constant 0 : index
    %c0_152 = arith.constant 0 : index
    %c110 = arith.constant 110 : index
    %105 = vector.load %arg2[%c0_150, %c0_151, %c0_152, %c110] : memref<1x1x4x640xbf16, #tpu.memory_space<vmem>>, vector<1x1x4x384xbf16>
    %106 = vector.shape_cast %105 : vector<1x1x4x384xbf16> to vector<4x384xbf16>
    %c140 = arith.constant 140 : index
    %c0_153 = arith.constant 0 : index
    %107 = vector.load %arg7[%c140, %c0_153] : memref<256x384xbf16, #tpu.memory_space<vmem>>, vector<4x384xbf16>
    tpu.vector_store %arg7[%c140, %c0_153], %106 {strides = array<i32>} : memref<256x384xbf16, #tpu.memory_space<vmem>>, vector<4x384xbf16>,
    %c0_154 = arith.constant 0 : index
    %c0_155 = arith.constant 0 : index
    %c0_156 = arith.constant 0 : index
    %c111 = arith.constant 111 : index
    %108 = vector.load %arg2[%c0_154, %c0_155, %c0_156, %c111] : memref<1x1x4x640xbf16, #tpu.memory_space<vmem>>, vector<1x1x4x384xbf16>
    %109 = vector.shape_cast %108 : vector<1x1x4x384xbf16> to vector<4x384xbf16>
    %c144 = arith.constant 144 : index
    %c0_157 = arith.constant 0 : index
    %110 = vector.load %arg7[%c144, %c0_157] : memref<256x384xbf16, #tpu.memory_space<vmem>>, vector<4x384xbf16>
    tpu.vector_store %arg7[%c144, %c0_157], %109 {strides = array<i32>} : memref<256x384xbf16, #tpu.memory_space<vmem>>, vector<4x384xbf16>,
    %c0_158 = arith.constant 0 : index
    %c0_159 = arith.constant 0 : index
    %c0_160 = arith.constant 0 : index
    %c112_161 = arith.constant 112 : index
    %111 = vector.load %arg2[%c0_158, %c0_159, %c0_160, %c112_161] : memref<1x1x4x640xbf16, #tpu.memory_space<vmem>>, vector<1x1x4x384xbf16>
    %112 = vector.shape_cast %111 : vector<1x1x4x384xbf16> to vector<4x384xbf16>
    %c148 = arith.constant 148 : index
    %c0_162 = arith.constant 0 : index
    %113 = vector.load %arg7[%c148, %c0_162] : memref<256x384xbf16, #tpu.memory_space<vmem>>, vector<4x384xbf16>
    tpu.vector_store %arg7[%c148, %c0_162], %112 {strides = array<i32>} : memref<256x384xbf16, #tpu.memory_space<vmem>>, vector<4x384xbf16>,
    %c0_163 = arith.constant 0 : index
    %c0_164 = arith.constant 0 : index
    %c0_165 = arith.constant 0 : index
    %c113 = arith.constant 113 : index
    %114 = vector.load %arg2[%c0_163, %c0_164, %c0_165, %c113] : memref<1x1x4x640xbf16, #tpu.memory_space<vmem>>, vector<1x1x4x384xbf16>
    %115 = vector.shape_cast %114 : vector<1x1x4x384xbf16> to vector<4x384xbf16>
    %c152 = arith.constant 152 : index
    %c0_166 = arith.constant 0 : index
    %116 = vector.load %arg7[%c152, %c0_166] : memref<256x384xbf16, #tpu.memory_space<vmem>>, vector<4x384xbf16>
    tpu.vector_store %arg7[%c152, %c0_166], %115 {strides = array<i32>} : memref<256x384xbf16, #tpu.memory_space<vmem>>, vector<4x384xbf16>,
    %c0_167 = arith.constant 0 : index
    %c0_168 = arith.constant 0 : index
    %c0_169 = arith.constant 0 : index
    %c114 = arith.constant 114 : index
    %117 = vector.load %arg2[%c0_167, %c0_168, %c0_169, %c114] : memref<1x1x4x640xbf16, #tpu.memory_space<vmem>>, vector<1x1x4x384xbf16>
    %118 = vector.shape_cast %117 : vector<1x1x4x384xbf16> to vector<4x384xbf16>
    %c156 = arith.constant 156 : index
    %c0_170 = arith.constant 0 : index
    %119 = vector.load %arg7[%c156, %c0_170] : memref<256x384xbf16, #tpu.memory_space<vmem>>, vector<4x384xbf16>
    tpu.vector_store %arg7[%c156, %c0_170], %118 {strides = array<i32>} : memref<256x384xbf16, #tpu.memory_space<vmem>>, vector<4x384xbf16>,
    %c0_171 = arith.constant 0 : index
    %c0_172 = arith.constant 0 : index
    %c0_173 = arith.constant 0 : index
    %c115 = arith.constant 115 : index
    %120 = vector.load %arg2[%c0_171, %c0_172, %c0_173, %c115] : memref<1x1x4x640xbf16, #tpu.memory_space<vmem>>, vector<1x1x4x384xbf16>
    %121 = vector.shape_cast %120 : vector<1x1x4x384xbf16> to vector<4x384xbf16>
    %c160 = arith.constant 160 : index
    %c0_174 = arith.constant 0 : index
    %122 = vector.load %arg7[%c160, %c0_174] : memref<256x384xbf16, #tpu.memory_space<vmem>>, vector<4x384xbf16>
    tpu.vector_store %arg7[%c160, %c0_174], %121 {strides = array<i32>} : memref<256x384xbf16, #tpu.memory_space<vmem>>, vector<4x384xbf16>,
    %c0_175 = arith.constant 0 : index
    %c0_176 = arith.constant 0 : index
    %c0_177 = arith.constant 0 : index
    %c116_178 = arith.constant 116 : index
    %123 = vector.load %arg2[%c0_175, %c0_176, %c0_177, %c116_178] : memref<1x1x4x640xbf16, #tpu.memory_space<vmem>>, vector<1x1x4x384xbf16>
    %124 = vector.shape_cast %123 : vector<1x1x4x384xbf16> to vector<4x384xbf16>
    %c164 = arith.constant 164 : index
    %c0_179 = arith.constant 0 : index
    %125 = vector.load %arg7[%c164, %c0_179] : memref<256x384xbf16, #tpu.memory_space<vmem>>, vector<4x384xbf16>
    tpu.vector_store %arg7[%c164, %c0_179], %124 {strides = array<i32>} : memref<256x384xbf16, #tpu.memory_space<vmem>>, vector<4x384xbf16>,
    %c0_180 = arith.constant 0 : index
    %c0_181 = arith.constant 0 : index
    %c0_182 = arith.constant 0 : index
    %c132_183 = arith.constant 132 : index
    %126 = vector.load %arg2[%c0_180, %c0_181, %c0_182, %c132_183] : memref<1x1x4x640xbf16, #tpu.memory_space<vmem>>, vector<1x1x4x384xbf16>
    %127 = vector.shape_cast %126 : vector<1x1x4x384xbf16> to vector<4x384xbf16>
    %c168 = arith.constant 168 : index
    %c0_184 = arith.constant 0 : index
    %128 = vector.load %arg7[%c168, %c0_184] : memref<256x384xbf16, #tpu.memory_space<vmem>>, vector<4x384xbf16>
    tpu.vector_store %arg7[%c168, %c0_184], %127 {strides = array<i32>} : memref<256x384xbf16, #tpu.memory_space<vmem>>, vector<4x384xbf16>,
    %c0_185 = arith.constant 0 : index
    %c0_186 = arith.constant 0 : index
    %c0_187 = arith.constant 0 : index
    %c133 = arith.constant 133 : index
    %129 = vector.load %arg2[%c0_185, %c0_186, %c0_187, %c133] : memref<1x1x4x640xbf16, #tpu.memory_space<vmem>>, vector<1x1x4x384xbf16>
    %130 = vector.shape_cast %129 : vector<1x1x4x384xbf16> to vector<4x384xbf16>
    %c172 = arith.constant 172 : index
    %c0_188 = arith.constant 0 : index
    %131 = vector.load %arg7[%c172, %c0_188] : memref<256x384xbf16, #tpu.memory_space<vmem>>, vector<4x384xbf16>
    tpu.vector_store %arg7[%c172, %c0_188], %130 {strides = array<i32>} : memref<256x384xbf16, #tpu.memory_space<vmem>>, vector<4x384xbf16>,
    %c0_189 = arith.constant 0 : index
    %c0_190 = arith.constant 0 : index
    %c0_191 = arith.constant 0 : index
    %c134 = arith.constant 134 : index
    %132 = vector.load %arg2[%c0_189, %c0_190, %c0_191, %c134] : memref<1x1x4x640xbf16, #tpu.memory_space<vmem>>, vector<1x1x4x384xbf16>
    %133 = vector.shape_cast %132 : vector<1x1x4x384xbf16> to vector<4x384xbf16>
    %c176 = arith.constant 176 : index
    %c0_192 = arith.constant 0 : index
    %134 = vector.load %arg7[%c176, %c0_192] : memref<256x384xbf16, #tpu.memory_space<vmem>>, vector<4x384xbf16>
    tpu.vector_store %arg7[%c176, %c0_192], %133 {strides = array<i32>} : memref<256x384xbf16, #tpu.memory_space<vmem>>, vector<4x384xbf16>,
    %c0_193 = arith.constant 0 : index
    %c0_194 = arith.constant 0 : index
    %c0_195 = arith.constant 0 : index
    %c135 = arith.constant 135 : index
    %135 = vector.load %arg2[%c0_193, %c0_194, %c0_195, %c135] : memref<1x1x4x640xbf16, #tpu.memory_space<vmem>>, vector<1x1x4x384xbf16>
    %136 = vector.shape_cast %135 : vector<1x1x4x384xbf16> to vector<4x384xbf16>
    %c180 = arith.constant 180 : index
    %c0_196 = arith.constant 0 : index
    %137 = vector.load %arg7[%c180, %c0_196] : memref<256x384xbf16, #tpu.memory_space<vmem>>, vector<4x384xbf16>
    tpu.vector_store %arg7[%c180, %c0_196], %136 {strides = array<i32>} : memref<256x384xbf16, #tpu.memory_space<vmem>>, vector<4x384xbf16>,
    %c0_197 = arith.constant 0 : index
    %c0_198 = arith.constant 0 : index
    %c0_199 = arith.constant 0 : index
    %c136_200 = arith.constant 136 : index
    %138 = vector.load %arg2[%c0_197, %c0_198, %c0_199, %c136_200] : memref<1x1x4x640xbf16, #tpu.memory_space<vmem>>, vector<1x1x4x384xbf16>
    %139 = vector.shape_cast %138 : vector<1x1x4x384xbf16> to vector<4x384xbf16>
    %c184 = arith.constant 184 : index
    %c0_201 = arith.constant 0 : index
    %140 = vector.load %arg7[%c184, %c0_201] : memref<256x384xbf16, #tpu.memory_space<vmem>>, vector<4x384xbf16>
    tpu.vector_store %arg7[%c184, %c0_201], %139 {strides = array<i32>} : memref<256x384xbf16, #tpu.memory_space<vmem>>, vector<4x384xbf16>,
    %c0_202 = arith.constant 0 : index
    %c0_203 = arith.constant 0 : index
    %c0_204 = arith.constant 0 : index
    %c137 = arith.constant 137 : index
    %141 = vector.load %arg2[%c0_202, %c0_203, %c0_204, %c137] : memref<1x1x4x640xbf16, #tpu.memory_space<vmem>>, vector<1x1x4x384xbf16>
    %142 = vector.shape_cast %141 : vector<1x1x4x384xbf16> to vector<4x384xbf16>
    %c188 = arith.constant 188 : index
    %c0_205 = arith.constant 0 : index
    %143 = vector.load %arg7[%c188, %c0_205] : memref<256x384xbf16, #tpu.memory_space<vmem>>, vector<4x384xbf16>
    tpu.vector_store %arg7[%c188, %c0_205], %142 {strides = array<i32>} : memref<256x384xbf16, #tpu.memory_space<vmem>>, vector<4x384xbf16>,
    %c0_206 = arith.constant 0 : index
    %c0_207 = arith.constant 0 : index
    %c0_208 = arith.constant 0 : index
    %c138 = arith.constant 138 : index
    %144 = vector.load %arg2[%c0_206, %c0_207, %c0_208, %c138] : memref<1x1x4x640xbf16, #tpu.memory_space<vmem>>, vector<1x1x4x384xbf16>
    %145 = vector.shape_cast %144 : vector<1x1x4x384xbf16> to vector<4x384xbf16>
    %c192 = arith.constant 192 : index
    %c0_209 = arith.constant 0 : index
    %146 = vector.load %arg7[%c192, %c0_209] : memref<256x384xbf16, #tpu.memory_space<vmem>>, vector<4x384xbf16>
    tpu.vector_store %arg7[%c192, %c0_209], %145 {strides = array<i32>} : memref<256x384xbf16, #tpu.memory_space<vmem>>, vector<4x384xbf16>,
    %cst = arith.constant 0.000000e+00 : bf16
    %147 = vector.broadcast %cst : bf16 to vector<60x384xbf16>
    %c196 = arith.constant 196 : index
    %c0_210 = arith.constant 0 : index
    %148 = vector.load %arg7[%c196, %c0_210] : memref<256x384xbf16, #tpu.memory_space<vmem>>, vector<60x384xbf16>
    tpu.vector_store %arg7[%c196, %c0_210], %147 {strides = array<i32>} : memref<256x384xbf16, #tpu.memory_space<vmem>>, vector<60x384xbf16>,
    %c0_211 = arith.constant 0 : index
    %c0_212 = arith.constant 0 : index
    %c0_213 = arith.constant 0 : index
    %149 = vector.load %arg3[%c0_211, %c0_212, %c0_213] : memref<1x8x256xbf16, #tpu.memory_space<vmem>>, vector<1x8x256xbf16>
    %150 = vector.shape_cast %149 : vector<1x8x256xbf16> to vector<8x256xbf16>
    %c0_214 = arith.constant 0 : index
    %c0_215 = arith.constant 0 : index
    %151 = vector.load %arg7[%c0_214, %c0_215] : memref<256x384xbf16, #tpu.memory_space<vmem>>, vector<256x384xbf16>
    %cst_216 = arith.constant dense<0.000000e+00> : vector<8x384xf32>
    %152 = tpu.matmul %150, %151, %cst_216 {dimension_numbers = #tpu.dot_dimension_numbers<[1], [0], [0], [1], [0, 0, 1, 1], [], []>} : vector<8x256xbf16>, vector<256x384xbf16>, vector<8x384xf32> -> vector<8x384xf32>
    %c0_217 = arith.constant 0 : index
    %c0_218 = arith.constant 0 : index
    %c0_219 = arith.constant 0 : index
    %153 = vector.load %arg4[%c0_217, %c0_218, %c0_219] : memref<1x8x1xf32, #tpu.memory_space<vmem>>, vector<1x8x1xf32>
    %154 = vector.shape_cast %153 : vector<1x8x1xf32> to vector<8x1xf32>
    %155 = vector.broadcast %154 : vector<8x1xf32> to vector<8x384xf32>
    %156 = arith.mulf %152, %155 : vector<8x384xf32>
    %c0_220 = arith.constant 0 : index
    %c0_221 = arith.constant 0 : index
    %c0_222 = arith.constant 0 : index
    %157 = vector.load %arg5[%c0_220, %c0_221, %c0_222] : memref<1x8x1xf32, #tpu.memory_space<vmem>>, vector<1x8x1xf32>
    %158 = vector.shape_cast %157 : vector<1x8x1xf32> to vector<8x1xf32>
    %159 = vector.broadcast %158 : vector<8x1xf32> to vector<8x384xf32>
    %160 = arith.addf %156, %159 : vector<8x384xf32>
    %cst_223 = arith.constant 0.000000e+00 : f32
    %161 = vector.broadcast %cst_223 : f32 to vector<8x384xf32>
    %162 = arith.maximumf %160, %161 : vector<8x384xf32>
    %163 = arith.truncf %162 : vector<8x384xf32> to vector<8x384xbf16>
    %c0_224 = arith.constant 0 : index
    %c0_225 = arith.constant 0 : index
    %c0_226 = arith.constant 0 : index
    %c0_227 = arith.constant 0 : index
    %164 = vector.load %arg6[%c0_224, %c0_225, %c0_226, %c0_227] : memref<1x1x8x384xbf16, #tpu.memory_space<vmem>>, vector<1x1x8x384xbf16>
    %165 = vector.shape_cast %164 : vector<1x1x8x384xbf16> to vector<8x384xbf16>
    %166 = vector.shape_cast %163 : vector<8x384xbf16> to vector<1x1x8x384xbf16>
    tpu.vector_store %arg6[%c0_224, %c0_225, %c0_226, %c0_227], %166 {strides = array<i32>} : memref<1x1x8x384xbf16, #tpu.memory_space<vmem>>, vector<1x1x8x384xbf16>,
    return
  }
  func.func @transform_0(%arg0: i32, %arg1: i32) -> (i32, i32, i32, i32) {
    %c0_i32 = arith.constant 0 : i32
    %c0_i32_0 = arith.constant 0 : i32
    %c0_i32_1 = arith.constant 0 : i32
    return %arg0, %arg1, %c0_i32, %c0_i32_0 : i32, i32, i32, i32
  }
  func.func @transform_1(%arg0: i32, %arg1: i32) -> (i32, i32, i32) {
    %c0_i32 = arith.constant 0 : i32
    %c0_i32_0 = arith.constant 0 : i32
    %c0_i32_1 = arith.constant 0 : i32
    return %arg0, %c0_i32, %c0_i32_0 : i32, i32, i32
  }
  func.func @transform_2(%arg0: i32, %arg1: i32) -> (i32, i32, i32) {
    %c0_i32 = arith.constant 0 : i32
    %c0_i32_0 = arith.constant 0 : i32
    %c0_i32_1 = arith.constant 0 : i32
    return %arg0, %c0_i32, %c0_i32_0 : i32, i32, i32
  }
  func.func @transform_3(%arg0: i32, %arg1: i32) -> (i32, i32, i32) {
    %c0_i32 = arith.constant 0 : i32
    %c0_i32_0 = arith.constant 0 : i32
    %c0_i32_1 = arith.constant 0 : i32
    return %arg0, %c0_i32, %c0_i32_0 : i32, i32, i32
  }
  func.func @transform_4(%arg0: i32, %arg1: i32) -> (i32, i32, i32, i32) {
    %c0_i32 = arith.constant 0 : i32
    %c0_i32_0 = arith.constant 0 : i32
    %c0_i32_1 = arith.constant 0 : i32
    return %arg1, %arg0, %c0_i32, %c0_i32_0 : i32, i32, i32, i32
  }
}

module attributes {stable_mosaic.version = 11 : i64} {
  func.func @_conv_bn_relu_kernel(%arg0: i32, %arg1: i32, %arg2: memref<1x1x32x512xbf16, #tpu.memory_space<vmem>>, %arg3: memref<1x8x384xbf16, #tpu.memory_space<vmem>>, %arg4: memref<1x8x1xf32, #tpu.memory_space<vmem>>, %arg5: memref<1x8x1xf32, #tpu.memory_space<vmem>>, %arg6: memref<1x1x8x384xf32, #tpu.memory_space<vmem>>, %arg7: memref<384x384xbf16, #tpu.memory_space<vmem>>) attributes {dimension_semantics = [#tpu.dimension_semantics<parallel>, #tpu.dimension_semantics<parallel>], iteration_bounds = array<i64: 1, 2>, scalar_prefetch = 0 : i64, scratch_operands = 1 : i64, tpu.core_type = #tpu.core_type<tc>, window_params = [{transform_indices = @transform_0, window_bounds = array<i64: 1, 1, 32, 512>}, {transform_indices = @transform_1, window_bounds = array<i64: 1, 8, 384>}, {transform_indices = @transform_2, window_bounds = array<i64: 1, 8, 1>}, {transform_indices = @transform_3, window_bounds = array<i64: 1, 8, 1>}, {transform_indices = @transform_4, window_bounds = array<i64: 1, 1, 8, 384>}]} {
    %c0 = arith.constant 0 : index
    %c0_0 = arith.constant 0 : index
    %c0_1 = arith.constant 0 : index
    %c0_2 = arith.constant 0 : index
    %0 = vector.load %arg2[%c0, %c0_0, %c0_1, %c0_2] : memref<1x1x32x512xbf16, #tpu.memory_space<vmem>>, vector<1x1x32x384xbf16>
    %1 = vector.shape_cast %0 : vector<1x1x32x384xbf16> to vector<32x384xbf16>
    %c0_3 = arith.constant 0 : index
    %c0_4 = arith.constant 0 : index
    %2 = vector.load %arg7[%c0_3, %c0_4] : memref<384x384xbf16, #tpu.memory_space<vmem>>, vector<32x384xbf16>
    tpu.vector_store %arg7[%c0_3, %c0_4], %1 {strides = array<i32>} : memref<384x384xbf16, #tpu.memory_space<vmem>>, vector<32x384xbf16>,
    %c0_5 = arith.constant 0 : index
    %c0_6 = arith.constant 0 : index
    %c0_7 = arith.constant 0 : index
    %c1 = arith.constant 1 : index
    %3 = vector.load %arg2[%c0_5, %c0_6, %c0_7, %c1] : memref<1x1x32x512xbf16, #tpu.memory_space<vmem>>, vector<1x1x32x384xbf16>
    %4 = vector.shape_cast %3 : vector<1x1x32x384xbf16> to vector<32x384xbf16>
    %c32 = arith.constant 32 : index
    %c0_8 = arith.constant 0 : index
    %5 = vector.load %arg7[%c32, %c0_8] : memref<384x384xbf16, #tpu.memory_space<vmem>>, vector<32x384xbf16>
    tpu.vector_store %arg7[%c32, %c0_8], %4 {strides = array<i32>} : memref<384x384xbf16, #tpu.memory_space<vmem>>, vector<32x384xbf16>,
    %c0_9 = arith.constant 0 : index
    %c0_10 = arith.constant 0 : index
    %c0_11 = arith.constant 0 : index
    %c2 = arith.constant 2 : index
    %6 = vector.load %arg2[%c0_9, %c0_10, %c0_11, %c2] : memref<1x1x32x512xbf16, #tpu.memory_space<vmem>>, vector<1x1x32x384xbf16>
    %7 = vector.shape_cast %6 : vector<1x1x32x384xbf16> to vector<32x384xbf16>
    %c64 = arith.constant 64 : index
    %c0_12 = arith.constant 0 : index
    %8 = vector.load %arg7[%c64, %c0_12] : memref<384x384xbf16, #tpu.memory_space<vmem>>, vector<32x384xbf16>
    tpu.vector_store %arg7[%c64, %c0_12], %7 {strides = array<i32>} : memref<384x384xbf16, #tpu.memory_space<vmem>>, vector<32x384xbf16>,
    %c0_13 = arith.constant 0 : index
    %c0_14 = arith.constant 0 : index
    %c0_15 = arith.constant 0 : index
    %c18 = arith.constant 18 : index
    %9 = vector.load %arg2[%c0_13, %c0_14, %c0_15, %c18] : memref<1x1x32x512xbf16, #tpu.memory_space<vmem>>, vector<1x1x32x384xbf16>
    %10 = vector.shape_cast %9 : vector<1x1x32x384xbf16> to vector<32x384xbf16>
    %c96 = arith.constant 96 : index
    %c0_16 = arith.constant 0 : index
    %11 = vector.load %arg7[%c96, %c0_16] : memref<384x384xbf16, #tpu.memory_space<vmem>>, vector<32x384xbf16>
    tpu.vector_store %arg7[%c96, %c0_16], %10 {strides = array<i32>} : memref<384x384xbf16, #tpu.memory_space<vmem>>, vector<32x384xbf16>,
    %c0_17 = arith.constant 0 : index
    %c0_18 = arith.constant 0 : index
    %c0_19 = arith.constant 0 : index
    %c19 = arith.constant 19 : index
    %12 = vector.load %arg2[%c0_17, %c0_18, %c0_19, %c19] : memref<1x1x32x512xbf16, #tpu.memory_space<vmem>>, vector<1x1x32x384xbf16>
    %13 = vector.shape_cast %12 : vector<1x1x32x384xbf16> to vector<32x384xbf16>
    %c128 = arith.constant 128 : index
    %c0_20 = arith.constant 0 : index
    %14 = vector.load %arg7[%c128, %c0_20] : memref<384x384xbf16, #tpu.memory_space<vmem>>, vector<32x384xbf16>
    tpu.vector_store %arg7[%c128, %c0_20], %13 {strides = array<i32>} : memref<384x384xbf16, #tpu.memory_space<vmem>>, vector<32x384xbf16>,
    %c0_21 = arith.constant 0 : index
    %c0_22 = arith.constant 0 : index
    %c0_23 = arith.constant 0 : index
    %c20 = arith.constant 20 : index
    %15 = vector.load %arg2[%c0_21, %c0_22, %c0_23, %c20] : memref<1x1x32x512xbf16, #tpu.memory_space<vmem>>, vector<1x1x32x384xbf16>
    %16 = vector.shape_cast %15 : vector<1x1x32x384xbf16> to vector<32x384xbf16>
    %c160 = arith.constant 160 : index
    %c0_24 = arith.constant 0 : index
    %17 = vector.load %arg7[%c160, %c0_24] : memref<384x384xbf16, #tpu.memory_space<vmem>>, vector<32x384xbf16>
    tpu.vector_store %arg7[%c160, %c0_24], %16 {strides = array<i32>} : memref<384x384xbf16, #tpu.memory_space<vmem>>, vector<32x384xbf16>,
    %c0_25 = arith.constant 0 : index
    %c0_26 = arith.constant 0 : index
    %c0_27 = arith.constant 0 : index
    %c36 = arith.constant 36 : index
    %18 = vector.load %arg2[%c0_25, %c0_26, %c0_27, %c36] : memref<1x1x32x512xbf16, #tpu.memory_space<vmem>>, vector<1x1x32x384xbf16>
    %19 = vector.shape_cast %18 : vector<1x1x32x384xbf16> to vector<32x384xbf16>
    %c192 = arith.constant 192 : index
    %c0_28 = arith.constant 0 : index
    %20 = vector.load %arg7[%c192, %c0_28] : memref<384x384xbf16, #tpu.memory_space<vmem>>, vector<32x384xbf16>
    tpu.vector_store %arg7[%c192, %c0_28], %19 {strides = array<i32>} : memref<384x384xbf16, #tpu.memory_space<vmem>>, vector<32x384xbf16>,
    %c0_29 = arith.constant 0 : index
    %c0_30 = arith.constant 0 : index
    %c0_31 = arith.constant 0 : index
    %c37 = arith.constant 37 : index
    %21 = vector.load %arg2[%c0_29, %c0_30, %c0_31, %c37] : memref<1x1x32x512xbf16, #tpu.memory_space<vmem>>, vector<1x1x32x384xbf16>
    %22 = vector.shape_cast %21 : vector<1x1x32x384xbf16> to vector<32x384xbf16>
    %c224 = arith.constant 224 : index
    %c0_32 = arith.constant 0 : index
    %23 = vector.load %arg7[%c224, %c0_32] : memref<384x384xbf16, #tpu.memory_space<vmem>>, vector<32x384xbf16>
    tpu.vector_store %arg7[%c224, %c0_32], %22 {strides = array<i32>} : memref<384x384xbf16, #tpu.memory_space<vmem>>, vector<32x384xbf16>,
    %c0_33 = arith.constant 0 : index
    %c0_34 = arith.constant 0 : index
    %c0_35 = arith.constant 0 : index
    %c38 = arith.constant 38 : index
    %24 = vector.load %arg2[%c0_33, %c0_34, %c0_35, %c38] : memref<1x1x32x512xbf16, #tpu.memory_space<vmem>>, vector<1x1x32x384xbf16>
    %25 = vector.shape_cast %24 : vector<1x1x32x384xbf16> to vector<32x384xbf16>
    %c256 = arith.constant 256 : index
    %c0_36 = arith.constant 0 : index
    %26 = vector.load %arg7[%c256, %c0_36] : memref<384x384xbf16, #tpu.memory_space<vmem>>, vector<32x384xbf16>
    tpu.vector_store %arg7[%c256, %c0_36], %25 {strides = array<i32>} : memref<384x384xbf16, #tpu.memory_space<vmem>>, vector<32x384xbf16>,
    %cst = arith.constant 0.000000e+00 : bf16
    %27 = vector.broadcast %cst : bf16 to vector<96x384xbf16>
    %c288 = arith.constant 288 : index
    %c0_37 = arith.constant 0 : index
    %28 = vector.load %arg7[%c288, %c0_37] : memref<384x384xbf16, #tpu.memory_space<vmem>>, vector<96x384xbf16>
    tpu.vector_store %arg7[%c288, %c0_37], %27 {strides = array<i32>} : memref<384x384xbf16, #tpu.memory_space<vmem>>, vector<96x384xbf16>,
    %c0_38 = arith.constant 0 : index
    %c0_39 = arith.constant 0 : index
    %c0_40 = arith.constant 0 : index
    %29 = vector.load %arg3[%c0_38, %c0_39, %c0_40] : memref<1x8x384xbf16, #tpu.memory_space<vmem>>, vector<1x8x384xbf16>
    %30 = vector.shape_cast %29 : vector<1x8x384xbf16> to vector<8x384xbf16>
    %c0_41 = arith.constant 0 : index
    %c0_42 = arith.constant 0 : index
    %31 = vector.load %arg7[%c0_41, %c0_42] : memref<384x384xbf16, #tpu.memory_space<vmem>>, vector<384x384xbf16>
    %cst_43 = arith.constant dense<0.000000e+00> : vector<8x384xf32>
    %32 = tpu.matmul %30, %31, %cst_43 {dimension_numbers = #tpu.dot_dimension_numbers<[1], [0], [0], [1], [0, 0, 1, 1], [], []>} : vector<8x384xbf16>, vector<384x384xbf16>, vector<8x384xf32> -> vector<8x384xf32>
    %c0_44 = arith.constant 0 : index
    %c0_45 = arith.constant 0 : index
    %c0_46 = arith.constant 0 : index
    %33 = vector.load %arg4[%c0_44, %c0_45, %c0_46] : memref<1x8x1xf32, #tpu.memory_space<vmem>>, vector<1x8x1xf32>
    %34 = vector.shape_cast %33 : vector<1x8x1xf32> to vector<8x1xf32>
    %35 = vector.broadcast %34 : vector<8x1xf32> to vector<8x384xf32>
    %36 = arith.mulf %32, %35 : vector<8x384xf32>
    %c0_47 = arith.constant 0 : index
    %c0_48 = arith.constant 0 : index
    %c0_49 = arith.constant 0 : index
    %37 = vector.load %arg5[%c0_47, %c0_48, %c0_49] : memref<1x8x1xf32, #tpu.memory_space<vmem>>, vector<1x8x1xf32>
    %38 = vector.shape_cast %37 : vector<1x8x1xf32> to vector<8x1xf32>
    %39 = vector.broadcast %38 : vector<8x1xf32> to vector<8x384xf32>
    %40 = arith.addf %36, %39 : vector<8x384xf32>
    %cst_50 = arith.constant 0.000000e+00 : f32
    %41 = vector.broadcast %cst_50 : f32 to vector<8x384xf32>
    %42 = arith.maximumf %40, %41 : vector<8x384xf32>
    %c0_51 = arith.constant 0 : index
    %c0_52 = arith.constant 0 : index
    %c0_53 = arith.constant 0 : index
    %c0_54 = arith.constant 0 : index
    %43 = vector.load %arg6[%c0_51, %c0_52, %c0_53, %c0_54] : memref<1x1x8x384xf32, #tpu.memory_space<vmem>>, vector<1x1x8x384xf32>
    %44 = vector.shape_cast %43 : vector<1x1x8x384xf32> to vector<8x384xf32>
    %45 = vector.shape_cast %42 : vector<8x384xf32> to vector<1x1x8x384xf32>
    tpu.vector_store %arg6[%c0_51, %c0_52, %c0_53, %c0_54], %45 {strides = array<i32>} : memref<1x1x8x384xf32, #tpu.memory_space<vmem>>, vector<1x1x8x384xf32>,
    return
  }
  func.func @transform_0(%arg0: i32, %arg1: i32) -> (i32, i32, i32, i32) {
    %c0_i32 = arith.constant 0 : i32
    %c0_i32_0 = arith.constant 0 : i32
    %c0_i32_1 = arith.constant 0 : i32
    return %arg0, %arg1, %c0_i32, %c0_i32_0 : i32, i32, i32, i32
  }
  func.func @transform_1(%arg0: i32, %arg1: i32) -> (i32, i32, i32) {
    %c0_i32 = arith.constant 0 : i32
    %c0_i32_0 = arith.constant 0 : i32
    %c0_i32_1 = arith.constant 0 : i32
    return %arg0, %c0_i32, %c0_i32_0 : i32, i32, i32
  }
  func.func @transform_2(%arg0: i32, %arg1: i32) -> (i32, i32, i32) {
    %c0_i32 = arith.constant 0 : i32
    %c0_i32_0 = arith.constant 0 : i32
    %c0_i32_1 = arith.constant 0 : i32
    return %arg0, %c0_i32, %c0_i32_0 : i32, i32, i32
  }
  func.func @transform_3(%arg0: i32, %arg1: i32) -> (i32, i32, i32) {
    %c0_i32 = arith.constant 0 : i32
    %c0_i32_0 = arith.constant 0 : i32
    %c0_i32_1 = arith.constant 0 : i32
    return %arg0, %c0_i32, %c0_i32_0 : i32, i32, i32
  }
  func.func @transform_4(%arg0: i32, %arg1: i32) -> (i32, i32, i32, i32) {
    %c0_i32 = arith.constant 0 : i32
    %c0_i32_0 = arith.constant 0 : i32
    %c0_i32_1 = arith.constant 0 : i32
    return %arg1, %arg0, %c0_i32, %c0_i32_0 : i32, i32, i32, i32
  }
}

</mosaic_0001>

<llo_original>
// kernel: offset_convolution_forward.2
$region0: #{offset_convolution_forward.2}
  #allocation0 [shape = 'u32[]', space=smem, size = 0x4, offset = 0x4, fixed_abs, tag = 'smem constant byte address 0x4 - core index']
  #allocation1 [shape = 'u32[144,128]{1,0:T(1,128)}', space=vmem, size = 0x12000, scoped, tag = 'internal scratch']
  #allocation2 [shape = 'bf16[256,384]{1,0:T(16,128)(2,1)}', space=vmem, size = 0x30000, scoped, tag = 'scratch operand']
  %s0 = inlined_call_operand.vmem [shape: bf16[4,2,4,640], index: 0, kind: input, shape index: {}]
  %s1 = inlined_call_operand.vmem [shape: bf16[4,8,256], index: 1, kind: input, shape index: {}]
  %s2 = inlined_call_operand.vmem [shape: f32[4,8,1], index: 2, kind: input, shape index: {}]
  %s3 = inlined_call_operand.vmem [shape: f32[4,8,1], index: 3, kind: input, shape index: {}]
  %s4 = inlined_call_operand.vmem [shape: bf16[2,4,8,384], index: 4, kind: output, shape index: {}]
  %s5 = sld [smem:[#allocation0]]
  $region49: #{offset_convolution_forward.2} parent=0
    _
  %s7 = ssub.s32 1, %s5
  %s8 = scalar_select 0, %s7, %s5
  loop: start=0, step=1, limit=10
  $region2: #{offset_convolution_forward.2} parent=0 // loop_pre_header
    _
  $region3: #{offset_convolution_forward.2} parent=0 // loop_header
    %s10 = sphi 0, %s14
    %p11 = scmp.ge.s32.totalorder %s10, 10
    %s17 = sphi 0, %s29
    %s18 = sphi 0, %s25
    %s19 = sphi 0, %s17
    %s20 = sphi 0, %s18
    %s21 = sphi 0, %s19
    %s22 = sphi 0, %s20
    %s34 = sphi 0, %s36
    %s37 = sphi 0, %s34
    %s38 = sphi 0, %s37
    %s54 = sphi 0, %s38
    %s60 = sphi 0, %s62
    %s63 = sphi 0, %s60
    %s64 = sphi 0, %s63
    %s80 = sphi 0, %s64
    %s86 = sphi 0, %s88
    %s89 = sphi 0, %s86
    %s90 = sphi 0, %s89
    %s106 = sphi 0, %s90
    %s112 = sphi 0, %s114
    %s115 = sphi 0, %s112
    %s116 = sphi 0, %s115
    %s132 = sphi 0, %s116
    %s140 = sphi 0, %s142
    %s143 = sphi 0, %s140
    %s144 = sphi 0, %s143
    %s160 = sphi 0, %s144
  $region4: #{offset_convolution_forward.2} parent=0 // loop_header_branch
    %13 = sbr.rel (%p11) target = $region8
  $region5: #{offset_convolution_forward.2} parent=0 // loop_body
    %s15 = ssub.s32 %s10, 1
    %s16 = ssub.s32 %s10, 2
    %s23 = sadd.s32 1, %s18
    %p24 = scmp.ge.s32.totalorder %s23, 2
    %s25 = scalar_select %p24, 0, %s23
    %s26 = sadd.s32 1, %s17
    %s27 = scalar_select %p24, %s26, %s17
    %p28 = scmp.ge.s32.totalorder %s27, 4
    %s29 = scalar_select %p28, 0, %s27
    %s30 = ssub.s32 %s17, %s29
    %s31 = ssub.s32 %s18, %s25
    %s32 = sor.u32 %s30, %s31
    %p33 = scmp.eq.s32.totalorder %s32, 0
    %s35 = sadd.s32 %s34, 1
    %s36 = scalar_select %p33, %s34, %s35
    %p39 = pneg %p33
    %p40 = scmp.eq.s32.totalorder %s10, 7
    %p41 = por %p39, %p40
    %p42 = scmp.ne.s32.totalorder %s34, %s37
    %p43 = scmp.eq.s32.totalorder %s10, 0
    %p44 = por %p42, %p43
    %p45 = scmp.ne.s32.totalorder %s34, %s37
    %p46 = scmp.eq.s32.totalorder %s15, 7
    %p47 = por %p45, %p46
    %p48 = scmp.ne.s32.totalorder %s37, %s38
    %p49 = scmp.eq.s32.totalorder %s15, 0
    %p50 = por %p48, %p49
    %p51 = scmp.ne.s32.totalorder %s37, %s38
    %p52 = scmp.eq.s32.totalorder %s16, 7
    %p53 = por %p51, %p52
    %p55 = scmp.ne.s32.totalorder %s38, %s54
    %p56 = scmp.eq.s32.totalorder %s16, 0
    %p57 = por %p55, %p56
    %s58 = ssub.s32 %s17, %s29
    %p59 = scmp.eq.s32.totalorder %s58, 0
    %s61 = sadd.s32 %s60, 1
    %s62 = scalar_select %p59, %s60, %s61
    %p65 = pneg %p59
    %p66 = scmp.eq.s32.totalorder %s10, 7
    %p67 = por %p65, %p66
    %p68 = scmp.ne.s32.totalorder %s60, %s63
    %p69 = scmp.eq.s32.totalorder %s10, 0
    %p70 = por %p68, %p69
    %p71 = scmp.ne.s32.totalorder %s60, %s63
    %p72 = scmp.eq.s32.totalorder %s15, 7
    %p73 = por %p71, %p72
    %p74 = scmp.ne.s32.totalorder %s63, %s64
    %p75 = scmp.eq.s32.totalorder %s15, 0
    %p76 = por %p74, %p75
    %p77 = scmp.ne.s32.totalorder %s63, %s64
    %p78 = scmp.eq.s32.totalorder %s16, 7
    %p79 = por %p77, %p78
    %p81 = scmp.ne.s32.totalorder %s64, %s80
    %p82 = scmp.eq.s32.totalorder %s16, 0
    %p83 = por %p81, %p82
    %s84 = ssub.s32 %s17, %s29
    %p85 = scmp.eq.s32.totalorder %s84, 0
    %s87 = sadd.s32 %s86, 1
    %s88 = scalar_select %p85, %s86, %s87
    %p91 = pneg %p85
    %p92 = scmp.eq.s32.totalorder %s10, 7
    %p93 = por %p91, %p92
    %p94 = scmp.ne.s32.totalorder %s86, %s89
    %p95 = scmp.eq.s32.totalorder %s10, 0
    %p96 = por %p94, %p95
    %p97 = scmp.ne.s32.totalorder %s86, %s89
    %p98 = scmp.eq.s32.totalorder %s15, 7
    %p99 = por %p97, %p98
    %p100 = scmp.ne.s32.totalorder %s89, %s90
    %p101 = scmp.eq.s32.totalorder %s15, 0
    %p102 = por %p100, %p101
    %p103 = scmp.ne.s32.totalorder %s89, %s90
    %p104 = scmp.eq.s32.totalorder %s16, 7
    %p105 = por %p103, %p104
    %p107 = scmp.ne.s32.totalorder %s90, %s106
    %p108 = scmp.eq.s32.totalorder %s16, 0
    %p109 = por %p107, %p108
    %s110 = ssub.s32 %s17, %s29
    %p111 = scmp.eq.s32.totalorder %s110, 0
    %s113 = sadd.s32 %s112, 1
    %s114 = scalar_select %p111, %s112, %s113
    %p117 = pneg %p111
    %p118 = scmp.eq.s32.totalorder %s10, 7
    %p119 = por %p117, %p118
    %p120 = scmp.ne.s32.totalorder %s112, %s115
    %p121 = scmp.eq.s32.totalorder %s10, 0
    %p122 = por %p120, %p121
    %p123 = scmp.ne.s32.totalorder %s112, %s115
    %p124 = scmp.eq.s32.totalorder %s15, 7
    %p125 = por %p123, %p124
    %p126 = scmp.ne.s32.totalorder %s115, %s116
    %p127 = scmp.eq.s32.totalorder %s15, 0
    %p128 = por %p126, %p127
    %p129 = scmp.ne.s32.totalorder %s115, %s116
    %p130 = scmp.eq.s32.totalorder %s16, 7
    %p131 = por %p129, %p130
    %p133 = scmp.ne.s32.totalorder %s116, %s132
    %p134 = scmp.eq.s32.totalorder %s16, 0
    %p135 = por %p133, %p134
    %s136 = ssub.s32 %s18, %s25
    %s137 = ssub.s32 %s17, %s29
    %s138 = sor.u32 %s136, %s137
    %p139 = scmp.eq.s32.totalorder %s138, 0
    %s141 = sadd.s32 %s140, 1
    %s142 = scalar_select %p139, %s140, %s141
    %p145 = pneg %p139
    %p146 = scmp.eq.s32.totalorder %s10, 7
    %p147 = por %p145, %p146
    %p148 = scmp.ne.s32.totalorder %s140, %s143
    %p149 = scmp.eq.s32.totalorder %s10, 0
    %p150 = por %p148, %p149
    %p151 = scmp.ne.s32.totalorder %s140, %s143
    %p152 = scmp.eq.s32.totalorder %s15, 7
    %p153 = por %p151, %p152
    %p154 = scmp.ne.s32.totalorder %s143, %s144
    %p155 = scmp.eq.s32.totalorder %s15, 0
    %p156 = por %p154, %p155
    %p157 = scmp.ne.s32.totalorder %s143, %s144
    %p158 = scmp.eq.s32.totalorder %s16, 7
    %p159 = por %p157, %p158
    %p161 = scmp.ne.s32.totalorder %s144, %s160
    %p162 = scmp.eq.s32.totalorder %s16, 0
    %p163 = por %p161, %p162
    %p164 = scmp.le.s32.totalorder 1, %s10
    %p165 = scmp.lt.s32.totalorder %s10, 9
    %p166 = pnand %p164, %p165
    %p167 = pneg %p166
    // Predicated region
    $region9: #{offset_convolution_forward.2} parent=5 // pred_check
      _
    $region10: #{offset_convolution_forward.2} parent=5 // pred_check_branch
      %169 = sbr.rel (%p166) target = $region12
    $region11: #{offset_convolution_forward.2} parent=5 // pred_region
      %s170 = ssub.s32 %s10, 1
    $region12: #{offset_convolution_forward.2} parent=5 // pred_fallthru
      _
    %p171 = scmp.lt.s32.totalorder %s10, 8
    // Predicated region
    $region13: #{offset_convolution_forward.2} parent=5 // pred_check
      %p172 = pneg %p171
    $region14: #{offset_convolution_forward.2} parent=5 // pred_check_branch
      %174 = sbr.rel (%p172) target = $region16
    $region15: #{offset_convolution_forward.2} parent=5 // pred_region
      // Predicated region
      $region17: #{offset_convolution_forward.2} parent=15 // pred_check
        %p175 = pneg %p44
      $region18: #{offset_convolution_forward.2} parent=15 // pred_check_branch
        %177 = sbr.rel (%p175) target = $region20
      $region19: #{offset_convolution_forward.2} parent=15 // pred_region
        %p178 = scmp.lt.s32.totalorder %s17, 3
        %s179 = scalar_select %p178, %s17, 3
        %p180 = scmp.lt.s32.totalorder %s18, 1
        %s181 = scalar_select %p180, %s18, 1
        %s182 = smul.addr %s181, 5
        %s183 = smul.addr %s179, 10
        %s184 = sadd.s32 %s182, %s183
        %s185 = smul.addr %s184, 2
        %s186 = scalar_lea.vmem %s0, %s185
      $region20: #{offset_convolution_forward.2} parent=15 // pred_fallthru
        _
      // Predicated region
      $region21: #{offset_convolution_forward.2} parent=15 // pred_check
        %p187 = pneg %p70
      $region22: #{offset_convolution_forward.2} parent=15 // pred_check_branch
        %189 = sbr.rel (%p187) target = $region24
      $region23: #{offset_convolution_forward.2} parent=15 // pred_region
        %p190 = scmp.lt.s32.totalorder %s17, 3
        %s191 = scalar_select %p190, %s17, 3
        %s192 = smul.addr %s191, 2
        %s193 = smul.addr %s192, 4
        %s194 = scalar_lea.vmem %s1, %s193
      $region24: #{offset_convolution_forward.2} parent=15 // pred_fallthru
        _
      // Predicated region
      $region25: #{offset_convolution_forward.2} parent=15 // pred_check
        %p195 = pneg %p96
      $region26: #{offset_convolution_forward.2} parent=15 // pred_check_branch
        %197 = sbr.rel (%p195) target = $region28
      $region27: #{offset_convolution_forward.2} parent=15 // pred_region
        %p198 = scmp.lt.s32.totalorder %s17, 3
        %s199 = scalar_select %p198, %s17, 3
        %s200 = smul.addr %s199, 8
        %s201 = scalar_lea.vmem %s2, %s200
      $region28: #{offset_convolution_forward.2} parent=15 // pred_fallthru
        _
      // Predicated region
      $region29: #{offset_convolution_forward.2} parent=15 // pred_check
        %p202 = pneg %p122
      $region30: #{offset_convolution_forward.2} parent=15 // pred_check_branch
        %204 = sbr.rel (%p202) target = $region32
      $region31: #{offset_convolution_forward.2} parent=15 // pred_region
        %p205 = scmp.lt.s32.totalorder %s17, 3
        %s206 = scalar_select %p205, %s17, 3
        %s207 = smul.addr %s206, 8
        %s208 = scalar_lea.vmem %s3, %s207
      $region32: #{offset_convolution_forward.2} parent=15 // pred_fallthru
        _
    $region16: #{offset_convolution_forward.2} parent=5 // pred_fallthru
      _
    %p209 = scmp.le.s32.totalorder 1, %s10
    %p210 = scmp.lt.s32.totalorder %s10, 9
    %p211 = pnand %p209, %p210
    %p212 = pneg %p211
    // Predicated region
    $region33: #{offset_convolution_forward.2} parent=5 // pred_check
      _
    $region34: #{offset_convolution_forward.2} parent=5 // pred_check_branch
      %214 = sbr.rel (%p211) target = $region36
    $region35: #{offset_convolution_forward.2} parent=5 // pred_region
      %s215 = ssub.s32 %s10, 1
      %p216 = scmp.lt.s32.totalorder %s19, 3
      %s217 = scalar_select %p216, %s19, 3
      %p218 = scmp.lt.s32.totalorder %s20, 1
      %s219 = scalar_select %p218, %s20, 1
      %s220 = smul.addr %s219, 5
      %s221 = smul.addr %s217, 10
      %s222 = sadd.s32 %s220, %s221
      %s223 = smul.addr %s222, 2
      %s224 = scalar_lea.vmem %s0, %s223
      %p225 = pneg %p50
      %p226 = pneg %p47
      %p227 = scmp.lt.s32.totalorder %s19, 3
      %s228 = scalar_select %p227, %s19, 3
      %s229 = smul.addr %s228, 2
      %s230 = smul.addr %s229, 4
      %s231 = scalar_lea.vmem %s1, %s230
      %p232 = pneg %p76
      %p233 = pneg %p73
      %p234 = scmp.lt.s32.totalorder %s19, 3
      %s235 = scalar_select %p234, %s19, 3
      %s236 = smul.addr %s235, 8
      %s237 = scalar_lea.vmem %s2, %s236
      %p238 = pneg %p102
      %p239 = pneg %p99
      %p240 = scmp.lt.s32.totalorder %s19, 3
      %s241 = scalar_select %p240, %s19, 3
      %s242 = smul.addr %s241, 8
      %s243 = scalar_lea.vmem %s3, %s242
      %p244 = pneg %p128
      %p245 = pneg %p125
      %p246 = pneg %p156
      %p247 = pneg %p153
      %p248 = scmp.lt.s32.totalorder %s20, 1
      %s249 = scalar_select %p248, %s20, 1
      %p250 = scmp.lt.s32.totalorder %s19, 3
      %s251 = scalar_select %p250, %s19, 3
      %s252 = smul.addr %s251, 3
      %s253 = smul.addr %s249, 12
      %s254 = sadd.s32 %s252, %s253
      %s255 = smul.addr %s254, 4
      %s256 = scalar_lea.vmem %s4, %s255
      %p257 = scmp.lt.s32.totalorder %s19, 3
      %s258 = scalar_select %p257, %s19, 3
      %p259 = scmp.lt.s32.totalorder %s20, 1
      %s260 = scalar_select %p259, %s20, 1
      %s261 = smul.addr %s260, 5
      %s262 = smul.addr %s258, 10
      %s263 = sadd.s32 %s261, %s262
      %s264 = smul.addr %s263, 2
      %s265 = scalar_lea.vmem %s0, %s264
      %p266 = scmp.lt.s32.totalorder %s19, 3
      %s267 = scalar_select %p266, %s19, 3
      %s268 = smul.addr %s267, 2
      %s269 = smul.addr %s268, 4
      %s270 = scalar_lea.vmem %s1, %s269
      %p271 = scmp.lt.s32.totalorder %s19, 3
      %s272 = scalar_select %p271, %s19, 3
      %s273 = smul.addr %s272, 8
      %s274 = scalar_lea.vmem %s2, %s273
      %p275 = scmp.lt.s32.totalorder %s19, 3
      %s276 = scalar_select %p275, %s19, 3
      %s277 = smul.addr %s276, 8
      %s278 = scalar_lea.vmem %s3, %s277
      %p279 = scmp.lt.s32.totalorder %s20, 1
      %s280 = scalar_select %p279, %s20, 1
      %p281 = scmp.lt.s32.totalorder %s19, 3
      %s282 = scalar_select %p281, %s19, 3
      %s283 = smul.addr %s282, 3
      %s284 = smul.addr %s280, 12
      %s285 = sadd.s32 %s283, %s284
      %s286 = smul.addr %s285, 4
      %s287 = scalar_lea.vmem %s4, %s286
      %v289 = vld [vmem:[%s265] sm:$0x3f]
      %v291 = vcombine.high %v289, %v289
      %v293 = vunpack.c.l.s4 1983009808
      %v294 = vunpack.c.0.s8 %v293
      %v295 = vlaneseq
      %v296 = vshrl.u32 %v295, 7
      %v297 = vsub.s32 %v294, %v296
      %v298 = vrot.slane %v289, %v297
      %v300 = vunpack.c.l.s4 1983009808
      %v301 = vunpack.c.0.s8 %v300
      %v302 = vlaneseq
      %v303 = vshrl.u32 %v302, 7
      %v304 = vsub.s32 %v301, %v303
      %v305 = vrot.slane %v291, %v304
      %v306 = vcombine.high %v298, %v298
      %310 = vst [vmem:[#allocation2] sm:$0x3] %v298
      %311 = vst [vmem:[#allocation2 + $0x8] sm:$0x3] %v306
      %312 = vst [vmem:[#allocation2 + $0x10] sm:$0x3] %v305
      %v313 = vld [vmem:[%s265] sm:$0xff]
      %v315 = vcombine.low %v313, %v313
      %v317 = vunpack.c.l.s4 1983009808
      %v318 = vunpack.c.0.s8 %v317
      %v319 = vlaneseq
      %v320 = vshrl.u32 %v319, 7
      %v321 = vsub.s32 %v318, %v320
      %v322 = vrot.slane %v315, %v321
      %v324 = vunpack.c.l.s4 1983009808
      %v325 = vunpack.c.0.s8 %v324
      %v326 = vlaneseq
      %v327 = vshrl.u32 %v326, 7
      %v328 = vsub.s32 %v325, %v327
      %v329 = vrot.slane %v313, %v328
      %v330 = vcombine.high %v322, %v322
      %v331 = vcombine.high %v329, %v329
      %332 = vrot.lane.b32.xlu0 %v322, 127
      %v333 = vpop.permute.xlu0 %332
      %334 = vrot.lane.b32.xlu0 %v330, 127
      %v335 = vpop.permute.xlu0 %334
      %336 = vrot.lane.b32.xlu0 %v329, 127
      %v337 = vpop.permute.xlu0 %336
      %338 = vrot.lane.b32.xlu0 %v331, 127
      %v339 = vpop.permute.xlu0 %338
      %vm340 = vcmask 1039360
      %v341 = vsel %vm340, %v333, %v335
      %v342 = vsel %vm340, %v335, %v337
      %v343 = vsel %vm340, %v337, %v339
      %347 = vst [vmem:[#allocation2] sm:$0xc] %v341
      %348 = vst [vmem:[#allocation2 + $0x8] sm:$0xc] %v342
      %349 = vst [vmem:[#allocation2 + $0x10] sm:$0xc] %v343
      %v350 = vld [vmem:[%s265] sm:$0xff]
      %v352 = vcombine.high %v350, %v350
      %v354 = vunpack.c.l.s4 1983009808
      %v355 = vunpack.c.0.s8 %v354
      %v356 = vlaneseq
      %v357 = vshrl.u32 %v356, 7
      %v358 = vsub.s32 %v355, %v357
      %v359 = vrot.slane %v350, %v358
      %v361 = vunpack.c.l.s4 1983009808
      %v362 = vunpack.c.0.s8 %v361
      %v363 = vlaneseq
      %v364 = vshrl.u32 %v363, 7
      %v365 = vsub.s32 %v362, %v364
      %v366 = vrot.slane %v352, %v365
      %v367 = vcombine.low %v359, %v359
      %v368 = vcombine.low %v366, %v366
      %369 = vrot.lane.b32.xlu0 %v367, 126
      %v370 = vpop.permute.xlu0 %369
      %371 = vrot.lane.b32.xlu0 %v359, 126
      %v372 = vpop.permute.xlu0 %371
      %373 = vrot.lane.b32.xlu0 %v368, 126
      %v374 = vpop.permute.xlu0 %373
      %375 = vrot.lane.b32.xlu0 %v366, 126
      %v376 = vpop.permute.xlu0 %375
      %vm377 = vcmask 1031168
      %v378 = vsel %vm377, %v370, %v372
      %v379 = vsel %vm377, %v372, %v374
      %v380 = vsel %vm377, %v374, %v376
      %384 = vst [vmem:[#allocation2] sm:$0x30] %v378
      %385 = vst [vmem:[#allocation2 + $0x8] sm:$0x30] %v379
      %386 = vst [vmem:[#allocation2 + $0x10] sm:$0x30] %v380
      %v387 = vld [vmem:[%s265] sm:$0xff]
      %v389 = vcombine.low %v387, %v387
      %v391 = vunpack.c.l.s4 1983009808
      %v392 = vunpack.c.0.s8 %v391
      %v393 = vlaneseq
      %v394 = vshrl.u32 %v393, 7
      %v395 = vsub.s32 %v392, %v394
      %v396 = vrot.slane %v389, %v395
      %v398 = vunpack.c.l.s4 1983009808
      %v399 = vunpack.c.0.s8 %v398
      %v400 = vlaneseq
      %v401 = vshrl.u32 %v400, 7
      %v402 = vsub.s32 %v399, %v401
      %v403 = vrot.slane %v387, %v402
      %v404 = vcombine.low %v396, %v396
      %v405 = vcombine.low %v403, %v403
      %406 = vrot.lane.b32.xlu0 %v404, 125
      %v407 = vpop.permute.xlu0 %406
      %408 = vrot.lane.b32.xlu0 %v396, 125
      %v409 = vpop.permute.xlu0 %408
      %410 = vrot.lane.b32.xlu0 %v405, 125
      %v411 = vpop.permute.xlu0 %410
      %412 = vrot.lane.b32.xlu0 %v403, 125
      %v413 = vpop.permute.xlu0 %412
      %vm414 = vcmask 1022976
      %v415 = vsel %vm414, %v407, %v409
      %v416 = vsel %vm414, %v409, %v411
      %v417 = vsel %vm414, %v411, %v413
      %421 = vst [vmem:[#allocation2] sm:$0xc0] %v415
      %422 = vst [vmem:[#allocation2 + $0x8] sm:$0xc0] %v416
      %423 = vst [vmem:[#allocation2 + $0x10] sm:$0xc0] %v417
      %v424 = vld [vmem:[%s265] sm:$0xff]
      %v426 = vcombine.high %v424, %v424
      %v428 = vunpack.c.l.s4 1983009808
      %v429 = vunpack.c.0.s8 %v428
      %v430 = vlaneseq
      %v431 = vshrl.u32 %v430, 7
      %v432 = vsub.s32 %v429, %v431
      %v433 = vrot.slane %v424, %v432
      %v435 = vunpack.c.l.s4 1983009808
      %v436 = vunpack.c.0.s8 %v435
      %v437 = vlaneseq
      %v438 = vshrl.u32 %v437, 7
      %v439 = vsub.s32 %v436, %v438
      %v440 = vrot.slane %v426, %v439
      %v441 = vcombine.high %v433, %v433
      %v442 = vcombine.high %v440, %v440
      %443 = vrot.lane.b32.xlu0 %v433, 124
      %v444 = vpop.permute.xlu0 %443
      %445 = vrot.lane.b32.xlu0 %v441, 124
      %v446 = vpop.permute.xlu0 %445
      %447 = vrot.lane.b32.xlu0 %v440, 124
      %v448 = vpop.permute.xlu0 %447
      %449 = vrot.lane.b32.xlu0 %v442, 124
      %v450 = vpop.permute.xlu0 %449
      %vm451 = vcmask 1014784
      %v452 = vsel %vm451, %v444, %v446
      %v453 = vsel %vm451, %v446, %v448
      %v454 = vsel %vm451, %v448, %v450
      %458 = vst [vmem:[#allocation2 + $0x18] sm:$0x3] %v452
      %459 = vst [vmem:[#allocation2 + $0x20] sm:$0x3] %v453
      %460 = vst [vmem:[#allocation2 + $0x28] sm:$0x3] %v454
      %v461 = vld [vmem:[%s265] sm:$0xff]
      %v463 = vcombine.low %v461, %v461
      %v465 = vunpack.c.l.s4 1983009808
      %v466 = vunpack.c.0.s8 %v465
      %v467 = vlaneseq
      %v468 = vshrl.u32 %v467, 7
      %v469 = vsub.s32 %v466, %v468
      %v470 = vrot.slane %v463, %v469
      %v472 = vunpack.c.l.s4 1983009808
      %v473 = vunpack.c.0.s8 %v472
      %v474 = vlaneseq
      %v475 = vshrl.u32 %v474, 7
      %v476 = vsub.s32 %v473, %v475
      %v477 = vrot.slane %v461, %v476
      %v478 = vcombine.high %v470, %v470
      %v479 = vcombine.high %v477, %v477
      %480 = vrot.lane.b32.xlu0 %v470, 123
      %v481 = vpop.permute.xlu0 %480
      %482 = vrot.lane.b32.xlu0 %v478, 123
      %v483 = vpop.permute.xlu0 %482
      %484 = vrot.lane.b32.xlu0 %v477, 123
      %v485 = vpop.permute.xlu0 %484
      %486 = vrot.lane.b32.xlu0 %v479, 123
      %v487 = vpop.permute.xlu0 %486
      %vm488 = vcmask 1006592
      %v489 = vsel %vm488, %v481, %v483
      %v490 = vsel %vm488, %v483, %v485
      %v491 = vsel %vm488, %v485, %v487
      %495 = vst [vmem:[#allocation2 + $0x18] sm:$0xc] %v489
      %496 = vst [vmem:[#allocation2 + $0x20] sm:$0xc] %v490
      %497 = vst [vmem:[#allocation2 + $0x28] sm:$0xc] %v491
      %v498 = vld [vmem:[%s265] sm:$0xff]
      %v500 = vcombine.high %v498, %v498
      %v502 = vunpack.c.l.s4 1983009808
      %v503 = vunpack.c.0.s8 %v502
      %v504 = vlaneseq
      %v505 = vshrl.u32 %v504, 7
      %v506 = vsub.s32 %v503, %v505
      %v507 = vrot.slane %v498, %v506
      %v509 = vunpack.c.l.s4 1983009808
      %v510 = vunpack.c.0.s8 %v509
      %v511 = vlaneseq
      %v512 = vshrl.u32 %v511, 7
      %v513 = vsub.s32 %v510, %v512
      %v514 = vrot.slane %v500, %v513
      %v515 = vcombine.low %v507, %v507
      %v516 = vcombine.low %v514, %v514
      %517 = vrot.lane.b32.xlu0 %v515, 122
      %v518 = vpop.permute.xlu0 %517
      %519 = vrot.lane.b32.xlu0 %v507, 122
      %v520 = vpop.permute.xlu0 %519
      %521 = vrot.lane.b32.xlu0 %v516, 122
      %v522 = vpop.permute.xlu0 %521
      %523 = vrot.lane.b32.xlu0 %v514, 122
      %v524 = vpop.permute.xlu0 %523
      %vm525 = vcmask 998400
      %v526 = vsel %vm525, %v518, %v520
      %v527 = vsel %vm525, %v520, %v522
      %v528 = vsel %vm525, %v522, %v524
      %532 = vst [vmem:[#allocation2 + $0x18] sm:$0x30] %v526
      %533 = vst [vmem:[#allocation2 + $0x20] sm:$0x30] %v527
      %534 = vst [vmem:[#allocation2 + $0x28] sm:$0x30] %v528
      %v535 = vld [vmem:[%s265] sm:$0xff]
      %v537 = vcombine.low %v535, %v535
      %v539 = vunpack.c.l.s4 1983009808
      %v540 = vunpack.c.0.s8 %v539
      %v541 = vlaneseq
      %v542 = vshrl.u32 %v541, 7
      %v543 = vsub.s32 %v540, %v542
      %v544 = vrot.slane %v537, %v543
      %v546 = vunpack.c.l.s4 1983009808
      %v547 = vunpack.c.0.s8 %v546
      %v548 = vlaneseq
      %v549 = vshrl.u32 %v548, 7
      %v550 = vsub.s32 %v547, %v549
      %v551 = vrot.slane %v535, %v550
      %v552 = vcombine.low %v544, %v544
      %v553 = vcombine.low %v551, %v551
      %554 = vrot.lane.b32.xlu0 %v552, 106
      %v555 = vpop.permute.xlu0 %554
      %556 = vrot.lane.b32.xlu0 %v544, 106
      %v557 = vpop.permute.xlu0 %556
      %558 = vrot.lane.b32.xlu0 %v553, 106
      %v559 = vpop.permute.xlu0 %558
      %560 = vrot.lane.b32.xlu0 %v551, 106
      %v561 = vpop.permute.xlu0 %560
      %vm562 = vcmask 867328
      %v563 = vsel %vm562, %v555, %v557
      %v564 = vsel %vm562, %v557, %v559
      %v565 = vsel %vm562, %v559, %v561
      %569 = vst [vmem:[#allocation2 + $0x18] sm:$0xc0] %v563
      %570 = vst [vmem:[#allocation2 + $0x20] sm:$0xc0] %v564
      %571 = vst [vmem:[#allocation2 + $0x28] sm:$0xc0] %v565
      %v572 = vld [vmem:[%s265] sm:$0xff]
      %v574 = vcombine.high %v572, %v572
      %v576 = vunpack.c.l.s4 1983009808
      %v577 = vunpack.c.0.s8 %v576
      %v578 = vlaneseq
      %v579 = vshrl.u32 %v578, 7
      %v580 = vsub.s32 %v577, %v579
      %v581 = vrot.slane %v572, %v580
      %v583 = vunpack.c.l.s4 1983009808
      %v584 = vunpack.c.0.s8 %v583
      %v585 = vlaneseq
      %v586 = vshrl.u32 %v585, 7
      %v587 = vsub.s32 %v584, %v586
      %v588 = vrot.slane %v574, %v587
      %v589 = vcombine.high %v581, %v581
      %v590 = vcombine.high %v588, %v588
      %591 = vrot.lane.b32.xlu0 %v581, 105
      %v592 = vpop.permute.xlu0 %591
      %593 = vrot.lane.b32.xlu0 %v589, 105
      %v594 = vpop.permute.xlu0 %593
      %595 = vrot.lane.b32.xlu0 %v588, 105
      %v596 = vpop.permute.xlu0 %595
      %597 = vrot.lane.b32.xlu0 %v590, 105
      %v598 = vpop.permute.xlu0 %597
      %vm599 = vcmask 859136
      %v600 = vsel %vm599, %v592, %v594
      %v601 = vsel %vm599, %v594, %v596
      %v602 = vsel %vm599, %v596, %v598
      %606 = vst [vmem:[#allocation2 + $0x30] sm:$0x3] %v600
      %607 = vst [vmem:[#allocation2 + $0x38] sm:$0x3] %v601
      %608 = vst [vmem:[#allocation2 + $0x40] sm:$0x3] %v602
      %v609 = vld [vmem:[%s265] sm:$0xff]
      %v611 = vcombine.low %v609, %v609
      %v613 = vunpack.c.l.s4 1983009808
      %v614 = vunpack.c.0.s8 %v613
      %v615 = vlaneseq
      %v616 = vshrl.u32 %v615, 7
      %v617 = vsub.s32 %v614, %v616
      %v618 = vrot.slane %v611, %v617
      %v620 = vunpack.c.l.s4 1983009808
      %v621 = vunpack.c.0.s8 %v620
      %v622 = vlaneseq
      %v623 = vshrl.u32 %v622, 7
      %v624 = vsub.s32 %v621, %v623
      %v625 = vrot.slane %v609, %v624
      %v626 = vcombine.high %v618, %v618
      %v627 = vcombine.high %v625, %v625
      %628 = vrot.lane.b32.xlu0 %v618, 104
      %v629 = vpop.permute.xlu0 %628
      %630 = vrot.lane.b32.xlu0 %v626, 104
      %v631 = vpop.permute.xlu0 %630
      %632 = vrot.lane.b32.xlu0 %v625, 104
      %v633 = vpop.permute.xlu0 %632
      %634 = vrot.lane.b32.xlu0 %v627, 104
      %v635 = vpop.permute.xlu0 %634
      %vm636 = vcmask 850944
      %v637 = vsel %vm636, %v629, %v631
      %v638 = vsel %vm636, %v631, %v633
      %v639 = vsel %vm636, %v633, %v635
      %643 = vst [vmem:[#allocation2 + $0x30] sm:$0xc] %v637
      %644 = vst [vmem:[#allocation2 + $0x38] sm:$0xc] %v638
      %645 = vst [vmem:[#allocation2 + $0x40] sm:$0xc] %v639
      %v646 = vld [vmem:[%s265] sm:$0xff]
      %v648 = vcombine.high %v646, %v646
      %v650 = vunpack.c.l.s4 1983009808
      %v651 = vunpack.c.0.s8 %v650
      %v652 = vlaneseq
      %v653 = vshrl.u32 %v652, 7
      %v654 = vsub.s32 %v651, %v653
      %v655 = vrot.slane %v646, %v654
      %v657 = vunpack.c.l.s4 1983009808
      %v658 = vunpack.c.0.s8 %v657
      %v659 = vlaneseq
      %v660 = vshrl.u32 %v659, 7
      %v661 = vsub.s32 %v658, %v660
      %v662 = vrot.slane %v648, %v661
      %v663 = vcombine.low %v655, %v655
      %v664 = vcombine.low %v662, %v662
      %665 = vrot.lane.b32.xlu0 %v663, 103
      %v666 = vpop.permute.xlu0 %665
      %667 = vrot.lane.b32.xlu0 %v655, 103
      %v668 = vpop.permute.xlu0 %667
      %669 = vrot.lane.b32.xlu0 %v664, 103
      %v670 = vpop.permute.xlu0 %669
      %671 = vrot.lane.b32.xlu0 %v662, 103
      %v672 = vpop.permute.xlu0 %671
      %vm673 = vcmask 842752
      %v674 = vsel %vm673, %v666, %v668
      %v675 = vsel %vm673, %v668, %v670
      %v676 = vsel %vm673, %v670, %v672
      %680 = vst [vmem:[#allocation2 + $0x30] sm:$0x30] %v674
      %681 = vst [vmem:[#allocation2 + $0x38] sm:$0x30] %v675
      %682 = vst [vmem:[#allocation2 + $0x40] sm:$0x30] %v676
      %v683 = vld [vmem:[%s265] sm:$0xff]
      %v685 = vcombine.low %v683, %v683
      %v687 = vunpack.c.l.s4 1983009808
      %v688 = vunpack.c.0.s8 %v687
      %v689 = vlaneseq
      %v690 = vshrl.u32 %v689, 7
      %v691 = vsub.s32 %v688, %v690
      %v692 = vrot.slane %v685, %v691
      %v694 = vunpack.c.l.s4 1983009808
      %v695 = vunpack.c.0.s8 %v694
      %v696 = vlaneseq
      %v697 = vshrl.u32 %v696, 7
      %v698 = vsub.s32 %v695, %v697
      %v699 = vrot.slane %v683, %v698
      %v700 = vcombine.low %v692, %v692
      %v701 = vcombine.low %v699, %v699
      %702 = vrot.lane.b32.xlu0 %v700, 102
      %v703 = vpop.permute.xlu0 %702
      %704 = vrot.lane.b32.xlu0 %v692, 102
      %v705 = vpop.permute.xlu0 %704
      %706 = vrot.lane.b32.xlu0 %v701, 102
      %v707 = vpop.permute.xlu0 %706
      %708 = vrot.lane.b32.xlu0 %v699, 102
      %v709 = vpop.permute.xlu0 %708
      %vm710 = vcmask 834560
      %v711 = vsel %vm710, %v703, %v705
      %v712 = vsel %vm710, %v705, %v707
      %v713 = vsel %vm710, %v707, %v709
      %717 = vst [vmem:[#allocation2 + $0x30] sm:$0xc0] %v711
      %718 = vst [vmem:[#allocation2 + $0x38] sm:$0xc0] %v712
      %719 = vst [vmem:[#allocation2 + $0x40] sm:$0xc0] %v713
      %v720 = vld [vmem:[%s265] sm:$0xff]
      %v722 = vcombine.high %v720, %v720
      %v724 = vunpack.c.l.s4 1983009808
      %v725 = vunpack.c.0.s8 %v724
      %v726 = vlaneseq
      %v727 = vshrl.u32 %v726, 7
      %v728 = vsub.s32 %v725, %v727
      %v729 = vrot.slane %v720, %v728
      %v731 = vunpack.c.l.s4 1983009808
      %v732 = vunpack.c.0.s8 %v731
      %v733 = vlaneseq
      %v734 = vshrl.u32 %v733, 7
      %v735 = vsub.s32 %v732, %v734
      %v736 = vrot.slane %v722, %v735
      %v737 = vcombine.high %v729, %v729
      %v738 = vcombine.high %v736, %v736
      %739 = vrot.lane.b32.xlu0 %v729, 101
      %v740 = vpop.permute.xlu0 %739
      %741 = vrot.lane.b32.xlu0 %v737, 101
      %v742 = vpop.permute.xlu0 %741
      %743 = vrot.lane.b32.xlu0 %v736, 101
      %v744 = vpop.permute.xlu0 %743
      %745 = vrot.lane.b32.xlu0 %v738, 101
      %v746 = vpop.permute.xlu0 %745
      %vm747 = vcmask 826368
      %v748 = vsel %vm747, %v740, %v742
      %v749 = vsel %vm747, %v742, %v744
      %v750 = vsel %vm747, %v744, %v746
      %754 = vst [vmem:[#allocation2 + $0x48] sm:$0x3] %v748
      %755 = vst [vmem:[#allocation2 + $0x50] sm:$0x3] %v749
      %756 = vst [vmem:[#allocation2 + $0x58] sm:$0x3] %v750
      %v757 = vld [vmem:[%s265] sm:$0xff]
      %v759 = vcombine.low %v757, %v757
      %v761 = vunpack.c.l.s4 1983009808
      %v762 = vunpack.c.0.s8 %v761
      %v763 = vlaneseq
      %v764 = vshrl.u32 %v763, 7
      %v765 = vsub.s32 %v762, %v764
      %v766 = vrot.slane %v759, %v765
      %v768 = vunpack.c.l.s4 1983009808
      %v769 = vunpack.c.0.s8 %v768
      %v770 = vlaneseq
      %v771 = vshrl.u32 %v770, 7
      %v772 = vsub.s32 %v769, %v771
      %v773 = vrot.slane %v757, %v772
      %v774 = vcombine.high %v766, %v766
      %v775 = vcombine.high %v773, %v773
      %776 = vrot.lane.b32.xlu0 %v766, 100
      %v777 = vpop.permute.xlu0 %776
      %778 = vrot.lane.b32.xlu0 %v774, 100
      %v779 = vpop.permute.xlu0 %778
      %780 = vrot.lane.b32.xlu0 %v773, 100
      %v781 = vpop.permute.xlu0 %780
      %782 = vrot.lane.b32.xlu0 %v775, 100
      %v783 = vpop.permute.xlu0 %782
      %vm784 = vcmask 818176
      %v785 = vsel %vm784, %v777, %v779
      %v786 = vsel %vm784, %v779, %v781
      %v787 = vsel %vm784, %v781, %v783
      %791 = vst [vmem:[#allocation2 + $0x48] sm:$0xc] %v785
      %792 = vst [vmem:[#allocation2 + $0x50] sm:$0xc] %v786
      %793 = vst [vmem:[#allocation2 + $0x58] sm:$0xc] %v787
      %v794 = vld [vmem:[%s265] sm:$0xff]
      %v796 = vcombine.high %v794, %v794
      %v798 = vunpack.c.l.s4 1983009808
      %v799 = vunpack.c.0.s8 %v798
      %v800 = vlaneseq
      %v801 = vshrl.u32 %v800, 7
      %v802 = vsub.s32 %v799, %v801
      %v803 = vrot.slane %v794, %v802
      %v805 = vunpack.c.l.s4 1983009808
      %v806 = vunpack.c.0.s8 %v805
      %v807 = vlaneseq
      %v808 = vshrl.u32 %v807, 7
      %v809 = vsub.s32 %v806, %v808
      %v810 = vrot.slane %v796, %v809
      %v811 = vcombine.low %v803, %v803
      %v812 = vcombine.low %v810, %v810
      %813 = vrot.lane.b32.xlu0 %v811, 84
      %v814 = vpop.permute.xlu0 %813
      %815 = vrot.lane.b32.xlu0 %v803, 84
      %v816 = vpop.permute.xlu0 %815
      %817 = vrot.lane.b32.xlu0 %v812, 84
      %v818 = vpop.permute.xlu0 %817
      %819 = vrot.lane.b32.xlu0 %v810, 84
      %v820 = vpop.permute.xlu0 %819
      %vm821 = vcmask 687104
      %v822 = vsel %vm821, %v814, %v816
      %v823 = vsel %vm821, %v816, %v818
      %v824 = vsel %vm821, %v818, %v820
      %828 = vst [vmem:[#allocation2 + $0x48] sm:$0x30] %v822
      %829 = vst [vmem:[#allocation2 + $0x50] sm:$0x30] %v823
      %830 = vst [vmem:[#allocation2 + $0x58] sm:$0x30] %v824
      %v831 = vld [vmem:[%s265] sm:$0xff]
      %v833 = vcombine.low %v831, %v831
      %v835 = vunpack.c.l.s4 1983009808
      %v836 = vunpack.c.0.s8 %v835
      %v837 = vlaneseq
      %v838 = vshrl.u32 %v837, 7
      %v839 = vsub.s32 %v836, %v838
      %v840 = vrot.slane %v833, %v839
      %v842 = vunpack.c.l.s4 1983009808
      %v843 = vunpack.c.0.s8 %v842
      %v844 = vlaneseq
      %v845 = vshrl.u32 %v844, 7
      %v846 = vsub.s32 %v843, %v845
      %v847 = vrot.slane %v831, %v846
      %v848 = vcombine.low %v840, %v840
      %v849 = vcombine.low %v847, %v847
      %850 = vrot.lane.b32.xlu0 %v848, 83
      %v851 = vpop.permute.xlu0 %850
      %852 = vrot.lane.b32.xlu0 %v840, 83
      %v853 = vpop.permute.xlu0 %852
      %854 = vrot.lane.b32.xlu0 %v849, 83
      %v855 = vpop.permute.xlu0 %854
      %856 = vrot.lane.b32.xlu0 %v847, 83
      %v857 = vpop.permute.xlu0 %856
      %vm858 = vcmask 678912
      %v859 = vsel %vm858, %v851, %v853
      %v860 = vsel %vm858, %v853, %v855
      %v861 = vsel %vm858, %v855, %v857
      %865 = vst [vmem:[#allocation2 + $0x48] sm:$0xc0] %v859
      %866 = vst [vmem:[#allocation2 + $0x50] sm:$0xc0] %v860
      %867 = vst [vmem:[#allocation2 + $0x58] sm:$0xc0] %v861
      %v868 = vld [vmem:[%s265] sm:$0xff]
      %v870 = vcombine.high %v868, %v868
      %v872 = vunpack.c.l.s4 1983009808
      %v873 = vunpack.c.0.s8 %v872
      %v874 = vlaneseq
      %v875 = vshrl.u32 %v874, 7
      %v876 = vsub.s32 %v873, %v875
      %v877 = vrot.slane %v868, %v876
      %v879 = vunpack.c.l.s4 1983009808
      %v880 = vunpack.c.0.s8 %v879
      %v881 = vlaneseq
      %v882 = vshrl.u32 %v881, 7
      %v883 = vsub.s32 %v880, %v882
      %v884 = vrot.slane %v870, %v883
      %v885 = vcombine.high %v877, %v877
      %v886 = vcombine.high %v884, %v884
      %887 = vrot.lane.b32.xlu0 %v877, 82
      %v888 = vpop.permute.xlu0 %887
      %889 = vrot.lane.b32.xlu0 %v885, 82
      %v890 = vpop.permute.xlu0 %889
      %891 = vrot.lane.b32.xlu0 %v884, 82
      %v892 = vpop.permute.xlu0 %891
      %893 = vrot.lane.b32.xlu0 %v886, 82
      %v894 = vpop.permute.xlu0 %893
      %vm895 = vcmask 670720
      %v896 = vsel %vm895, %v888, %v890
      %v897 = vsel %vm895, %v890, %v892
      %v898 = vsel %vm895, %v892, %v894
      %902 = vst [vmem:[#allocation2 + $0x60] sm:$0x3] %v896
      %903 = vst [vmem:[#allocation2 + $0x68] sm:$0x3] %v897
      %904 = vst [vmem:[#allocation2 + $0x70] sm:$0x3] %v898
      %v905 = vld [vmem:[%s265] sm:$0xff]
      %v907 = vcombine.low %v905, %v905
      %v909 = vunpack.c.l.s4 1983009808
      %v910 = vunpack.c.0.s8 %v909
      %v911 = vlaneseq
      %v912 = vshrl.u32 %v911, 7
      %v913 = vsub.s32 %v910, %v912
      %v914 = vrot.slane %v907, %v913
      %v916 = vunpack.c.l.s4 1983009808
      %v917 = vunpack.c.0.s8 %v916
      %v918 = vlaneseq
      %v919 = vshrl.u32 %v918, 7
      %v920 = vsub.s32 %v917, %v919
      %v921 = vrot.slane %v905, %v920
      %v922 = vcombine.high %v914, %v914
      %v923 = vcombine.high %v921, %v921
      %924 = vrot.lane.b32.xlu0 %v914, 81
      %v925 = vpop.permute.xlu0 %924
      %926 = vrot.lane.b32.xlu0 %v922, 81
      %v927 = vpop.permute.xlu0 %926
      %928 = vrot.lane.b32.xlu0 %v921, 81
      %v929 = vpop.permute.xlu0 %928
      %930 = vrot.lane.b32.xlu0 %v923, 81
      %v931 = vpop.permute.xlu0 %930
      %vm932 = vcmask 662528
      %v933 = vsel %vm932, %v925, %v927
      %v934 = vsel %vm932, %v927, %v929
      %v935 = vsel %vm932, %v929, %v931
      %939 = vst [vmem:[#allocation2 + $0x60] sm:$0xc] %v933
      %940 = vst [vmem:[#allocation2 + $0x68] sm:$0xc] %v934
      %941 = vst [vmem:[#allocation2 + $0x70] sm:$0xc] %v935
      %v942 = vld [vmem:[%s265] sm:$0xff]
      %v944 = vcombine.high %v942, %v942
      %v946 = vunpack.c.l.s4 1983009808
      %v947 = vunpack.c.0.s8 %v946
      %v948 = vlaneseq
      %v949 = vshrl.u32 %v948, 7
      %v950 = vsub.s32 %v947, %v949
      %v951 = vrot.slane %v942, %v950
      %v953 = vunpack.c.l.s4 1983009808
      %v954 = vunpack.c.0.s8 %v953
      %v955 = vlaneseq
      %v956 = vshrl.u32 %v955, 7
      %v957 = vsub.s32 %v954, %v956
      %v958 = vrot.slane %v944, %v957
      %v959 = vcombine.low %v951, %v951
      %v960 = vcombine.low %v958, %v958
      %961 = vrot.lane.b32.xlu0 %v959, 80
      %v962 = vpop.permute.xlu0 %961
      %963 = vrot.lane.b32.xlu0 %v951, 80
      %v964 = vpop.permute.xlu0 %963
      %965 = vrot.lane.b32.xlu0 %v960, 80
      %v966 = vpop.permute.xlu0 %965
      %967 = vrot.lane.b32.xlu0 %v958, 80
      %v968 = vpop.permute.xlu0 %967
      %vm969 = vcmask 654336
      %v970 = vsel %vm969, %v962, %v964
      %v971 = vsel %vm969, %v964, %v966
      %v972 = vsel %vm969, %v966, %v968
      %976 = vst [vmem:[#allocation2 + $0x60] sm:$0x30] %v970
      %977 = vst [vmem:[#allocation2 + $0x68] sm:$0x30] %v971
      %978 = vst [vmem:[#allocation2 + $0x70] sm:$0x30] %v972
      %v979 = vld [vmem:[%s265] sm:$0xff]
      %v981 = vcombine.low %v979, %v979
      %v983 = vunpack.c.l.s4 1983009808
      %v984 = vunpack.c.0.s8 %v983
      %v985 = vlaneseq
      %v986 = vshrl.u32 %v985, 7
      %v987 = vsub.s32 %v984, %v986
      %v988 = vrot.slane %v981, %v987
      %v990 = vunpack.c.l.s4 1983009808
      %v991 = vunpack.c.0.s8 %v990
      %v992 = vlaneseq
      %v993 = vshrl.u32 %v992, 7
      %v994 = vsub.s32 %v991, %v993
      %v995 = vrot.slane %v979, %v994
      %v996 = vcombine.low %v988, %v988
      %v997 = vcombine.low %v995, %v995
      %998 = vrot.lane.b32.xlu0 %v996, 79
      %v999 = vpop.permute.xlu0 %998
      %1000 = vrot.lane.b32.xlu0 %v988, 79
      %v1001 = vpop.permute.xlu0 %1000
      %1002 = vrot.lane.b32.xlu0 %v997, 79
      %v1003 = vpop.permute.xlu0 %1002
      %1004 = vrot.lane.b32.xlu0 %v995, 79
      %v1005 = vpop.permute.xlu0 %1004
      %vm1006 = vcmask 646144
      %v1007 = vsel %vm1006, %v999, %v1001
      %v1008 = vsel %vm1006, %v1001, %v1003
      %v1009 = vsel %vm1006, %v1003, %v1005
      %1013 = vst [vmem:[#allocation2 + $0x60] sm:$0xc0] %v1007
      %1014 = vst [vmem:[#allocation2 + $0x68] sm:$0xc0] %v1008
      %1015 = vst [vmem:[#allocation2 + $0x70] sm:$0xc0] %v1009
      %v1016 = vld [vmem:[%s265] sm:$0xff]
      %v1018 = vcombine.high %v1016, %v1016
      %v1020 = vunpack.c.l.s4 1983009808
      %v1021 = vunpack.c.0.s8 %v1020
      %v1022 = vlaneseq
      %v1023 = vshrl.u32 %v1022, 7
      %v1024 = vsub.s32 %v1021, %v1023
      %v1025 = vrot.slane %v1016, %v1024
      %v1027 = vunpack.c.l.s4 1983009808
      %v1028 = vunpack.c.0.s8 %v1027
      %v1029 = vlaneseq
      %v1030 = vshrl.u32 %v1029, 7
      %v1031 = vsub.s32 %v1028, %v1030
      %v1032 = vrot.slane %v1018, %v1031
      %v1033 = vcombine.high %v1025, %v1025
      %v1034 = vcombine.high %v1032, %v1032
      %1035 = vrot.lane.b32.xlu0 %v1025, 78
      %v1036 = vpop.permute.xlu0 %1035
      %1037 = vrot.lane.b32.xlu0 %v1033, 78
      %v1038 = vpop.permute.xlu0 %1037
      %1039 = vrot.lane.b32.xlu0 %v1032, 78
      %v1040 = vpop.permute.xlu0 %1039
      %1041 = vrot.lane.b32.xlu0 %v1034, 78
      %v1042 = vpop.permute.xlu0 %1041
      %vm1043 = vcmask 637952
      %v1044 = vsel %vm1043, %v1036, %v1038
      %v1045 = vsel %vm1043, %v1038, %v1040
      %v1046 = vsel %vm1043, %v1040, %v1042
      %1050 = vst [vmem:[#allocation2 + $0x78] sm:$0x3] %v1044
      %1051 = vst [vmem:[#allocation2 + $0x80] sm:$0x3] %v1045
      %1052 = vst [vmem:[#allocation2 + $0x88] sm:$0x3] %v1046
      %v1053 = vld [vmem:[%s265] sm:$0xff]
      %v1055 = vcombine.low %v1053, %v1053
      %v1057 = vunpack.c.l.s4 1983009808
      %v1058 = vunpack.c.0.s8 %v1057
      %v1059 = vlaneseq
      %v1060 = vshrl.u32 %v1059, 7
      %v1061 = vsub.s32 %v1058, %v1060
      %v1062 = vrot.slane %v1055, %v1061
      %v1064 = vunpack.c.l.s4 1983009808
      %v1065 = vunpack.c.0.s8 %v1064
      %v1066 = vlaneseq
      %v1067 = vshrl.u32 %v1066, 7
      %v1068 = vsub.s32 %v1065, %v1067
      %v1069 = vrot.slane %v1053, %v1068
      %v1070 = vcombine.high %v1062, %v1062
      %v1071 = vcombine.high %v1069, %v1069
      %1072 = vrot.lane.b32.xlu0 %v1062, 62
      %v1073 = vpop.permute.xlu0 %1072
      %1074 = vrot.lane.b32.xlu0 %v1070, 62
      %v1075 = vpop.permute.xlu0 %1074
      %1076 = vrot.lane.b32.xlu0 %v1069, 62
      %v1077 = vpop.permute.xlu0 %1076
      %1078 = vrot.lane.b32.xlu0 %v1071, 62
      %v1079 = vpop.permute.xlu0 %1078
      %vm1080 = vcmask 506880
      %v1081 = vsel %vm1080, %v1073, %v1075
      %v1082 = vsel %vm1080, %v1075, %v1077
      %v1083 = vsel %vm1080, %v1077, %v1079
      %1087 = vst [vmem:[#allocation2 + $0x78] sm:$0xc] %v1081
      %1088 = vst [vmem:[#allocation2 + $0x80] sm:$0xc] %v1082
      %1089 = vst [vmem:[#allocation2 + $0x88] sm:$0xc] %v1083
      %v1090 = vld [vmem:[%s265] sm:$0xff]
      %v1092 = vcombine.high %v1090, %v1090
      %v1094 = vunpack.c.l.s4 1983009808
      %v1095 = vunpack.c.0.s8 %v1094
      %v1096 = vlaneseq
      %v1097 = vshrl.u32 %v1096, 7
      %v1098 = vsub.s32 %v1095, %v1097
      %v1099 = vrot.slane %v1090, %v1098
      %v1101 = vunpack.c.l.s4 1983009808
      %v1102 = vunpack.c.0.s8 %v1101
      %v1103 = vlaneseq
      %v1104 = vshrl.u32 %v1103, 7
      %v1105 = vsub.s32 %v1102, %v1104
      %v1106 = vrot.slane %v1092, %v1105
      %v1107 = vcombine.low %v1099, %v1099
      %v1108 = vcombine.low %v1106, %v1106
      %1109 = vrot.lane.b32.xlu0 %v1107, 61
      %v1110 = vpop.permute.xlu0 %1109
      %1111 = vrot.lane.b32.xlu0 %v1099, 61
      %v1112 = vpop.permute.xlu0 %1111
      %1113 = vrot.lane.b32.xlu0 %v1108, 61
      %v1114 = vpop.permute.xlu0 %1113
      %1115 = vrot.lane.b32.xlu0 %v1106, 61
      %v1116 = vpop.permute.xlu0 %1115
      %vm1117 = vcmask 498688
      %v1118 = vsel %vm1117, %v1110, %v1112
      %v1119 = vsel %vm1117, %v1112, %v1114
      %v1120 = vsel %vm1117, %v1114, %v1116
      %1124 = vst [vmem:[#allocation2 + $0x78] sm:$0x30] %v1118
      %1125 = vst [vmem:[#allocation2 + $0x80] sm:$0x30] %v1119
      %1126 = vst [vmem:[#allocation2 + $0x88] sm:$0x30] %v1120
      %v1127 = vld [vmem:[%s265] sm:$0xff]
      %v1129 = vcombine.low %v1127, %v1127
      %v1131 = vunpack.c.l.s4 1983009808
      %v1132 = vunpack.c.0.s8 %v1131
      %v1133 = vlaneseq
      %v1134 = vshrl.u32 %v1133, 7
      %v1135 = vsub.s32 %v1132, %v1134
      %v1136 = vrot.slane %v1129, %v1135
      %v1138 = vunpack.c.l.s4 1983009808
      %v1139 = vunpack.c.0.s8 %v1138
      %v1140 = vlaneseq
      %v1141 = vshrl.u32 %v1140, 7
      %v1142 = vsub.s32 %v1139, %v1141
      %v1143 = vrot.slane %v1127, %v1142
      %v1144 = vcombine.low %v1136, %v1136
      %v1145 = vcombine.low %v1143, %v1143
      %1146 = vrot.lane.b32.xlu0 %v1144, 60
      %v1147 = vpop.permute.xlu0 %1146
      %1148 = vrot.lane.b32.xlu0 %v1136, 60
      %v1149 = vpop.permute.xlu0 %1148
      %1150 = vrot.lane.b32.xlu0 %v1145, 60
      %v1151 = vpop.permute.xlu0 %1150
      %1152 = vrot.lane.b32.xlu0 %v1143, 60
      %v1153 = vpop.permute.xlu0 %1152
      %vm1154 = vcmask 490496
      %v1155 = vsel %vm1154, %v1147, %v1149
      %v1156 = vsel %vm1154, %v1149, %v1151
      %v1157 = vsel %vm1154, %v1151, %v1153
      %1161 = vst [vmem:[#allocation2 + $0x78] sm:$0xc0] %v1155
      %1162 = vst [vmem:[#allocation2 + $0x80] sm:$0xc0] %v1156
      %1163 = vst [vmem:[#allocation2 + $0x88] sm:$0xc0] %v1157
      %v1164 = vld [vmem:[%s265] sm:$0xff]
      %v1166 = vcombine.high %v1164, %v1164
      %v1168 = vunpack.c.l.s4 1983009808
      %v1169 = vunpack.c.0.s8 %v1168
      %v1170 = vlaneseq
      %v1171 = vshrl.u32 %v1170, 7
      %v1172 = vsub.s32 %v1169, %v1171
      %v1173 = vrot.slane %v1164, %v1172
      %v1175 = vunpack.c.l.s4 1983009808
      %v1176 = vunpack.c.0.s8 %v1175
      %v1177 = vlaneseq
      %v1178 = vshrl.u32 %v1177, 7
      %v1179 = vsub.s32 %v1176, %v1178
      %v1180 = vrot.slane %v1166, %v1179
      %v1181 = vcombine.high %v1173, %v1173
      %v1182 = vcombine.high %v1180, %v1180
      %1183 = vrot.lane.b32.xlu0 %v1173, 59
      %v1184 = vpop.permute.xlu0 %1183
      %1185 = vrot.lane.b32.xlu0 %v1181, 59
      %v1186 = vpop.permute.xlu0 %1185
      %1187 = vrot.lane.b32.xlu0 %v1180, 59
      %v1188 = vpop.permute.xlu0 %1187
      %1189 = vrot.lane.b32.xlu0 %v1182, 59
      %v1190 = vpop.permute.xlu0 %1189
      %vm1191 = vcmask 482304
      %v1192 = vsel %vm1191, %v1184, %v1186
      %v1193 = vsel %vm1191, %v1186, %v1188
      %v1194 = vsel %vm1191, %v1188, %v1190
      %1198 = vst [vmem:[#allocation2 + $0x90] sm:$0x3] %v1192
      %1199 = vst [vmem:[#allocation2 + $0x98] sm:$0x3] %v1193
      %1200 = vst [vmem:[#allocation2 + $0xa0] sm:$0x3] %v1194
      %v1201 = vld [vmem:[%s265] sm:$0xff]
      %v1203 = vcombine.low %v1201, %v1201
      %v1205 = vunpack.c.l.s4 1983009808
      %v1206 = vunpack.c.0.s8 %v1205
      %v1207 = vlaneseq
      %v1208 = vshrl.u32 %v1207, 7
      %v1209 = vsub.s32 %v1206, %v1208
      %v1210 = vrot.slane %v1203, %v1209
      %v1212 = vunpack.c.l.s4 1983009808
      %v1213 = vunpack.c.0.s8 %v1212
      %v1214 = vlaneseq
      %v1215 = vshrl.u32 %v1214, 7
      %v1216 = vsub.s32 %v1213, %v1215
      %v1217 = vrot.slane %v1201, %v1216
      %v1218 = vcombine.high %v1210, %v1210
      %v1219 = vcombine.high %v1217, %v1217
      %1220 = vrot.lane.b32.xlu0 %v1210, 58
      %v1221 = vpop.permute.xlu0 %1220
      %1222 = vrot.lane.b32.xlu0 %v1218, 58
      %v1223 = vpop.permute.xlu0 %1222
      %1224 = vrot.lane.b32.xlu0 %v1217, 58
      %v1225 = vpop.permute.xlu0 %1224
      %1226 = vrot.lane.b32.xlu0 %v1219, 58
      %v1227 = vpop.permute.xlu0 %1226
      %vm1228 = vcmask 474112
      %v1229 = vsel %vm1228, %v1221, %v1223
      %v1230 = vsel %vm1228, %v1223, %v1225
      %v1231 = vsel %vm1228, %v1225, %v1227
      %1235 = vst [vmem:[#allocation2 + $0x90] sm:$0xc] %v1229
      %1236 = vst [vmem:[#allocation2 + $0x98] sm:$0xc] %v1230
      %1237 = vst [vmem:[#allocation2 + $0xa0] sm:$0xc] %v1231
      %v1238 = vld [vmem:[%s265] sm:$0xff]
      %v1240 = vcombine.high %v1238, %v1238
      %v1242 = vunpack.c.l.s4 1983009808
      %v1243 = vunpack.c.0.s8 %v1242
      %v1244 = vlaneseq
      %v1245 = vshrl.u32 %v1244, 7
      %v1246 = vsub.s32 %v1243, %v1245
      %v1247 = vrot.slane %v1238, %v1246
      %v1249 = vunpack.c.l.s4 1983009808
      %v1250 = vunpack.c.0.s8 %v1249
      %v1251 = vlaneseq
      %v1252 = vshrl.u32 %v1251, 7
      %v1253 = vsub.s32 %v1250, %v1252
      %v1254 = vrot.slane %v1240, %v1253
      %v1255 = vcombine.low %v1247, %v1247
      %v1256 = vcombine.low %v1254, %v1254
      %1257 = vrot.lane.b32.xlu0 %v1255, 57
      %v1258 = vpop.permute.xlu0 %1257
      %1259 = vrot.lane.b32.xlu0 %v1247, 57
      %v1260 = vpop.permute.xlu0 %1259
      %1261 = vrot.lane.b32.xlu0 %v1256, 57
      %v1262 = vpop.permute.xlu0 %1261
      %1263 = vrot.lane.b32.xlu0 %v1254, 57
      %v1264 = vpop.permute.xlu0 %1263
      %vm1265 = vcmask 465920
      %v1266 = vsel %vm1265, %v1258, %v1260
      %v1267 = vsel %vm1265, %v1260, %v1262
      %v1268 = vsel %vm1265, %v1262, %v1264
      %1272 = vst [vmem:[#allocation2 + $0x90] sm:$0x30] %v1266
      %1273 = vst [vmem:[#allocation2 + $0x98] sm:$0x30] %v1267
      %1274 = vst [vmem:[#allocation2 + $0xa0] sm:$0x30] %v1268
      %v1275 = vld [vmem:[%s265] sm:$0xff]
      %v1277 = vcombine.low %v1275, %v1275
      %v1279 = vunpack.c.l.s4 1983009808
      %v1280 = vunpack.c.0.s8 %v1279
      %v1281 = vlaneseq
      %v1282 = vshrl.u32 %v1281, 7
      %v1283 = vsub.s32 %v1280, %v1282
      %v1284 = vrot.slane %v1277, %v1283
      %v1286 = vunpack.c.l.s4 1983009808
      %v1287 = vunpack.c.0.s8 %v1286
      %v1288 = vlaneseq
      %v1289 = vshrl.u32 %v1288, 7
      %v1290 = vsub.s32 %v1287, %v1289
      %v1291 = vrot.slane %v1275, %v1290
      %v1292 = vcombine.low %v1284, %v1284
      %v1293 = vcombine.low %v1291, %v1291
      %1294 = vrot.lane.b32.xlu0 %v1292, 56
      %v1295 = vpop.permute.xlu0 %1294
      %1296 = vrot.lane.b32.xlu0 %v1284, 56
      %v1297 = vpop.permute.xlu0 %1296
      %1298 = vrot.lane.b32.xlu0 %v1293, 56
      %v1299 = vpop.permute.xlu0 %1298
      %1300 = vrot.lane.b32.xlu0 %v1291, 56
      %v1301 = vpop.permute.xlu0 %1300
      %vm1302 = vcmask 457728
      %v1303 = vsel %vm1302, %v1295, %v1297
      %v1304 = vsel %vm1302, %v1297, %v1299
      %v1305 = vsel %vm1302, %v1299, %v1301
      %1309 = vst [vmem:[#allocation2 + $0x90] sm:$0xc0] %v1303
      %1310 = vst [vmem:[#allocation2 + $0x98] sm:$0xc0] %v1304
      %1311 = vst [vmem:[#allocation2 + $0xa0] sm:$0xc0] %v1305
      %v1312 = vld [vmem:[%s265] sm:$0xff]
      %v1314 = vcombine.high %v1312, %v1312
      %v1316 = vunpack.c.l.s4 1983009808
      %v1317 = vunpack.c.0.s8 %v1316
      %v1318 = vlaneseq
      %v1319 = vshrl.u32 %v1318, 7
      %v1320 = vsub.s32 %v1317, %v1319
      %v1321 = vrot.slane %v1312, %v1320
      %v1323 = vunpack.c.l.s4 1983009808
      %v1324 = vunpack.c.0.s8 %v1323
      %v1325 = vlaneseq
      %v1326 = vshrl.u32 %v1325, 7
      %v1327 = vsub.s32 %v1324, %v1326
      %v1328 = vrot.slane %v1314, %v1327
      %v1329 = vcombine.high %v1321, %v1321
      %v1330 = vcombine.high %v1328, %v1328
      %1331 = vrot.lane.b32.xlu0 %v1321, 40
      %v1332 = vpop.permute.xlu0 %1331
      %1333 = vrot.lane.b32.xlu0 %v1329, 40
      %v1334 = vpop.permute.xlu0 %1333
      %1335 = vrot.lane.b32.xlu0 %v1328, 40
      %v1336 = vpop.permute.xlu0 %1335
      %1337 = vrot.lane.b32.xlu0 %v1330, 40
      %v1338 = vpop.permute.xlu0 %1337
      %vm1339 = vcmask 326656
      %v1340 = vsel %vm1339, %v1332, %v1334
      %v1341 = vsel %vm1339, %v1334, %v1336
      %v1342 = vsel %vm1339, %v1336, %v1338
      %1346 = vst [vmem:[#allocation2 + $0xa8] sm:$0x3] %v1340
      %1347 = vst [vmem:[#allocation2 + $0xb0] sm:$0x3] %v1341
      %1348 = vst [vmem:[#allocation2 + $0xb8] sm:$0x3] %v1342
      %v1349 = vld [vmem:[%s265] sm:$0xff]
      %v1351 = vcombine.low %v1349, %v1349
      %v1353 = vunpack.c.l.s4 1983009808
      %v1354 = vunpack.c.0.s8 %v1353
      %v1355 = vlaneseq
      %v1356 = vshrl.u32 %v1355, 7
      %v1357 = vsub.s32 %v1354, %v1356
      %v1358 = vrot.slane %v1351, %v1357
      %v1360 = vunpack.c.l.s4 1983009808
      %v1361 = vunpack.c.0.s8 %v1360
      %v1362 = vlaneseq
      %v1363 = vshrl.u32 %v1362, 7
      %v1364 = vsub.s32 %v1361, %v1363
      %v1365 = vrot.slane %v1349, %v1364
      %v1366 = vcombine.high %v1358, %v1358
      %v1367 = vcombine.high %v1365, %v1365
      %1368 = vrot.lane.b32.xlu0 %v1358, 39
      %v1369 = vpop.permute.xlu0 %1368
      %1370 = vrot.lane.b32.xlu0 %v1366, 39
      %v1371 = vpop.permute.xlu0 %1370
      %1372 = vrot.lane.b32.xlu0 %v1365, 39
      %v1373 = vpop.permute.xlu0 %1372
      %1374 = vrot.lane.b32.xlu0 %v1367, 39
      %v1375 = vpop.permute.xlu0 %1374
      %vm1376 = vcmask 318464
      %v1377 = vsel %vm1376, %v1369, %v1371
      %v1378 = vsel %vm1376, %v1371, %v1373
      %v1379 = vsel %vm1376, %v1373, %v1375
      %1383 = vst [vmem:[#allocation2 + $0xa8] sm:$0xc] %v1377
      %1384 = vst [vmem:[#allocation2 + $0xb0] sm:$0xc] %v1378
      %1385 = vst [vmem:[#allocation2 + $0xb8] sm:$0xc] %v1379
      %v1386 = vld [vmem:[%s265] sm:$0xff]
      %v1388 = vcombine.high %v1386, %v1386
      %v1390 = vunpack.c.l.s4 1983009808
      %v1391 = vunpack.c.0.s8 %v1390
      %v1392 = vlaneseq
      %v1393 = vshrl.u32 %v1392, 7
      %v1394 = vsub.s32 %v1391, %v1393
      %v1395 = vrot.slane %v1386, %v1394
      %v1397 = vunpack.c.l.s4 1983009808
      %v1398 = vunpack.c.0.s8 %v1397
      %v1399 = vlaneseq
      %v1400 = vshrl.u32 %v1399, 7
      %v1401 = vsub.s32 %v1398, %v1400
      %v1402 = vrot.slane %v1388, %v1401
      %v1403 = vcombine.low %v1395, %v1395
      %v1404 = vcombine.low %v1402, %v1402
      %1405 = vrot.lane.b32.xlu0 %v1403, 38
      %v1406 = vpop.permute.xlu0 %1405
      %1407 = vrot.lane.b32.xlu0 %v1395, 38
      %v1408 = vpop.permute.xlu0 %1407
      %1409 = vrot.lane.b32.xlu0 %v1404, 38
      %v1410 = vpop.permute.xlu0 %1409
      %1411 = vrot.lane.b32.xlu0 %v1402, 38
      %v1412 = vpop.permute.xlu0 %1411
      %vm1413 = vcmask 310272
      %v1414 = vsel %vm1413, %v1406, %v1408
      %v1415 = vsel %vm1413, %v1408, %v1410
      %v1416 = vsel %vm1413, %v1410, %v1412
      %1420 = vst [vmem:[#allocation2 + $0xa8] sm:$0x30] %v1414
      %1421 = vst [vmem:[#allocation2 + $0xb0] sm:$0x30] %v1415
      %1422 = vst [vmem:[#allocation2 + $0xb8] sm:$0x30] %v1416
      %v1423 = vld [vmem:[%s265] sm:$0xff]
      %v1425 = vcombine.low %v1423, %v1423
      %v1427 = vunpack.c.l.s4 1983009808
      %v1428 = vunpack.c.0.s8 %v1427
      %v1429 = vlaneseq
      %v1430 = vshrl.u32 %v1429, 7
      %v1431 = vsub.s32 %v1428, %v1430
      %v1432 = vrot.slane %v1425, %v1431
      %v1434 = vunpack.c.l.s4 1983009808
      %v1435 = vunpack.c.0.s8 %v1434
      %v1436 = vlaneseq
      %v1437 = vshrl.u32 %v1436, 7
      %v1438 = vsub.s32 %v1435, %v1437
      %v1439 = vrot.slane %v1423, %v1438
      %v1440 = vcombine.low %v1432, %v1432
      %v1441 = vcombine.low %v1439, %v1439
      %1442 = vrot.lane.b32.xlu0 %v1440, 37
      %v1443 = vpop.permute.xlu0 %1442
      %1444 = vrot.lane.b32.xlu0 %v1432, 37
      %v1445 = vpop.permute.xlu0 %1444
      %1446 = vrot.lane.b32.xlu0 %v1441, 37
      %v1447 = vpop.permute.xlu0 %1446
      %1448 = vrot.lane.b32.xlu0 %v1439, 37
      %v1449 = vpop.permute.xlu0 %1448
      %vm1450 = vcmask 302080
      %v1451 = vsel %vm1450, %v1443, %v1445
      %v1452 = vsel %vm1450, %v1445, %v1447
      %v1453 = vsel %vm1450, %v1447, %v1449
      %1457 = vst [vmem:[#allocation2 + $0xa8] sm:$0xc0] %v1451
      %1458 = vst [vmem:[#allocation2 + $0xb0] sm:$0xc0] %v1452
      %1459 = vst [vmem:[#allocation2 + $0xb8] sm:$0xc0] %v1453
      %v1460 = vld [vmem:[%s265] sm:$0xff]
      %v1462 = vcombine.high %v1460, %v1460
      %v1464 = vunpack.c.l.s4 1983009808
      %v1465 = vunpack.c.0.s8 %v1464
      %v1466 = vlaneseq
      %v1467 = vshrl.u32 %v1466, 7
      %v1468 = vsub.s32 %v1465, %v1467
      %v1469 = vrot.slane %v1460, %v1468
      %v1471 = vunpack.c.l.s4 1983009808
      %v1472 = vunpack.c.0.s8 %v1471
      %v1473 = vlaneseq
      %v1474 = vshrl.u32 %v1473, 7
      %v1475 = vsub.s32 %v1472, %v1474
      %v1476 = vrot.slane %v1462, %v1475
      %v1477 = vcombine.high %v1469, %v1469
      %v1478 = vcombine.high %v1476, %v1476
      %1479 = vrot.lane.b32.xlu0 %v1469, 36
      %v1480 = vpop.permute.xlu0 %1479
      %1481 = vrot.lane.b32.xlu0 %v1477, 36
      %v1482 = vpop.permute.xlu0 %1481
      %1483 = vrot.lane.b32.xlu0 %v1476, 36
      %v1484 = vpop.permute.xlu0 %1483
      %1485 = vrot.lane.b32.xlu0 %v1478, 36
      %v1486 = vpop.permute.xlu0 %1485
      %vm1487 = vcmask 293888
      %v1488 = vsel %vm1487, %v1480, %v1482
      %v1489 = vsel %vm1487, %v1482, %v1484
      %v1490 = vsel %vm1487, %v1484, %v1486
      %1494 = vst [vmem:[#allocation2 + $0xc0] sm:$0x3] %v1488
      %1495 = vst [vmem:[#allocation2 + $0xc8] sm:$0x3] %v1489
      %1496 = vst [vmem:[#allocation2 + $0xd0] sm:$0x3] %v1490
      %v1497 = vld [vmem:[%s265] sm:$0xff]
      %v1499 = vcombine.low %v1497, %v1497
      %v1501 = vunpack.c.l.s4 1983009808
      %v1502 = vunpack.c.0.s8 %v1501
      %v1503 = vlaneseq
      %v1504 = vshrl.u32 %v1503, 7
      %v1505 = vsub.s32 %v1502, %v1504
      %v1506 = vrot.slane %v1499, %v1505
      %v1508 = vunpack.c.l.s4 1983009808
      %v1509 = vunpack.c.0.s8 %v1508
      %v1510 = vlaneseq
      %v1511 = vshrl.u32 %v1510, 7
      %v1512 = vsub.s32 %v1509, %v1511
      %v1513 = vrot.slane %v1497, %v1512
      %v1514 = vcombine.high %v1506, %v1506
      %v1515 = vcombine.high %v1513, %v1513
      %1516 = vrot.lane.b32.xlu0 %v1506, 35
      %v1517 = vpop.permute.xlu0 %1516
      %1518 = vrot.lane.b32.xlu0 %v1514, 35
      %v1519 = vpop.permute.xlu0 %1518
      %1520 = vrot.lane.b32.xlu0 %v1513, 35
      %v1521 = vpop.permute.xlu0 %1520
      %1522 = vrot.lane.b32.xlu0 %v1515, 35
      %v1523 = vpop.permute.xlu0 %1522
      %vm1524 = vcmask 285696
      %v1525 = vsel %vm1524, %v1517, %v1519
      %v1526 = vsel %vm1524, %v1519, %v1521
      %v1527 = vsel %vm1524, %v1521, %v1523
      %1531 = vst [vmem:[#allocation2 + $0xc0] sm:$0xc] %v1525
      %1532 = vst [vmem:[#allocation2 + $0xc8] sm:$0xc] %v1526
      %1533 = vst [vmem:[#allocation2 + $0xd0] sm:$0xc] %v1527
      %v1534 = vld [vmem:[%s265] sm:$0xff]
      %v1536 = vcombine.high %v1534, %v1534
      %v1538 = vunpack.c.l.s4 1983009808
      %v1539 = vunpack.c.0.s8 %v1538
      %v1540 = vlaneseq
      %v1541 = vshrl.u32 %v1540, 7
      %v1542 = vsub.s32 %v1539, %v1541
      %v1543 = vrot.slane %v1534, %v1542
      %v1545 = vunpack.c.l.s4 1983009808
      %v1546 = vunpack.c.0.s8 %v1545
      %v1547 = vlaneseq
      %v1548 = vshrl.u32 %v1547, 7
      %v1549 = vsub.s32 %v1546, %v1548
      %v1550 = vrot.slane %v1536, %v1549
      %v1551 = vcombine.low %v1543, %v1543
      %v1552 = vcombine.low %v1550, %v1550
      %1553 = vrot.lane.b32.xlu0 %v1551, 34
      %v1554 = vpop.permute.xlu0 %1553
      %1555 = vrot.lane.b32.xlu0 %v1543, 34
      %v1556 = vpop.permute.xlu0 %1555
      %1557 = vrot.lane.b32.xlu0 %v1552, 34
      %v1558 = vpop.permute.xlu0 %1557
      %1559 = vrot.lane.b32.xlu0 %v1550, 34
      %v1560 = vpop.permute.xlu0 %1559
      %vm1561 = vcmask 277504
      %v1562 = vsel %vm1561, %v1554, %v1556
      %v1563 = vsel %vm1561, %v1556, %v1558
      %v1564 = vsel %vm1561, %v1558, %v1560
      %1568 = vst [vmem:[#allocation2 + $0xc0] sm:$0x30] %v1562
      %1569 = vst [vmem:[#allocation2 + $0xc8] sm:$0x30] %v1563
      %1570 = vst [vmem:[#allocation2 + $0xd0] sm:$0x30] %v1564
      %v1571 = vld [vmem:[%s265] sm:$0xff]
      %v1573 = vcombine.low %v1571, %v1571
      %v1575 = vunpack.c.l.s4 1983009808
      %v1576 = vunpack.c.0.s8 %v1575
      %v1577 = vlaneseq
      %v1578 = vshrl.u32 %v1577, 7
      %v1579 = vsub.s32 %v1576, %v1578
      %v1580 = vrot.slane %v1573, %v1579
      %v1582 = vunpack.c.l.s4 1983009808
      %v1583 = vunpack.c.0.s8 %v1582
      %v1584 = vlaneseq
      %v1585 = vshrl.u32 %v1584, 7
      %v1586 = vsub.s32 %v1583, %v1585
      %v1587 = vrot.slane %v1571, %v1586
      %v1588 = vcombine.low %v1580, %v1580
      %v1589 = vcombine.low %v1587, %v1587
      %1590 = vrot.lane.b32.xlu0 %v1588, 18
      %v1591 = vpop.permute.xlu0 %1590
      %1592 = vrot.lane.b32.xlu0 %v1580, 18
      %v1593 = vpop.permute.xlu0 %1592
      %1594 = vrot.lane.b32.xlu0 %v1589, 18
      %v1595 = vpop.permute.xlu0 %1594
      %1596 = vrot.lane.b32.xlu0 %v1587, 18
      %v1597 = vpop.permute.xlu0 %1596
      %vm1598 = vcmask 146432
      %v1599 = vsel %vm1598, %v1591, %v1593
      %v1600 = vsel %vm1598, %v1593, %v1595
      %v1601 = vsel %vm1598, %v1595, %v1597
      %1605 = vst [vmem:[#allocation2 + $0xc0] sm:$0xc0] %v1599
      %1606 = vst [vmem:[#allocation2 + $0xc8] sm:$0xc0] %v1600
      %1607 = vst [vmem:[#allocation2 + $0xd0] sm:$0xc0] %v1601
      %v1608 = vld [vmem:[%s265] sm:$0xff]
      %v1610 = vcombine.high %v1608, %v1608
      %v1612 = vunpack.c.l.s4 1983009808
      %v1613 = vunpack.c.0.s8 %v1612
      %v1614 = vlaneseq
      %v1615 = vshrl.u32 %v1614, 7
      %v1616 = vsub.s32 %v1613, %v1615
      %v1617 = vrot.slane %v1608, %v1616
      %v1619 = vunpack.c.l.s4 1983009808
      %v1620 = vunpack.c.0.s8 %v1619
      %v1621 = vlaneseq
      %v1622 = vshrl.u32 %v1621, 7
      %v1623 = vsub.s32 %v1620, %v1622
      %v1624 = vrot.slane %v1610, %v1623
      %v1625 = vcombine.high %v1617, %v1617
      %v1626 = vcombine.high %v1624, %v1624
      %1627 = vrot.lane.b32.xlu0 %v1617, 17
      %v1628 = vpop.permute.xlu0 %1627
      %1629 = vrot.lane.b32.xlu0 %v1625, 17
      %v1630 = vpop.permute.xlu0 %1629
      %1631 = vrot.lane.b32.xlu0 %v1624, 17
      %v1632 = vpop.permute.xlu0 %1631
      %1633 = vrot.lane.b32.xlu0 %v1626, 17
      %v1634 = vpop.permute.xlu0 %1633
      %vm1635 = vcmask 138240
      %v1636 = vsel %vm1635, %v1628, %v1630
      %v1637 = vsel %vm1635, %v1630, %v1632
      %v1638 = vsel %vm1635, %v1632, %v1634
      %1642 = vst [vmem:[#allocation2 + $0xd8] sm:$0x3] %v1636
      %1643 = vst [vmem:[#allocation2 + $0xe0] sm:$0x3] %v1637
      %1644 = vst [vmem:[#allocation2 + $0xe8] sm:$0x3] %v1638
      %v1645 = vld [vmem:[%s265] sm:$0xff]
      %v1647 = vcombine.low %v1645, %v1645
      %v1649 = vunpack.c.l.s4 1983009808
      %v1650 = vunpack.c.0.s8 %v1649
      %v1651 = vlaneseq
      %v1652 = vshrl.u32 %v1651, 7
      %v1653 = vsub.s32 %v1650, %v1652
      %v1654 = vrot.slane %v1647, %v1653
      %v1656 = vunpack.c.l.s4 1983009808
      %v1657 = vunpack.c.0.s8 %v1656
      %v1658 = vlaneseq
      %v1659 = vshrl.u32 %v1658, 7
      %v1660 = vsub.s32 %v1657, %v1659
      %v1661 = vrot.slane %v1645, %v1660
      %v1662 = vcombine.high %v1654, %v1654
      %v1663 = vcombine.high %v1661, %v1661
      %1664 = vrot.lane.b32.xlu0 %v1654, 16
      %v1665 = vpop.permute.xlu0 %1664
      %1666 = vrot.lane.b32.xlu0 %v1662, 16
      %v1667 = vpop.permute.xlu0 %1666
      %1668 = vrot.lane.b32.xlu0 %v1661, 16
      %v1669 = vpop.permute.xlu0 %1668
      %1670 = vrot.lane.b32.xlu0 %v1663, 16
      %v1671 = vpop.permute.xlu0 %1670
      %vm1672 = vcmask 130048
      %v1673 = vsel %vm1672, %v1665, %v1667
      %v1674 = vsel %vm1672, %v1667, %v1669
      %v1675 = vsel %vm1672, %v1669, %v1671
      %1679 = vst [vmem:[#allocation2 + $0xd8] sm:$0xc] %v1673
      %1680 = vst [vmem:[#allocation2 + $0xe0] sm:$0xc] %v1674
      %1681 = vst [vmem:[#allocation2 + $0xe8] sm:$0xc] %v1675
      %v1682 = vld [vmem:[%s265] sm:$0xff]
      %v1684 = vcombine.high %v1682, %v1682
      %v1686 = vunpack.c.l.s4 1983009808
      %v1687 = vunpack.c.0.s8 %v1686
      %v1688 = vlaneseq
      %v1689 = vshrl.u32 %v1688, 7
      %v1690 = vsub.s32 %v1687, %v1689
      %v1691 = vrot.slane %v1682, %v1690
      %v1693 = vunpack.c.l.s4 1983009808
      %v1694 = vunpack.c.0.s8 %v1693
      %v1695 = vlaneseq
      %v1696 = vshrl.u32 %v1695, 7
      %v1697 = vsub.s32 %v1694, %v1696
      %v1698 = vrot.slane %v1684, %v1697
      %v1699 = vcombine.low %v1691, %v1691
      %v1700 = vcombine.low %v1698, %v1698
      %1701 = vrot.lane.b32.xlu0 %v1699, 15
      %v1702 = vpop.permute.xlu0 %1701
      %1703 = vrot.lane.b32.xlu0 %v1691, 15
      %v1704 = vpop.permute.xlu0 %1703
      %1705 = vrot.lane.b32.xlu0 %v1700, 15
      %v1706 = vpop.permute.xlu0 %1705
      %1707 = vrot.lane.b32.xlu0 %v1698, 15
      %v1708 = vpop.permute.xlu0 %1707
      %vm1709 = vcmask 121856
      %v1710 = vsel %vm1709, %v1702, %v1704
      %v1711 = vsel %vm1709, %v1704, %v1706
      %v1712 = vsel %vm1709, %v1706, %v1708
      %1716 = vst [vmem:[#allocation2 + $0xd8] sm:$0x30] %v1710
      %1717 = vst [vmem:[#allocation2 + $0xe0] sm:$0x30] %v1711
      %1718 = vst [vmem:[#allocation2 + $0xe8] sm:$0x30] %v1712
      %v1719 = vld [vmem:[%s265] sm:$0xff]
      %v1721 = vcombine.low %v1719, %v1719
      %v1723 = vunpack.c.l.s4 1983009808
      %v1724 = vunpack.c.0.s8 %v1723
      %v1725 = vlaneseq
      %v1726 = vshrl.u32 %v1725, 7
      %v1727 = vsub.s32 %v1724, %v1726
      %v1728 = vrot.slane %v1721, %v1727
      %v1730 = vunpack.c.l.s4 1983009808
      %v1731 = vunpack.c.0.s8 %v1730
      %v1732 = vlaneseq
      %v1733 = vshrl.u32 %v1732, 7
      %v1734 = vsub.s32 %v1731, %v1733
      %v1735 = vrot.slane %v1719, %v1734
      %v1736 = vcombine.low %v1728, %v1728
      %v1737 = vcombine.low %v1735, %v1735
      %1738 = vrot.lane.b32.xlu0 %v1736, 14
      %v1739 = vpop.permute.xlu0 %1738
      %1740 = vrot.lane.b32.xlu0 %v1728, 14
      %v1741 = vpop.permute.xlu0 %1740
      %1742 = vrot.lane.b32.xlu0 %v1737, 14
      %v1743 = vpop.permute.xlu0 %1742
      %1744 = vrot.lane.b32.xlu0 %v1735, 14
      %v1745 = vpop.permute.xlu0 %1744
      %vm1746 = vcmask 113664
      %v1747 = vsel %vm1746, %v1739, %v1741
      %v1748 = vsel %vm1746, %v1741, %v1743
      %v1749 = vsel %vm1746, %v1743, %v1745
      %1753 = vst [vmem:[#allocation2 + $0xd8] sm:$0xc0] %v1747
      %1754 = vst [vmem:[#allocation2 + $0xe0] sm:$0xc0] %v1748
      %1755 = vst [vmem:[#allocation2 + $0xe8] sm:$0xc0] %v1749
      %v1756 = vld [vmem:[%s265] sm:$0xff]
      %v1758 = vcombine.high %v1756, %v1756
      %v1760 = vunpack.c.l.s4 1983009808
      %v1761 = vunpack.c.0.s8 %v1760
      %v1762 = vlaneseq
      %v1763 = vshrl.u32 %v1762, 7
      %v1764 = vsub.s32 %v1761, %v1763
      %v1765 = vrot.slane %v1756, %v1764
      %v1767 = vunpack.c.l.s4 1983009808
      %v1768 = vunpack.c.0.s8 %v1767
      %v1769 = vlaneseq
      %v1770 = vshrl.u32 %v1769, 7
      %v1771 = vsub.s32 %v1768, %v1770
      %v1772 = vrot.slane %v1758, %v1771
      %v1773 = vcombine.high %v1765, %v1765
      %v1774 = vcombine.high %v1772, %v1772
      %1775 = vrot.lane.b32.xlu0 %v1765, 13
      %v1776 = vpop.permute.xlu0 %1775
      %1777 = vrot.lane.b32.xlu0 %v1773, 13
      %v1778 = vpop.permute.xlu0 %1777
      %1779 = vrot.lane.b32.xlu0 %v1772, 13
      %v1780 = vpop.permute.xlu0 %1779
      %1781 = vrot.lane.b32.xlu0 %v1774, 13
      %v1782 = vpop.permute.xlu0 %1781
      %vm1783 = vcmask 105472
      %v1784 = vsel %vm1783, %v1776, %v1778
      %v1785 = vsel %vm1783, %v1778, %v1780
      %v1786 = vsel %vm1783, %v1780, %v1782
      %1790 = vst [vmem:[#allocation2 + $0xf0] sm:$0x3] %v1784
      %1791 = vst [vmem:[#allocation2 + $0xf8] sm:$0x3] %v1785
      %1792 = vst [vmem:[#allocation2 + $0x100] sm:$0x3] %v1786
      %v1793 = vld [vmem:[%s265] sm:$0xff]
      %v1795 = vcombine.low %v1793, %v1793
      %v1797 = vunpack.c.l.s4 1983009808
      %v1798 = vunpack.c.0.s8 %v1797
      %v1799 = vlaneseq
      %v1800 = vshrl.u32 %v1799, 7
      %v1801 = vsub.s32 %v1798, %v1800
      %v1802 = vrot.slane %v1795, %v1801
      %v1804 = vunpack.c.l.s4 1983009808
      %v1805 = vunpack.c.0.s8 %v1804
      %v1806 = vlaneseq
      %v1807 = vshrl.u32 %v1806, 7
      %v1808 = vsub.s32 %v1805, %v1807
      %v1809 = vrot.slane %v1793, %v1808
      %v1810 = vcombine.high %v1802, %v1802
      %v1811 = vcombine.high %v1809, %v1809
      %1812 = vrot.lane.b32.xlu0 %v1802, 12
      %v1813 = vpop.permute.xlu0 %1812
      %1814 = vrot.lane.b32.xlu0 %v1810, 12
      %v1815 = vpop.permute.xlu0 %1814
      %1816 = vrot.lane.b32.xlu0 %v1809, 12
      %v1817 = vpop.permute.xlu0 %1816
      %1818 = vrot.lane.b32.xlu0 %v1811, 12
      %v1819 = vpop.permute.xlu0 %1818
      %vm1820 = vcmask 97280
      %v1821 = vsel %vm1820, %v1813, %v1815
      %v1822 = vsel %vm1820, %v1815, %v1817
      %v1823 = vsel %vm1820, %v1817, %v1819
      %1827 = vst [vmem:[#allocation2 + $0xf0] sm:$0xc] %v1821
      %1828 = vst [vmem:[#allocation2 + $0xf8] sm:$0xc] %v1822
      %1829 = vst [vmem:[#allocation2 + $0x100] sm:$0xc] %v1823
      %v1830 = vld [vmem:[%s265 + $0x2] sm:$0xff]
      %v1832 = vcombine.high %v1830, %v1830
      %v1834 = vunpack.c.l.s4 1983009808
      %v1835 = vunpack.c.0.s8 %v1834
      %v1836 = vlaneseq
      %v1837 = vshrl.u32 %v1836, 7
      %v1838 = vsub.s32 %v1835, %v1837
      %v1839 = vrot.slane %v1830, %v1838
      %v1841 = vunpack.c.l.s4 1983009808
      %v1842 = vunpack.c.0.s8 %v1841
      %v1843 = vlaneseq
      %v1844 = vshrl.u32 %v1843, 7
      %v1845 = vsub.s32 %v1842, %v1844
      %v1846 = vrot.slane %v1832, %v1845
      %v1847 = vcombine.low %v1839, %v1839
      %v1848 = vcombine.low %v1846, %v1846
      %1849 = vrot.lane.b32.xlu0 %v1847, 124
      %v1850 = vpop.permute.xlu0 %1849
      %1851 = vrot.lane.b32.xlu0 %v1839, 124
      %v1852 = vpop.permute.xlu0 %1851
      %1853 = vrot.lane.b32.xlu0 %v1848, 124
      %v1854 = vpop.permute.xlu0 %1853
      %1855 = vrot.lane.b32.xlu0 %v1846, 124
      %v1856 = vpop.permute.xlu0 %1855
      %v1857 = vsel %vm451, %v1850, %v1852
      %v1858 = vsel %vm451, %v1852, %v1854
      %v1859 = vsel %vm451, %v1854, %v1856
      %1863 = vst [vmem:[#allocation2 + $0xf0] sm:$0x30] %v1857
      %1864 = vst [vmem:[#allocation2 + $0xf8] sm:$0x30] %v1858
      %1865 = vst [vmem:[#allocation2 + $0x100] sm:$0x30] %v1859
      %v1866 = vld [vmem:[%s265 + $0x2] sm:$0xff]
      %v1868 = vcombine.low %v1866, %v1866
      %v1870 = vunpack.c.l.s4 1983009808
      %v1871 = vunpack.c.0.s8 %v1870
      %v1872 = vlaneseq
      %v1873 = vshrl.u32 %v1872, 7
      %v1874 = vsub.s32 %v1871, %v1873
      %v1875 = vrot.slane %v1868, %v1874
      %v1877 = vunpack.c.l.s4 1983009808
      %v1878 = vunpack.c.0.s8 %v1877
      %v1879 = vlaneseq
      %v1880 = vshrl.u32 %v1879, 7
      %v1881 = vsub.s32 %v1878, %v1880
      %v1882 = vrot.slane %v1866, %v1881
      %v1883 = vcombine.low %v1875, %v1875
      %v1884 = vcombine.low %v1882, %v1882
      %1885 = vrot.lane.b32.xlu0 %v1883, 123
      %v1886 = vpop.permute.xlu0 %1885
      %1887 = vrot.lane.b32.xlu0 %v1875, 123
      %v1888 = vpop.permute.xlu0 %1887
      %1889 = vrot.lane.b32.xlu0 %v1884, 123
      %v1890 = vpop.permute.xlu0 %1889
      %1891 = vrot.lane.b32.xlu0 %v1882, 123
      %v1892 = vpop.permute.xlu0 %1891
      %v1893 = vsel %vm488, %v1886, %v1888
      %v1894 = vsel %vm488, %v1888, %v1890
      %v1895 = vsel %vm488, %v1890, %v1892
      %1899 = vst [vmem:[#allocation2 + $0xf0] sm:$0xc0] %v1893
      %1900 = vst [vmem:[#allocation2 + $0xf8] sm:$0xc0] %v1894
      %1901 = vst [vmem:[#allocation2 + $0x100] sm:$0xc0] %v1895
      %v1902 = vld [vmem:[%s265 + $0x2] sm:$0xff]
      %v1904 = vcombine.high %v1902, %v1902
      %v1906 = vunpack.c.l.s4 1983009808
      %v1907 = vunpack.c.0.s8 %v1906
      %v1908 = vlaneseq
      %v1909 = vshrl.u32 %v1908, 7
      %v1910 = vsub.s32 %v1907, %v1909
      %v1911 = vrot.slane %v1902, %v1910
      %v1913 = vunpack.c.l.s4 1983009808
      %v1914 = vunpack.c.0.s8 %v1913
      %v1915 = vlaneseq
      %v1916 = vshrl.u32 %v1915, 7
      %v1917 = vsub.s32 %v1914, %v1916
      %v1918 = vrot.slane %v1904, %v1917
      %v1919 = vcombine.high %v1911, %v1911
      %v1920 = vcombine.high %v1918, %v1918
      %1921 = vrot.lane.b32.xlu0 %v1911, 122
      %v1922 = vpop.permute.xlu0 %1921
      %1923 = vrot.lane.b32.xlu0 %v1919, 122
      %v1924 = vpop.permute.xlu0 %1923
      %1925 = vrot.lane.b32.xlu0 %v1918, 122
      %v1926 = vpop.permute.xlu0 %1925
      %1927 = vrot.lane.b32.xlu0 %v1920, 122
      %v1928 = vpop.permute.xlu0 %1927
      %v1929 = vsel %vm525, %v1922, %v1924
      %v1930 = vsel %vm525, %v1924, %v1926
      %v1931 = vsel %vm525, %v1926, %v1928
      %1935 = vst [vmem:[#allocation2 + $0x108] sm:$0x3] %v1929
      %1936 = vst [vmem:[#allocation2 + $0x110] sm:$0x3] %v1930
      %1937 = vst [vmem:[#allocation2 + $0x118] sm:$0x3] %v1931
      %v1938 = vld [vmem:[%s265 + $0x2] sm:$0xff]
      %v1940 = vcombine.low %v1938, %v1938
      %v1942 = vunpack.c.l.s4 1983009808
      %v1943 = vunpack.c.0.s8 %v1942
      %v1944 = vlaneseq
      %v1945 = vshrl.u32 %v1944, 7
      %v1946 = vsub.s32 %v1943, %v1945
      %v1947 = vrot.slane %v1940, %v1946
      %v1949 = vunpack.c.l.s4 1983009808
      %v1950 = vunpack.c.0.s8 %v1949
      %v1951 = vlaneseq
      %v1952 = vshrl.u32 %v1951, 7
      %v1953 = vsub.s32 %v1950, %v1952
      %v1954 = vrot.slane %v1938, %v1953
      %v1955 = vcombine.high %v1947, %v1947
      %v1956 = vcombine.high %v1954, %v1954
      %1957 = vrot.lane.b32.xlu0 %v1947, 121
      %v1958 = vpop.permute.xlu0 %1957
      %1959 = vrot.lane.b32.xlu0 %v1955, 121
      %v1960 = vpop.permute.xlu0 %1959
      %1961 = vrot.lane.b32.xlu0 %v1954, 121
      %v1962 = vpop.permute.xlu0 %1961
      %1963 = vrot.lane.b32.xlu0 %v1956, 121
      %v1964 = vpop.permute.xlu0 %1963
      %vm1965 = vcmask 990208
      %v1966 = vsel %vm1965, %v1958, %v1960
      %v1967 = vsel %vm1965, %v1960, %v1962
      %v1968 = vsel %vm1965, %v1962, %v1964
      %1972 = vst [vmem:[#allocation2 + $0x108] sm:$0xc] %v1966
      %1973 = vst [vmem:[#allocation2 + $0x110] sm:$0xc] %v1967
      %1974 = vst [vmem:[#allocation2 + $0x118] sm:$0xc] %v1968
      %v1975 = vld [vmem:[%s265 + $0x2] sm:$0xff]
      %v1977 = vcombine.high %v1975, %v1975
      %v1979 = vunpack.c.l.s4 1983009808
      %v1980 = vunpack.c.0.s8 %v1979
      %v1981 = vlaneseq
      %v1982 = vshrl.u32 %v1981, 7
      %v1983 = vsub.s32 %v1980, %v1982
      %v1984 = vrot.slane %v1975, %v1983
      %v1986 = vunpack.c.l.s4 1983009808
      %v1987 = vunpack.c.0.s8 %v1986
      %v1988 = vlaneseq
      %v1989 = vshrl.u32 %v1988, 7
      %v1990 = vsub.s32 %v1987, %v1989
      %v1991 = vrot.slane %v1977, %v1990
      %v1992 = vcombine.low %v1984, %v1984
      %v1993 = vcombine.low %v1991, %v1991
      %1994 = vrot.lane.b32.xlu0 %v1992, 120
      %v1995 = vpop.permute.xlu0 %1994
      %1996 = vrot.lane.b32.xlu0 %v1984, 120
      %v1997 = vpop.permute.xlu0 %1996
      %1998 = vrot.lane.b32.xlu0 %v1993, 120
      %v1999 = vpop.permute.xlu0 %1998
      %2000 = vrot.lane.b32.xlu0 %v1991, 120
      %v2001 = vpop.permute.xlu0 %2000
      %vm2002 = vcmask 982016
      %v2003 = vsel %vm2002, %v1995, %v1997
      %v2004 = vsel %vm2002, %v1997, %v1999
      %v2005 = vsel %vm2002, %v1999, %v2001
      %2009 = vst [vmem:[#allocation2 + $0x108] sm:$0x30] %v2003
      %2010 = vst [vmem:[#allocation2 + $0x110] sm:$0x30] %v2004
      %2011 = vst [vmem:[#allocation2 + $0x118] sm:$0x30] %v2005
      %v2012 = vld [vmem:[%s265 + $0x2] sm:$0xff]
      %v2014 = vcombine.low %v2012, %v2012
      %v2016 = vunpack.c.l.s4 1983009808
      %v2017 = vunpack.c.0.s8 %v2016
      %v2018 = vlaneseq
      %v2019 = vshrl.u32 %v2018, 7
      %v2020 = vsub.s32 %v2017, %v2019
      %v2021 = vrot.slane %v2014, %v2020
      %v2023 = vunpack.c.l.s4 1983009808
      %v2024 = vunpack.c.0.s8 %v2023
      %v2025 = vlaneseq
      %v2026 = vshrl.u32 %v2025, 7
      %v2027 = vsub.s32 %v2024, %v2026
      %v2028 = vrot.slane %v2012, %v2027
      %v2029 = vcombine.low %v2021, %v2021
      %v2030 = vcombine.low %v2028, %v2028
      %2031 = vrot.lane.b32.xlu0 %v2029, 119
      %v2032 = vpop.permute.xlu0 %2031
      %2033 = vrot.lane.b32.xlu0 %v2021, 119
      %v2034 = vpop.permute.xlu0 %2033
      %2035 = vrot.lane.b32.xlu0 %v2030, 119
      %v2036 = vpop.permute.xlu0 %2035
      %2037 = vrot.lane.b32.xlu0 %v2028, 119
      %v2038 = vpop.permute.xlu0 %2037
      %vm2039 = vcmask 973824
      %v2040 = vsel %vm2039, %v2032, %v2034
      %v2041 = vsel %vm2039, %v2034, %v2036
      %v2042 = vsel %vm2039, %v2036, %v2038
      %2046 = vst [vmem:[#allocation2 + $0x108] sm:$0xc0] %v2040
      %2047 = vst [vmem:[#allocation2 + $0x110] sm:$0xc0] %v2041
      %2048 = vst [vmem:[#allocation2 + $0x118] sm:$0xc0] %v2042
      %v2049 = vld [vmem:[%s265 + $0x2] sm:$0xff]
      %v2051 = vcombine.high %v2049, %v2049
      %v2053 = vunpack.c.l.s4 1983009808
      %v2054 = vunpack.c.0.s8 %v2053
      %v2055 = vlaneseq
      %v2056 = vshrl.u32 %v2055, 7
      %v2057 = vsub.s32 %v2054, %v2056
      %v2058 = vrot.slane %v2049, %v2057
      %v2060 = vunpack.c.l.s4 1983009808
      %v2061 = vunpack.c.0.s8 %v2060
      %v2062 = vlaneseq
      %v2063 = vshrl.u32 %v2062, 7
      %v2064 = vsub.s32 %v2061, %v2063
      %v2065 = vrot.slane %v2051, %v2064
      %v2066 = vcombine.high %v2058, %v2058
      %v2067 = vcombine.high %v2065, %v2065
      %2068 = vrot.lane.b32.xlu0 %v2058, 118
      %v2069 = vpop.permute.xlu0 %2068
      %2070 = vrot.lane.b32.xlu0 %v2066, 118
      %v2071 = vpop.permute.xlu0 %2070
      %2072 = vrot.lane.b32.xlu0 %v2065, 118
      %v2073 = vpop.permute.xlu0 %2072
      %2074 = vrot.lane.b32.xlu0 %v2067, 118
      %v2075 = vpop.permute.xlu0 %2074
      %vm2076 = vcmask 965632
      %v2077 = vsel %vm2076, %v2069, %v2071
      %v2078 = vsel %vm2076, %v2071, %v2073
      %v2079 = vsel %vm2076, %v2073, %v2075
      %2083 = vst [vmem:[#allocation2 + $0x120] sm:$0x3] %v2077
      %2084 = vst [vmem:[#allocation2 + $0x128] sm:$0x3] %v2078
      %2085 = vst [vmem:[#allocation2 + $0x130] sm:$0x3] %v2079
      %2086 = vst [vmem:[#allocation2 + $0x120] sm:$0xfc] 0
      %2087 = vst [vmem:[#allocation2 + $0x128] sm:$0xfc] 0
      %2088 = vst [vmem:[#allocation2 + $0x130] sm:$0xfc] 0
      %2089 = vst [vmem:[#allocation2 + $0x138] sm:$0xff] 0
      %2090 = vst [vmem:[#allocation2 + $0x140] sm:$0xff] 0
      %2091 = vst [vmem:[#allocation2 + $0x148] sm:$0xff] 0
      %2092 = vst [vmem:[#allocation2 + $0x150] sm:$0xff] 0
      %2093 = vst [vmem:[#allocation2 + $0x158] sm:$0xff] 0
      %2094 = vst [vmem:[#allocation2 + $0x160] sm:$0xff] 0
      %2095 = vst [vmem:[#allocation2 + $0x168] sm:$0xff] 0
      %2096 = vst [vmem:[#allocation2 + $0x170] sm:$0xff] 0
      %2097 = vst [vmem:[#allocation2 + $0x178] sm:$0xff] 0
      %v2098 = vld [vmem:[%s270] sm:$0xff]
      %v2099 = vld [vmem:[#allocation2] sm:$0xff]
      %v2100 = vld [vmem:[#allocation2 + $0x8] sm:$0xff]
      %v2101 = vld [vmem:[#allocation2 + $0x10] sm:$0xff]
      %v2102 = vld [vmem:[#allocation2 + $0x18] sm:$0xff]
      %v2103 = vld [vmem:[#allocation2 + $0x20] sm:$0xff]
      %v2104 = vld [vmem:[#allocation2 + $0x28] sm:$0xff]
      %v2105 = vld [vmem:[#allocation2 + $0x30] sm:$0xff]
      %v2106 = vld [vmem:[#allocation2 + $0x38] sm:$0xff]
      %v2107 = vld [vmem:[#allocation2 + $0x40] sm:$0xff]
      %v2108 = vld [vmem:[#allocation2 + $0x48] sm:$0xff]
      %v2109 = vld [vmem:[#allocation2 + $0x50] sm:$0xff]
      %v2110 = vld [vmem:[#allocation2 + $0x58] sm:$0xff]
      %v2111 = vld [vmem:[#allocation2 + $0x60] sm:$0xff]
      %v2112 = vld [vmem:[#allocation2 + $0x68] sm:$0xff]
      %v2113 = vld [vmem:[#allocation2 + $0x70] sm:$0xff]
      %v2114 = vld [vmem:[#allocation2 + $0x78] sm:$0xff]
      %v2115 = vld [vmem:[#allocation2 + $0x80] sm:$0xff]
      %v2116 = vld [vmem:[#allocation2 + $0x88] sm:$0xff]
      %v2117 = vld [vmem:[#allocation2 + $0x90] sm:$0xff]
      %v2118 = vld [vmem:[#allocation2 + $0x98] sm:$0xff]
      %v2119 = vld [vmem:[#allocation2 + $0xa0] sm:$0xff]
      %v2120 = vld [vmem:[#allocation2 + $0xa8] sm:$0xff]
      %v2121 = vld [vmem:[#allocation2 + $0xb0] sm:$0xff]
      %v2122 = vld [vmem:[#allocation2 + $0xb8] sm:$0xff]
      %v2123 = vld [vmem:[#allocation2 + $0xc0] sm:$0xff]
      %v2124 = vld [vmem:[#allocation2 + $0xc8] sm:$0xff]
      %v2125 = vld [vmem:[#allocation2 + $0xd0] sm:$0xff]
      %v2126 = vld [vmem:[#allocation2 + $0xd8] sm:$0xff]
      %v2127 = vld [vmem:[#allocation2 + $0xe0] sm:$0xff]
      %v2128 = vld [vmem:[#allocation2 + $0xe8] sm:$0xff]
      %v2129 = vld [vmem:[#allocation2 + $0xf0] sm:$0xff]
      %v2130 = vld [vmem:[#allocation2 + $0xf8] sm:$0xff]
      %v2131 = vld [vmem:[#allocation2 + $0x100] sm:$0xff]
      %v2132 = vld [vmem:[#allocation2 + $0x108] sm:$0xff]
      %v2133 = vld [vmem:[#allocation2 + $0x110] sm:$0xff]
      %v2134 = vld [vmem:[#allocation2 + $0x118] sm:$0xff]
      %v2135 = vld [vmem:[#allocation2 + $0x120] sm:$0xff]
      %v2136 = vld [vmem:[#allocation2 + $0x128] sm:$0xff]
      %v2137 = vld [vmem:[#allocation2 + $0x130] sm:$0xff]
      %v2138 = vld [vmem:[#allocation2 + $0x138] sm:$0xff]
      %v2139 = vld [vmem:[#allocation2 + $0x140] sm:$0xff]
      %v2140 = vld [vmem:[#allocation2 + $0x148] sm:$0xff]
      %v2141 = vld [vmem:[#allocation2 + $0x150] sm:$0xff]
      %v2142 = vld [vmem:[#allocation2 + $0x158] sm:$0xff]
      %v2143 = vld [vmem:[#allocation2 + $0x160] sm:$0xff]
      %v2144 = vld [vmem:[#allocation2 + $0x168] sm:$0xff]
      %v2145 = vld [vmem:[#allocation2 + $0x170] sm:$0xff]
      %v2146 = vld [vmem:[#allocation2 + $0x178] sm:$0xff]
      %v2148 = vunpack.c.l.b16 %v2098
      %v2149 = vunpack.c.h.b16 %v2098
      %v2150 = vpack.c.b16 %v2148, %v2148
      %v2151 = vpack.c.b16 %v2149, %v2149
      %2154 = vmatprep.subr.bf16.mxu0 %v2100
      %2155 = vmatpush1.bf16.msra.mxu0 %v2099
      %2156 = vmatprep.subr.bf16.mxu0 %v2103
      %2157 = vmatpush1.bf16.msra.mxu0 %v2102
      %2158 = vmatprep.subr.bf16.mxu0 %v2106
      %2159 = vmatpush1.bf16.msra.mxu0 %v2105
      %2160 = vmatprep.subr.bf16.mxu0 %v2109
      %2161 = vmatpush1.bf16.msra.mxu0 %v2108
      %2162 = vmatprep.subr.bf16.mxu0 %v2112
      %2163 = vmatpush1.bf16.msra.mxu0 %v2111
      %2164 = vmatprep.subr.bf16.mxu0 %v2115
      %2165 = vmatpush1.bf16.msra.mxu0 %v2114
      %2166 = vmatprep.subr.bf16.mxu0 %v2118
      %2167 = vmatpush1.bf16.msra.mxu0 %v2117
      %2168 = vmatprep.subr.bf16.mxu0 %v2121
      %2169 = vmatpush1.bf16.msra.mxu0 %v2120
      %2170 = vmatprep.subr.bf16.mxu0 %v2124
      %2171 = vmatpush1.bf16.msra.mxu0 %v2123
      %2172 = vmatprep.subr.bf16.mxu0 %v2127
      %2173 = vmatpush1.bf16.msra.mxu0 %v2126
      %2174 = vmatprep.subr.bf16.mxu0 %v2130
      %2175 = vmatpush1.bf16.msra.mxu0 %v2129
      %2176 = vmatprep.subr.bf16.mxu0 %v2133
      %2177 = vmatpush1.bf16.msra.mxu0 %v2132
      %2178 = vmatprep.subr.bf16.mxu0 %v2136
      %2179 = vmatpush1.bf16.msra.mxu0 %v2135
      %2180 = vmatprep.subr.bf16.mxu0 %v2139
      %2181 = vmatpush1.bf16.msra.mxu0 %v2138
      %2182 = vmatprep.subr.bf16.mxu0 %v2142
      %2183 = vmatpush1.bf16.msra.mxu0 %v2141
      %2184 = vmatprep.subr.bf16.mxu0 %v2145
      %2185 = vmatpush1.bf16.msra.mxu0 %v2144
      %2186 = vmatprep.mubr.bf16.mxu0 %v2151
      %2187 = vmatmul.mubr.bf16.gmra.mrb[0].mxu0 %v2150
      %v2188 = vpop.f32.mrb[0].mxu0
      %v2189 = vadd.f32 0.0, %v2188
      %v2190 = vpop.f32.mrb[0].mxu0
      %v2191 = vadd.f32 0.0, %v2190
      %v2192 = vpop.f32.mrb[0].mxu0
      %v2193 = vpop.f32.mrb[0].mxu0
      %2194 = vdwg.mxu0
      %2195 = vmatprep.subr.bf16.mxu0 0
      %2196 = vmatpush1.bf16.msra.mxu0 %v2101
      %2197 = vmatprep.subr.bf16.mxu0 0
      %2198 = vmatpush1.bf16.msra.mxu0 %v2104
      %2199 = vmatprep.subr.bf16.mxu0 0
      %2200 = vmatpush1.bf16.msra.mxu0 %v2107
      %2201 = vmatprep.subr.bf16.mxu0 0
      %2202 = vmatpush1.bf16.msra.mxu0 %v2110
      %2203 = vmatprep.subr.bf16.mxu0 0
      %2204 = vmatpush1.bf16.msra.mxu0 %v2113
      %2205 = vmatprep.subr.bf16.mxu0 0
      %2206 = vmatpush1.bf16.msra.mxu0 %v2116
      %2207 = vmatprep.subr.bf16.mxu0 0
      %2208 = vmatpush1.bf16.msra.mxu0 %v2119
      %2209 = vmatprep.subr.bf16.mxu0 0
      %2210 = vmatpush1.bf16.msra.mxu0 %v2122
      %2211 = vmatprep.subr.bf16.mxu0 0
      %2212 = vmatpush1.bf16.msra.mxu0 %v2125
      %2213 = vmatprep.subr.bf16.mxu0 0
      %2214 = vmatpush1.bf16.msra.mxu0 %v2128
      %2215 = vmatprep.subr.bf16.mxu0 0
      %2216 = vmatpush1.bf16.msra.mxu0 %v2131
      %2217 = vmatprep.subr.bf16.mxu0 0
      %2218 = vmatpush1.bf16.msra.mxu0 %v2134
      %2219 = vmatprep.subr.bf16.mxu0 0
      %2220 = vmatpush1.bf16.msra.mxu0 %v2137
      %2221 = vmatprep.subr.bf16.mxu0 0
      %2222 = vmatpush1.bf16.msra.mxu0 %v2140
      %2223 = vmatprep.subr.bf16.mxu0 0
      %2224 = vmatpush1.bf16.msra.mxu0 %v2143
      %2225 = vmatprep.subr.bf16.mxu0 0
      %2226 = vmatpush1.bf16.msra.mxu0 %v2146
      %2227 = vmatprep.mubr.bf16.mxu0 %v2151
      %2228 = vmatmul.mubr.bf16.gmra.mrb[0].mxu0 %v2150
      %v2229 = vpop.f32.mrb[0].mxu0
      %v2230 = vadd.f32 0.0, %v2229
      %v2231 = vpop.f32.mrb[0].mxu0
      %v2232 = vpop.f32.mrb[0].mxu0
      %v2233 = vpop.f32.mrb[0].mxu0
      %2234 = vdwg.mxu0
      %v2235 = vld [vmem:[%s274] sm:$0xff]
      %2237 = vset.pattern.permute.xlu0 0
      %2238 = vperm.xlu0 %2237, %v2235
      %v2239 = vpop.permute.xlu0 %2238
      %v2241 = vmul.f32 %v2189, %v2239
      %v2242 = vmul.f32 %v2191, %v2239
      %v2243 = vmul.f32 %v2230, %v2239
      %v2244 = vld [vmem:[%s278] sm:$0xff]
      %2246 = vset.pattern.permute.xlu0 0
      %2247 = vperm.xlu0 %2246, %v2244
      %v2248 = vpop.permute.xlu0 %2247
      %v2250 = vadd.f32 %v2241, %v2248
      %v2251 = vadd.f32 %v2242, %v2248
      %v2252 = vadd.f32 %v2243, %v2248
      %v2253 = vmax.f32 %v2250, 0.0
      %v2254 = vmax.f32 %v2251, 0.0
      %v2255 = vmax.f32 %v2252, 0.0
      %v2256 = vpack.c.bf16 %v2253, %v2253
      %v2257 = vpack.c.bf16 %v2254, %v2254
      %v2258 = vpack.c.bf16 %v2255, %v2255
      %v2262 = vunpack.c.l.b16 %v2256
      %v2263 = vunpack.c.l.b16 %v2257
      %v2264 = vunpack.c.l.b16 %v2258
      %v2265 = vpack.c.b16 %v2263, %v2262
      %v2266 = vpack.c.b16 %v2264, %v2264
      %2269 = vst [vmem:[%s287] sm:$0xff] %v2265
      %2270 = vst [vmem:[%s287 + $0x8] sm:$0xf] %v2266
      %p2271 = scmp.lt.s32.totalorder %s20, 1
      %s2272 = scalar_select %p2271, %s20, 1
      %p2273 = scmp.lt.s32.totalorder %s19, 3
      %s2274 = scalar_select %p2273, %s19, 3
      %s2275 = smul.addr %s2274, 3
      %s2276 = smul.addr %s2272, 12
      %s2277 = sadd.s32 %s2275, %s2276
      %s2278 = smul.addr %s2277, 4
      %s2279 = scalar_lea.vmem %s4, %s2278
      // Predicated region
      $region37: #{offset_convolution_forward.2} parent=35 // pred_check
        %p2280 = pneg %p153
      $region38: #{offset_convolution_forward.2} parent=35 // pred_check_branch
        %2282 = sbr.rel (%p2280) target = $region40
      $region39: #{offset_convolution_forward.2} parent=35 // pred_region
        _
      $region40: #{offset_convolution_forward.2} parent=35 // pred_fallthru
        _
    $region36: #{offset_convolution_forward.2} parent=5 // pred_fallthru
      _
    %p2283 = scmp.le.s32.totalorder 2, %s10
    // Predicated region
    $region41: #{offset_convolution_forward.2} parent=5 // pred_check
      %p2284 = pneg %p2283
    $region42: #{offset_convolution_forward.2} parent=5 // pred_check_branch
      %2286 = sbr.rel (%p2284) target = $region44
    $region43: #{offset_convolution_forward.2} parent=5 // pred_region
      %s2287 = ssub.s32 %s10, 2
      // Predicated region
      $region45: #{offset_convolution_forward.2} parent=43 // pred_check
        %p2288 = pneg %p159
      $region46: #{offset_convolution_forward.2} parent=43 // pred_check_branch
        %2290 = sbr.rel (%p2288) target = $region48
      $region47: #{offset_convolution_forward.2} parent=43 // pred_region
        %p2291 = scmp.lt.s32.totalorder %s22, 1
        %s2292 = scalar_select %p2291, %s22, 1
        %p2293 = scmp.lt.s32.totalorder %s21, 3
        %s2294 = scalar_select %p2293, %s21, 3
        %s2295 = smul.addr %s2294, 3
        %s2296 = smul.addr %s2292, 12
        %s2297 = sadd.s32 %s2295, %s2296
        %s2298 = smul.addr %s2297, 4
        %s2299 = scalar_lea.vmem %s4, %s2298
      $region48: #{offset_convolution_forward.2} parent=43 // pred_fallthru
        _
    $region44: #{offset_convolution_forward.2} parent=5 // pred_fallthru
      _
  $region6: #{offset_convolution_forward.2} parent=0 // loop_footer
    %s14 = sadd.s32 1, %s10
  $region7: #{offset_convolution_forward.2} parent=0 // loop_footer_branch
    %9 = sbr.rel target = $region3
  $region8: #{offset_convolution_forward.2} parent=0 // loop_exit
    _

// kernel: squeeze.1
$region0: #{squeeze.1}
  %s0 = inlined_call_operand.vmem [shape: f32[2,1,8,288], index: 0, kind: input, shape index: {}]
  %s1 = inlined_call_operand.vmem [shape: f32[2,8,16,18], index: 1, kind: output, shape index: {}]
  %v2 = vld [vmem:[%s0] sm:$0xff]
  %vm3 = vcmask 146432
  %4 = vst.msk [vmem:[%s1] ss:$16 sm:$0x3] %vm3, %v2
  %5 = vst.msk [vmem:[%s1] ss:$16 sm:$0xc] %vm3, %v2
  %6 = vst.msk [vmem:[%s1] ss:$16 sm:$0x30] %vm3, %v2
  %7 = vst.msk [vmem:[%s1] ss:$16 sm:$0xc0] %vm3, %v2
  %s8 = scalar_lea.vmem %s0, 24
  %v9 = vld [vmem:[%s8] sm:$0xff]
  %vm10 = vcmask 146432
  %s11 = scalar_lea.vmem %s1, 128
  %12 = vst.msk [vmem:[%s11] ss:$16 sm:$0x3] %vm10, %v9
  %s13 = scalar_lea.vmem %s1, 128
  %14 = vst.msk [vmem:[%s13] ss:$16 sm:$0xc] %vm10, %v9
  %s15 = scalar_lea.vmem %s1, 128
  %16 = vst.msk [vmem:[%s15] ss:$16 sm:$0x30] %vm10, %v9
  %s17 = scalar_lea.vmem %s1, 128
  %18 = vst.msk [vmem:[%s17] ss:$16 sm:$0xc0] %vm10, %v9
  %s19 = scalar_lea.vmem %s0, 16
  %v20 = vld [vmem:[%s19] sm:$0xff]
  %21 = vrot.lane.b32.xlu0 %v20, 114
  %v22 = vpop.permute.xlu0 %21
  %vm23 = vcmask 146432
  %s24 = scalar_lea.vmem %s1, 15
  %25 = vst.msk [vmem:[%s24] ss:$16 sm:$0x3] %vm23, %v22
  %s26 = scalar_lea.vmem %s1, 15
  %27 = vst.msk [vmem:[%s26] ss:$16 sm:$0xc] %vm23, %v22
  %s28 = scalar_lea.vmem %s1, 15
  %29 = vst.msk [vmem:[%s28] ss:$16 sm:$0x30] %vm23, %v22
  %s30 = scalar_lea.vmem %s1, 15
  %31 = vst.msk [vmem:[%s30] ss:$16 sm:$0xc0] %vm23, %v22
  %s32 = scalar_lea.vmem %s0, 40
  %v33 = vld [vmem:[%s32] sm:$0xff]
  %34 = vrot.lane.b32.xlu0 %v33, 114
  %v35 = vpop.permute.xlu0 %34
  %vm36 = vcmask 146432
  %s37 = scalar_lea.vmem %s1, 143
  %38 = vst.msk [vmem:[%s37] ss:$16 sm:$0x3] %vm36, %v35
  %s39 = scalar_lea.vmem %s1, 143
  %40 = vst.msk [vmem:[%s39] ss:$16 sm:$0xc] %vm36, %v35
  %s41 = scalar_lea.vmem %s1, 143
  %42 = vst.msk [vmem:[%s41] ss:$16 sm:$0x30] %vm36, %v35
  %s43 = scalar_lea.vmem %s1, 143
  %44 = vst.msk [vmem:[%s43] ss:$16 sm:$0xc0] %vm36, %v35
  %s45 = scalar_lea.vmem %s0, 8
  %v46 = vld [vmem:[%s45] sm:$0xff]
  %47 = vrot.lane.b32.xlu0 %v46, 112
  %v48 = vpop.permute.xlu0 %47
  %vm49 = vcmask 146432
  %s50 = scalar_lea.vmem %s1, 8
  %51 = vst.msk [vmem:[%s50] ss:$16 sm:$0x3] %vm49, %v48
  %s52 = scalar_lea.vmem %s1, 8
  %53 = vst.msk [vmem:[%s52] ss:$16 sm:$0xc] %vm49, %v48
  %s54 = scalar_lea.vmem %s1, 8
  %55 = vst.msk [vmem:[%s54] ss:$16 sm:$0x30] %vm49, %v48
  %s56 = scalar_lea.vmem %s1, 8
  %57 = vst.msk [vmem:[%s56] ss:$16 sm:$0xc0] %vm49, %v48
  %s58 = scalar_lea.vmem %s0, 32
  %v59 = vld [vmem:[%s58] sm:$0xff]
  %60 = vrot.lane.b32.xlu0 %v59, 112
  %v61 = vpop.permute.xlu0 %60
  %vm62 = vcmask 146432
  %s63 = scalar_lea.vmem %s1, 136
  %64 = vst.msk [vmem:[%s63] ss:$16 sm:$0x3] %vm62, %v61
  %s65 = scalar_lea.vmem %s1, 136
  %66 = vst.msk [vmem:[%s65] ss:$16 sm:$0xc] %vm62, %v61
  %s67 = scalar_lea.vmem %s1, 136
  %68 = vst.msk [vmem:[%s67] ss:$16 sm:$0x30] %vm62, %v61
  %s69 = scalar_lea.vmem %s1, 136
  %70 = vst.msk [vmem:[%s69] ss:$16 sm:$0xc0] %vm62, %v61
  %v71 = vld [vmem:[%s0] sm:$0xff]
  %72 = vrot.lane.b32.xlu0 %v71, 110
  %v73 = vpop.permute.xlu0 %72
  %vm74 = vcmask 146432
  %s75 = scalar_lea.vmem %s1, 1
  %76 = vst.msk [vmem:[%s75] ss:$16 sm:$0x3] %vm74, %v73
  %s77 = scalar_lea.vmem %s1, 1
  %78 = vst.msk [vmem:[%s77] ss:$16 sm:$0xc] %vm74, %v73
  %s79 = scalar_lea.vmem %s1, 1
  %80 = vst.msk [vmem:[%s79] ss:$16 sm:$0x30] %vm74, %v73
  %s81 = scalar_lea.vmem %s1, 1
  %82 = vst.msk [vmem:[%s81] ss:$16 sm:$0xc0] %vm74, %v73
  %s83 = scalar_lea.vmem %s0, 24
  %v84 = vld [vmem:[%s83] sm:$0xff]
  %85 = vrot.lane.b32.xlu0 %v84, 110
  %v86 = vpop.permute.xlu0 %85
  %vm87 = vcmask 146432
  %s88 = scalar_lea.vmem %s1, 129
  %89 = vst.msk [vmem:[%s88] ss:$16 sm:$0x3] %vm87, %v86
  %s90 = scalar_lea.vmem %s1, 129
  %91 = vst.msk [vmem:[%s90] ss:$16 sm:$0xc] %vm87, %v86
  %s92 = scalar_lea.vmem %s1, 129
  %93 = vst.msk [vmem:[%s92] ss:$16 sm:$0x30] %vm87, %v86
  %s94 = scalar_lea.vmem %s1, 129
  %95 = vst.msk [vmem:[%s94] ss:$16 sm:$0xc0] %vm87, %v86
  %s96 = scalar_lea.vmem %s0, 8
  %v97 = vld [vmem:[%s96] sm:$0xff]
  %98 = vrot.lane.b32.xlu0 %v97, 94
  %v99 = vpop.permute.xlu0 %98
  %vm100 = vcmask 146432
  %s101 = scalar_lea.vmem %s1, 9
  %102 = vst.msk [vmem:[%s101] ss:$16 sm:$0x3] %vm100, %v99
  %s103 = scalar_lea.vmem %s1, 9
  %104 = vst.msk [vmem:[%s103] ss:$16 sm:$0xc] %vm100, %v99
  %s105 = scalar_lea.vmem %s1, 9
  %106 = vst.msk [vmem:[%s105] ss:$16 sm:$0x30] %vm100, %v99
  %s107 = scalar_lea.vmem %s1, 9
  %108 = vst.msk [vmem:[%s107] ss:$16 sm:$0xc0] %vm100, %v99
  %s109 = scalar_lea.vmem %s0, 32
  %v110 = vld [vmem:[%s109] sm:$0xff]
  %111 = vrot.lane.b32.xlu0 %v110, 94
  %v112 = vpop.permute.xlu0 %111
  %vm113 = vcmask 146432
  %s114 = scalar_lea.vmem %s1, 137
  %115 = vst.msk [vmem:[%s114] ss:$16 sm:$0x3] %vm113, %v112
  %s116 = scalar_lea.vmem %s1, 137
  %117 = vst.msk [vmem:[%s116] ss:$16 sm:$0xc] %vm113, %v112
  %s118 = scalar_lea.vmem %s1, 137
  %119 = vst.msk [vmem:[%s118] ss:$16 sm:$0x30] %vm113, %v112
  %s120 = scalar_lea.vmem %s1, 137
  %121 = vst.msk [vmem:[%s120] ss:$16 sm:$0xc0] %vm113, %v112
  %v122 = vld [vmem:[%s0] sm:$0xff]
  %123 = vrot.lane.b32.xlu0 %v122, 92
  %v124 = vpop.permute.xlu0 %123
  %vm125 = vcmask 146432
  %s126 = scalar_lea.vmem %s1, 2
  %127 = vst.msk [vmem:[%s126] ss:$16 sm:$0x3] %vm125, %v124
  %s128 = scalar_lea.vmem %s1, 2
  %129 = vst.msk [vmem:[%s128] ss:$16 sm:$0xc] %vm125, %v124
  %s130 = scalar_lea.vmem %s1, 2
  %131 = vst.msk [vmem:[%s130] ss:$16 sm:$0x30] %vm125, %v124
  %s132 = scalar_lea.vmem %s1, 2
  %133 = vst.msk [vmem:[%s132] ss:$16 sm:$0xc0] %vm125, %v124
  %s134 = scalar_lea.vmem %s0, 24
  %v135 = vld [vmem:[%s134] sm:$0xff]
  %136 = vrot.lane.b32.xlu0 %v135, 92
  %v137 = vpop.permute.xlu0 %136
  %vm138 = vcmask 146432
  %s139 = scalar_lea.vmem %s1, 130
  %140 = vst.msk [vmem:[%s139] ss:$16 sm:$0x3] %vm138, %v137
  %s141 = scalar_lea.vmem %s1, 130
  %142 = vst.msk [vmem:[%s141] ss:$16 sm:$0xc] %vm138, %v137
  %s143 = scalar_lea.vmem %s1, 130
  %144 = vst.msk [vmem:[%s143] ss:$16 sm:$0x30] %vm138, %v137
  %s145 = scalar_lea.vmem %s1, 130
  %146 = vst.msk [vmem:[%s145] ss:$16 sm:$0xc0] %vm138, %v137
  %s147 = scalar_lea.vmem %s0, 8
  %v148 = vld [vmem:[%s147] sm:$0xff]
  %149 = vrot.lane.b32.xlu0 %v148, 76
  %v150 = vpop.permute.xlu0 %149
  %vm151 = vcmask 146432
  %s152 = scalar_lea.vmem %s1, 10
  %153 = vst.msk [vmem:[%s152] ss:$16 sm:$0x3] %vm151, %v150
  %s154 = scalar_lea.vmem %s1, 10
  %155 = vst.msk [vmem:[%s154] ss:$16 sm:$0xc] %vm151, %v150
  %s156 = scalar_lea.vmem %s1, 10
  %157 = vst.msk [vmem:[%s156] ss:$16 sm:$0x30] %vm151, %v150
  %s158 = scalar_lea.vmem %s1, 10
  %159 = vst.msk [vmem:[%s158] ss:$16 sm:$0xc0] %vm151, %v150
  %s160 = scalar_lea.vmem %s0, 32
  %v161 = vld [vmem:[%s160] sm:$0xff]
  %162 = vrot.lane.b32.xlu0 %v161, 76
  %v163 = vpop.permute.xlu0 %162
  %vm164 = vcmask 146432
  %s165 = scalar_lea.vmem %s1, 138
  %166 = vst.msk [vmem:[%s165] ss:$16 sm:$0x3] %vm164, %v163
  %s167 = scalar_lea.vmem %s1, 138
  %168 = vst.msk [vmem:[%s167] ss:$16 sm:$0xc] %vm164, %v163
  %s169 = scalar_lea.vmem %s1, 138
  %170 = vst.msk [vmem:[%s169] ss:$16 sm:$0x30] %vm164, %v163
  %s171 = scalar_lea.vmem %s1, 138
  %172 = vst.msk [vmem:[%s171] ss:$16 sm:$0xc0] %vm164, %v163
  %v173 = vld [vmem:[%s0] sm:$0xff]
  %174 = vrot.lane.b32.xlu0 %v173, 74
  %v175 = vpop.permute.xlu0 %174
  %vm176 = vcmask 146432
  %s177 = scalar_lea.vmem %s1, 3
  %178 = vst.msk [vmem:[%s177] ss:$16 sm:$0x3] %vm176, %v175
  %s179 = scalar_lea.vmem %s1, 3
  %180 = vst.msk [vmem:[%s179] ss:$16 sm:$0xc] %vm176, %v175
  %s181 = scalar_lea.vmem %s1, 3
  %182 = vst.msk [vmem:[%s181] ss:$16 sm:$0x30] %vm176, %v175
  %s183 = scalar_lea.vmem %s1, 3
  %184 = vst.msk [vmem:[%s183] ss:$16 sm:$0xc0] %vm176, %v175
  %s185 = scalar_lea.vmem %s0, 24
  %v186 = vld [vmem:[%s185] sm:$0xff]
  %187 = vrot.lane.b32.xlu0 %v186, 74
  %v188 = vpop.permute.xlu0 %187
  %vm189 = vcmask 146432
  %s190 = scalar_lea.vmem %s1, 131
  %191 = vst.msk [vmem:[%s190] ss:$16 sm:$0x3] %vm189, %v188
  %s192 = scalar_lea.vmem %s1, 131
  %193 = vst.msk [vmem:[%s192] ss:$16 sm:$0xc] %vm189, %v188
  %s194 = scalar_lea.vmem %s1, 131
  %195 = vst.msk [vmem:[%s194] ss:$16 sm:$0x30] %vm189, %v188
  %s196 = scalar_lea.vmem %s1, 131
  %197 = vst.msk [vmem:[%s196] ss:$16 sm:$0xc0] %vm189, %v188
  %s198 = scalar_lea.vmem %s0, 8
  %v199 = vld [vmem:[%s198] sm:$0xff]
  %200 = vrot.lane.b32.xlu0 %v199, 58
  %v201 = vpop.permute.xlu0 %200
  %vm202 = vcmask 146432
  %s203 = scalar_lea.vmem %s1, 11
  %204 = vst.msk [vmem:[%s203] ss:$16 sm:$0x3] %vm202, %v201
  %s205 = scalar_lea.vmem %s1, 11
  %206 = vst.msk [vmem:[%s205] ss:$16 sm:$0xc] %vm202, %v201
  %s207 = scalar_lea.vmem %s1, 11
  %208 = vst.msk [vmem:[%s207] ss:$16 sm:$0x30] %vm202, %v201
  %s209 = scalar_lea.vmem %s1, 11
  %210 = vst.msk [vmem:[%s209] ss:$16 sm:$0xc0] %vm202, %v201
  %s211 = scalar_lea.vmem %s0, 32
  %v212 = vld [vmem:[%s211] sm:$0xff]
  %213 = vrot.lane.b32.xlu0 %v212, 58
  %v214 = vpop.permute.xlu0 %213
  %vm215 = vcmask 146432
  %s216 = scalar_lea.vmem %s1, 139
  %217 = vst.msk [vmem:[%s216] ss:$16 sm:$0x3] %vm215, %v214
  %s218 = scalar_lea.vmem %s1, 139
  %219 = vst.msk [vmem:[%s218] ss:$16 sm:$0xc] %vm215, %v214
  %s220 = scalar_lea.vmem %s1, 139
  %221 = vst.msk [vmem:[%s220] ss:$16 sm:$0x30] %vm215, %v214
  %s222 = scalar_lea.vmem %s1, 139
  %223 = vst.msk [vmem:[%s222] ss:$16 sm:$0xc0] %vm215, %v214
  %v224 = vld [vmem:[%s0] sm:$0xff]
  %225 = vrot.lane.b32.xlu0 %v224, 56
  %v226 = vpop.permute.xlu0 %225
  %vm227 = vcmask 146432
  %s228 = scalar_lea.vmem %s1, 4
  %229 = vst.msk [vmem:[%s228] ss:$16 sm:$0x3] %vm227, %v226
  %s230 = scalar_lea.vmem %s1, 4
  %231 = vst.msk [vmem:[%s230] ss:$16 sm:$0xc] %vm227, %v226
  %s232 = scalar_lea.vmem %s1, 4
  %233 = vst.msk [vmem:[%s232] ss:$16 sm:$0x30] %vm227, %v226
  %s234 = scalar_lea.vmem %s1, 4
  %235 = vst.msk [vmem:[%s234] ss:$16 sm:$0xc0] %vm227, %v226
  %s236 = scalar_lea.vmem %s0, 24
  %v237 = vld [vmem:[%s236] sm:$0xff]
  %238 = vrot.lane.b32.xlu0 %v237, 56
  %v239 = vpop.permute.xlu0 %238
  %vm240 = vcmask 146432
  %s241 = scalar_lea.vmem %s1, 132
  %242 = vst.msk [vmem:[%s241] ss:$16 sm:$0x3] %vm240, %v239
  %s243 = scalar_lea.vmem %s1, 132
  %244 = vst.msk [vmem:[%s243] ss:$16 sm:$0xc] %vm240, %v239
  %s245 = scalar_lea.vmem %s1, 132
  %246 = vst.msk [vmem:[%s245] ss:$16 sm:$0x30] %vm240, %v239
  %s247 = scalar_lea.vmem %s1, 132
  %248 = vst.msk [vmem:[%s247] ss:$16 sm:$0xc0] %vm240, %v239
  %s249 = scalar_lea.vmem %s0, 8
  %v250 = vld [vmem:[%s249] sm:$0xff]
  %251 = vrot.lane.b32.xlu0 %v250, 40
  %v252 = vpop.permute.xlu0 %251
  %vm253 = vcmask 146432
  %s254 = scalar_lea.vmem %s1, 12
  %255 = vst.msk [vmem:[%s254] ss:$16 sm:$0x3] %vm253, %v252
  %s256 = scalar_lea.vmem %s1, 12
  %257 = vst.msk [vmem:[%s256] ss:$16 sm:$0xc] %vm253, %v252
  %s258 = scalar_lea.vmem %s1, 12
  %259 = vst.msk [vmem:[%s258] ss:$16 sm:$0x30] %vm253, %v252
  %s260 = scalar_lea.vmem %s1, 12
  %261 = vst.msk [vmem:[%s260] ss:$16 sm:$0xc0] %vm253, %v252
  %s262 = scalar_lea.vmem %s0, 32
  %v263 = vld [vmem:[%s262] sm:$0xff]
  %264 = vrot.lane.b32.xlu0 %v263, 40
  %v265 = vpop.permute.xlu0 %264
  %vm266 = vcmask 146432
  %s267 = scalar_lea.vmem %s1, 140
  %268 = vst.msk [vmem:[%s267] ss:$16 sm:$0x3] %vm266, %v265
  %s269 = scalar_lea.vmem %s1, 140
  %270 = vst.msk [vmem:[%s269] ss:$16 sm:$0xc] %vm266, %v265
  %s271 = scalar_lea.vmem %s1, 140
  %272 = vst.msk [vmem:[%s271] ss:$16 sm:$0x30] %vm266, %v265
  %s273 = scalar_lea.vmem %s1, 140
  %274 = vst.msk [vmem:[%s273] ss:$16 sm:$0xc0] %vm266, %v265
  %v275 = vld [vmem:[%s0] sm:$0xff]
  %276 = vrot.lane.b32.xlu0 %v275, 38
  %v277 = vpop.permute.xlu0 %276
  %vm278 = vcmask 146432
  %s279 = scalar_lea.vmem %s1, 5
  %280 = vst.msk [vmem:[%s279] ss:$16 sm:$0x3] %vm278, %v277
  %s281 = scalar_lea.vmem %s1, 5
  %282 = vst.msk [vmem:[%s281] ss:$16 sm:$0xc] %vm278, %v277
  %s283 = scalar_lea.vmem %s1, 5
  %284 = vst.msk [vmem:[%s283] ss:$16 sm:$0x30] %vm278, %v277
  %s285 = scalar_lea.vmem %s1, 5
  %286 = vst.msk [vmem:[%s285] ss:$16 sm:$0xc0] %vm278, %v277
  %s287 = scalar_lea.vmem %s0, 24
  %v288 = vld [vmem:[%s287] sm:$0xff]
  %289 = vrot.lane.b32.xlu0 %v288, 38
  %v290 = vpop.permute.xlu0 %289
  %vm291 = vcmask 146432
  %s292 = scalar_lea.vmem %s1, 133
  %293 = vst.msk [vmem:[%s292] ss:$16 sm:$0x3] %vm291, %v290
  %s294 = scalar_lea.vmem %s1, 133
  %295 = vst.msk [vmem:[%s294] ss:$16 sm:$0xc] %vm291, %v290
  %s296 = scalar_lea.vmem %s1, 133
  %297 = vst.msk [vmem:[%s296] ss:$16 sm:$0x30] %vm291, %v290
  %s298 = scalar_lea.vmem %s1, 133
  %299 = vst.msk [vmem:[%s298] ss:$16 sm:$0xc0] %vm291, %v290
  %s300 = scalar_lea.vmem %s0, 8
  %v301 = vld [vmem:[%s300] sm:$0xff]
  %302 = vrot.lane.b32.xlu0 %v301, 22
  %v303 = vpop.permute.xlu0 %302
  %vm304 = vcmask 146432
  %s305 = scalar_lea.vmem %s1, 13
  %306 = vst.msk [vmem:[%s305] ss:$16 sm:$0x3] %vm304, %v303
  %s307 = scalar_lea.vmem %s1, 13
  %308 = vst.msk [vmem:[%s307] ss:$16 sm:$0xc] %vm304, %v303
  %s309 = scalar_lea.vmem %s1, 13
  %310 = vst.msk [vmem:[%s309] ss:$16 sm:$0x30] %vm304, %v303
  %s311 = scalar_lea.vmem %s1, 13
  %312 = vst.msk [vmem:[%s311] ss:$16 sm:$0xc0] %vm304, %v303
  %s313 = scalar_lea.vmem %s0, 32
  %v314 = vld [vmem:[%s313] sm:$0xff]
  %315 = vrot.lane.b32.xlu0 %v314, 22
  %v316 = vpop.permute.xlu0 %315
  %vm317 = vcmask 146432
  %s318 = scalar_lea.vmem %s1, 141
  %319 = vst.msk [vmem:[%s318] ss:$16 sm:$0x3] %vm317, %v316
  %s320 = scalar_lea.vmem %s1, 141
  %321 = vst.msk [vmem:[%s320] ss:$16 sm:$0xc] %vm317, %v316
  %s322 = scalar_lea.vmem %s1, 141
  %323 = vst.msk [vmem:[%s322] ss:$16 sm:$0x30] %vm317, %v316
  %s324 = scalar_lea.vmem %s1, 141
  %325 = vst.msk [vmem:[%s324] ss:$16 sm:$0xc0] %vm317, %v316
  %v326 = vld [vmem:[%s0] sm:$0xff]
  %327 = vrot.lane.b32.xlu0 %v326, 20
  %v328 = vpop.permute.xlu0 %327
  %vm329 = vcmask 146432
  %s330 = scalar_lea.vmem %s1, 6
  %331 = vst.msk [vmem:[%s330] ss:$16 sm:$0x3] %vm329, %v328
  %s332 = scalar_lea.vmem %s1, 6
  %333 = vst.msk [vmem:[%s332] ss:$16 sm:$0xc] %vm329, %v328
  %s334 = scalar_lea.vmem %s1, 6
  %335 = vst.msk [vmem:[%s334] ss:$16 sm:$0x30] %vm329, %v328
  %s336 = scalar_lea.vmem %s1, 6
  %337 = vst.msk [vmem:[%s336] ss:$16 sm:$0xc0] %vm329, %v328
  %s338 = scalar_lea.vmem %s0, 24
  %v339 = vld [vmem:[%s338] sm:$0xff]
  %340 = vrot.lane.b32.xlu0 %v339, 20
  %v341 = vpop.permute.xlu0 %340
  %vm342 = vcmask 146432
  %s343 = scalar_lea.vmem %s1, 134
  %344 = vst.msk [vmem:[%s343] ss:$16 sm:$0x3] %vm342, %v341
  %s345 = scalar_lea.vmem %s1, 134
  %346 = vst.msk [vmem:[%s345] ss:$16 sm:$0xc] %vm342, %v341
  %s347 = scalar_lea.vmem %s1, 134
  %348 = vst.msk [vmem:[%s347] ss:$16 sm:$0x30] %vm342, %v341
  %s349 = scalar_lea.vmem %s1, 134
  %350 = vst.msk [vmem:[%s349] ss:$16 sm:$0xc0] %vm342, %v341
  %s351 = scalar_lea.vmem %s0, 8
  %v352 = vld [vmem:[%s351] sm:$0xff]
  %s353 = scalar_lea.vmem %s0, 16
  %v354 = vld [vmem:[%s353] sm:$0xff]
  %vm355 = vcmask 1014784
  %v356 = vsel %vm355, %v354, %v352
  %357 = vrot.lane.b32.xlu0 %v356, 4
  %v358 = vpop.permute.xlu0 %357
  %vm359 = vcmask 31744
  %s360 = scalar_lea.vmem %s1, 14
  %361 = vst.msk [vmem:[%s360] ss:$16 sm:$0x3] %vm359, %v358
  %s362 = scalar_lea.vmem %s1, 14
  %363 = vst.msk [vmem:[%s362] ss:$16 sm:$0xc] %vm359, %v358
  %s364 = scalar_lea.vmem %s1, 14
  %365 = vst.msk [vmem:[%s364] ss:$16 sm:$0x30] %vm359, %v358
  %s366 = scalar_lea.vmem %s1, 14
  %367 = vst.msk [vmem:[%s366] ss:$16 sm:$0xc0] %vm359, %v358
  %vm368 = vcmask 146464
  %s369 = scalar_lea.vmem %s1, 14
  %370 = vst.msk [vmem:[%s369] ss:$16 sm:$0x3] %vm368, %v358
  %s371 = scalar_lea.vmem %s1, 14
  %372 = vst.msk [vmem:[%s371] ss:$16 sm:$0xc] %vm368, %v358
  %s373 = scalar_lea.vmem %s1, 14
  %374 = vst.msk [vmem:[%s373] ss:$16 sm:$0x30] %vm368, %v358
  %s375 = scalar_lea.vmem %s1, 14
  %376 = vst.msk [vmem:[%s375] ss:$16 sm:$0xc0] %vm368, %v358
  %s377 = scalar_lea.vmem %s0, 32
  %v378 = vld [vmem:[%s377] sm:$0xff]
  %s379 = scalar_lea.vmem %s0, 40
  %v380 = vld [vmem:[%s379] sm:$0xff]
  %vm381 = vcmask 1014784
  %v382 = vsel %vm381, %v380, %v378
  %383 = vrot.lane.b32.xlu0 %v382, 4
  %v384 = vpop.permute.xlu0 %383
  %vm385 = vcmask 31744
  %s386 = scalar_lea.vmem %s1, 142
  %387 = vst.msk [vmem:[%s386] ss:$16 sm:$0x3] %vm385, %v384
  %s388 = scalar_lea.vmem %s1, 142
  %389 = vst.msk [vmem:[%s388] ss:$16 sm:$0xc] %vm385, %v384
  %s390 = scalar_lea.vmem %s1, 142
  %391 = vst.msk [vmem:[%s390] ss:$16 sm:$0x30] %vm385, %v384
  %s392 = scalar_lea.vmem %s1, 142
  %393 = vst.msk [vmem:[%s392] ss:$16 sm:$0xc0] %vm385, %v384
  %vm394 = vcmask 146464
  %s395 = scalar_lea.vmem %s1, 142
  %396 = vst.msk [vmem:[%s395] ss:$16 sm:$0x3] %vm394, %v384
  %s397 = scalar_lea.vmem %s1, 142
  %398 = vst.msk [vmem:[%s397] ss:$16 sm:$0xc] %vm394, %v384
  %s399 = scalar_lea.vmem %s1, 142
  %400 = vst.msk [vmem:[%s399] ss:$16 sm:$0x30] %vm394, %v384
  %s401 = scalar_lea.vmem %s1, 142
  %402 = vst.msk [vmem:[%s401] ss:$16 sm:$0xc0] %vm394, %v384
  %v403 = vld [vmem:[%s0] sm:$0xff]
  %s404 = scalar_lea.vmem %s0, 8
  %v405 = vld [vmem:[%s404] sm:$0xff]
  %vm406 = vcmask 1031168
  %v407 = vsel %vm406, %v405, %v403
  %408 = vrot.lane.b32.xlu0 %v407, 2
  %v409 = vpop.permute.xlu0 %408
  %vm410 = vcmask 15360
  %s411 = scalar_lea.vmem %s1, 7
  %412 = vst.msk [vmem:[%s411] ss:$16 sm:$0x3] %vm410, %v409
  %s413 = scalar_lea.vmem %s1, 7
  %414 = vst.msk [vmem:[%s413] ss:$16 sm:$0xc] %vm410, %v409
  %s415 = scalar_lea.vmem %s1, 7
  %416 = vst.msk [vmem:[%s415] ss:$16 sm:$0x30] %vm410, %v409
  %s417 = scalar_lea.vmem %s1, 7
  %418 = vst.msk [vmem:[%s417] ss:$16 sm:$0xc0] %vm410, %v409
  %vm419 = vcmask 146448
  %s420 = scalar_lea.vmem %s1, 7
  %421 = vst.msk [vmem:[%s420] ss:$16 sm:$0x3] %vm419, %v409
  %s422 = scalar_lea.vmem %s1, 7
  %423 = vst.msk [vmem:[%s422] ss:$16 sm:$0xc] %vm419, %v409
  %s424 = scalar_lea.vmem %s1, 7
  %425 = vst.msk [vmem:[%s424] ss:$16 sm:$0x30] %vm419, %v409
  %s426 = scalar_lea.vmem %s1, 7
  %427 = vst.msk [vmem:[%s426] ss:$16 sm:$0xc0] %vm419, %v409
  %s428 = scalar_lea.vmem %s0, 24
  %v429 = vld [vmem:[%s428] sm:$0xff]
  %s430 = scalar_lea.vmem %s0, 32
  %v431 = vld [vmem:[%s430] sm:$0xff]
  %vm432 = vcmask 1031168
  %v433 = vsel %vm432, %v431, %v429
  %434 = vrot.lane.b32.xlu0 %v433, 2
  %v435 = vpop.permute.xlu0 %434
  %vm436 = vcmask 15360
  %s437 = scalar_lea.vmem %s1, 135
  %438 = vst.msk [vmem:[%s437] ss:$16 sm:$0x3] %vm436, %v435
  %s439 = scalar_lea.vmem %s1, 135
  %440 = vst.msk [vmem:[%s439] ss:$16 sm:$0xc] %vm436, %v435
  %s441 = scalar_lea.vmem %s1, 135
  %442 = vst.msk [vmem:[%s441] ss:$16 sm:$0x30] %vm436, %v435
  %s443 = scalar_lea.vmem %s1, 135
  %444 = vst.msk [vmem:[%s443] ss:$16 sm:$0xc0] %vm436, %v435
  %vm445 = vcmask 146448
  %s446 = scalar_lea.vmem %s1, 135
  %447 = vst.msk [vmem:[%s446] ss:$16 sm:$0x3] %vm445, %v435
  %s448 = scalar_lea.vmem %s1, 135
  %449 = vst.msk [vmem:[%s448] ss:$16 sm:$0xc] %vm445, %v435
  %s450 = scalar_lea.vmem %s1, 135
  %451 = vst.msk [vmem:[%s450] ss:$16 sm:$0x30] %vm445, %v435
  %s452 = scalar_lea.vmem %s1, 135
  %453 = vst.msk [vmem:[%s452] ss:$16 sm:$0xc0] %vm445, %v435

// kernel: offset_convolution_forward.3
$region0: #{offset_convolution_forward.3}
  #allocation0 [shape = 'u32[]', space=smem, size = 0x4, offset = 0x4, fixed_abs, tag = 'smem constant byte address 0x4 - core index']
  #allocation1 [shape = 'u32[144,128]{1,0:T(1,128)}', space=vmem, size = 0x12000, scoped, tag = 'internal scratch']
  #allocation2 [shape = 'bf16[384,384]{1,0:T(16,128)(2,1)}', space=vmem, size = 0x48000, scoped, tag = 'scratch operand']
  %s0 = inlined_call_operand.vmem [shape: bf16[1,2,32,512], index: 0, kind: input, shape index: {}]
  %s1 = inlined_call_operand.vmem [shape: bf16[1,8,384], index: 1, kind: input, shape index: {}]
  %s2 = inlined_call_operand.vmem [shape: f32[1,8,1], index: 2, kind: input, shape index: {}]
  %s3 = inlined_call_operand.vmem [shape: f32[1,8,1], index: 3, kind: input, shape index: {}]
  %s4 = inlined_call_operand.vmem [shape: f32[2,1,8,384], index: 4, kind: output, shape index: {}]
  %s5 = sld [smem:[#allocation0]]
  $region49: #{offset_convolution_forward.3} parent=0
    _
  %s7 = ssub.s32 1, %s5
  %s8 = scalar_select 0, %s7, %s5
  loop: start=0, step=1, limit=4
  $region2: #{offset_convolution_forward.3} parent=0 // loop_pre_header
    _
  $region3: #{offset_convolution_forward.3} parent=0 // loop_header
    %s10 = sphi 0, %s14
    %p11 = scmp.ge.s32.totalorder %s10, 4
    %s17 = sphi 0, %s29
    %s18 = sphi 0, %s25
    %s19 = sphi 0, %s17
    %s20 = sphi 0, %s18
    %s21 = sphi 0, %s19
    %s22 = sphi 0, %s20
    %s34 = sphi 0, %s36
    %s37 = sphi 0, %s34
    %s38 = sphi 0, %s37
    %s54 = sphi 0, %s38
    %s60 = sphi 0, %s62
    %s63 = sphi 0, %s60
    %s64 = sphi 0, %s63
    %s80 = sphi 0, %s64
    %s86 = sphi 0, %s88
    %s89 = sphi 0, %s86
    %s90 = sphi 0, %s89
    %s106 = sphi 0, %s90
    %s112 = sphi 0, %s114
    %s115 = sphi 0, %s112
    %s116 = sphi 0, %s115
    %s132 = sphi 0, %s116
    %s140 = sphi 0, %s142
    %s143 = sphi 0, %s140
    %s144 = sphi 0, %s143
    %s160 = sphi 0, %s144
  $region4: #{offset_convolution_forward.3} parent=0 // loop_header_branch
    %13 = sbr.rel (%p11) target = $region8
  $region5: #{offset_convolution_forward.3} parent=0 // loop_body
    %s15 = ssub.s32 %s10, 1
    %s16 = ssub.s32 %s10, 2
    %s23 = sadd.s32 1, %s18
    %p24 = scmp.ge.s32.totalorder %s23, 2
    %s25 = scalar_select %p24, 0, %s23
    %s26 = sadd.s32 1, %s17
    %s27 = scalar_select %p24, %s26, %s17
    %p28 = scmp.ge.s32.totalorder %s27, 1
    %s29 = scalar_select %p28, 0, %s27
    %s30 = ssub.s32 %s17, %s29
    %s31 = ssub.s32 %s18, %s25
    %s32 = sor.u32 %s30, %s31
    %p33 = scmp.eq.s32.totalorder %s32, 0
    %s35 = sadd.s32 %s34, 1
    %s36 = scalar_select %p33, %s34, %s35
    %p39 = pneg %p33
    %p40 = scmp.eq.s32.totalorder %s10, 1
    %p41 = por %p39, %p40
    %p42 = scmp.ne.s32.totalorder %s34, %s37
    %p43 = scmp.eq.s32.totalorder %s10, 0
    %p44 = por %p42, %p43
    %p45 = scmp.ne.s32.totalorder %s34, %s37
    %p46 = scmp.eq.s32.totalorder %s15, 1
    %p47 = por %p45, %p46
    %p48 = scmp.ne.s32.totalorder %s37, %s38
    %p49 = scmp.eq.s32.totalorder %s15, 0
    %p50 = por %p48, %p49
    %p51 = scmp.ne.s32.totalorder %s37, %s38
    %p52 = scmp.eq.s32.totalorder %s16, 1
    %p53 = por %p51, %p52
    %p55 = scmp.ne.s32.totalorder %s38, %s54
    %p56 = scmp.eq.s32.totalorder %s16, 0
    %p57 = por %p55, %p56
    %s58 = ssub.s32 %s17, %s29
    %p59 = scmp.eq.s32.totalorder %s58, 0
    %s61 = sadd.s32 %s60, 1
    %s62 = scalar_select %p59, %s60, %s61
    %p65 = pneg %p59
    %p66 = scmp.eq.s32.totalorder %s10, 1
    %p67 = por %p65, %p66
    %p68 = scmp.ne.s32.totalorder %s60, %s63
    %p69 = scmp.eq.s32.totalorder %s10, 0
    %p70 = por %p68, %p69
    %p71 = scmp.ne.s32.totalorder %s60, %s63
    %p72 = scmp.eq.s32.totalorder %s15, 1
    %p73 = por %p71, %p72
    %p74 = scmp.ne.s32.totalorder %s63, %s64
    %p75 = scmp.eq.s32.totalorder %s15, 0
    %p76 = por %p74, %p75
    %p77 = scmp.ne.s32.totalorder %s63, %s64
    %p78 = scmp.eq.s32.totalorder %s16, 1
    %p79 = por %p77, %p78
    %p81 = scmp.ne.s32.totalorder %s64, %s80
    %p82 = scmp.eq.s32.totalorder %s16, 0
    %p83 = por %p81, %p82
    %s84 = ssub.s32 %s17, %s29
    %p85 = scmp.eq.s32.totalorder %s84, 0
    %s87 = sadd.s32 %s86, 1
    %s88 = scalar_select %p85, %s86, %s87
    %p91 = pneg %p85
    %p92 = scmp.eq.s32.totalorder %s10, 1
    %p93 = por %p91, %p92
    %p94 = scmp.ne.s32.totalorder %s86, %s89
    %p95 = scmp.eq.s32.totalorder %s10, 0
    %p96 = por %p94, %p95
    %p97 = scmp.ne.s32.totalorder %s86, %s89
    %p98 = scmp.eq.s32.totalorder %s15, 1
    %p99 = por %p97, %p98
    %p100 = scmp.ne.s32.totalorder %s89, %s90
    %p101 = scmp.eq.s32.totalorder %s15, 0
    %p102 = por %p100, %p101
    %p103 = scmp.ne.s32.totalorder %s89, %s90
    %p104 = scmp.eq.s32.totalorder %s16, 1
    %p105 = por %p103, %p104
    %p107 = scmp.ne.s32.totalorder %s90, %s106
    %p108 = scmp.eq.s32.totalorder %s16, 0
    %p109 = por %p107, %p108
    %s110 = ssub.s32 %s17, %s29
    %p111 = scmp.eq.s32.totalorder %s110, 0
    %s113 = sadd.s32 %s112, 1
    %s114 = scalar_select %p111, %s112, %s113
    %p117 = pneg %p111
    %p118 = scmp.eq.s32.totalorder %s10, 1
    %p119 = por %p117, %p118
    %p120 = scmp.ne.s32.totalorder %s112, %s115
    %p121 = scmp.eq.s32.totalorder %s10, 0
    %p122 = por %p120, %p121
    %p123 = scmp.ne.s32.totalorder %s112, %s115
    %p124 = scmp.eq.s32.totalorder %s15, 1
    %p125 = por %p123, %p124
    %p126 = scmp.ne.s32.totalorder %s115, %s116
    %p127 = scmp.eq.s32.totalorder %s15, 0
    %p128 = por %p126, %p127
    %p129 = scmp.ne.s32.totalorder %s115, %s116
    %p130 = scmp.eq.s32.totalorder %s16, 1
    %p131 = por %p129, %p130
    %p133 = scmp.ne.s32.totalorder %s116, %s132
    %p134 = scmp.eq.s32.totalorder %s16, 0
    %p135 = por %p133, %p134
    %s136 = ssub.s32 %s18, %s25
    %s137 = ssub.s32 %s17, %s29
    %s138 = sor.u32 %s136, %s137
    %p139 = scmp.eq.s32.totalorder %s138, 0
    %s141 = sadd.s32 %s140, 1
    %s142 = scalar_select %p139, %s140, %s141
    %p145 = pneg %p139
    %p146 = scmp.eq.s32.totalorder %s10, 1
    %p147 = por %p145, %p146
    %p148 = scmp.ne.s32.totalorder %s140, %s143
    %p149 = scmp.eq.s32.totalorder %s10, 0
    %p150 = por %p148, %p149
    %p151 = scmp.ne.s32.totalorder %s140, %s143
    %p152 = scmp.eq.s32.totalorder %s15, 1
    %p153 = por %p151, %p152
    %p154 = scmp.ne.s32.totalorder %s143, %s144
    %p155 = scmp.eq.s32.totalorder %s15, 0
    %p156 = por %p154, %p155
    %p157 = scmp.ne.s32.totalorder %s143, %s144
    %p158 = scmp.eq.s32.totalorder %s16, 1
    %p159 = por %p157, %p158
    %p161 = scmp.ne.s32.totalorder %s144, %s160
    %p162 = scmp.eq.s32.totalorder %s16, 0
    %p163 = por %p161, %p162
    %p164 = scmp.le.s32.totalorder 1, %s10
    %p165 = scmp.lt.s32.totalorder %s10, 3
    %p166 = pnand %p164, %p165
    %p167 = pneg %p166
    // Predicated region
    $region9: #{offset_convolution_forward.3} parent=5 // pred_check
      _
    $region10: #{offset_convolution_forward.3} parent=5 // pred_check_branch
      %169 = sbr.rel (%p166) target = $region12
    $region11: #{offset_convolution_forward.3} parent=5 // pred_region
      %s170 = ssub.s32 %s10, 1
      // Predicated region
      $region13: #{offset_convolution_forward.3} parent=11 // pred_check
        %p171 = pneg %p76
      $region14: #{offset_convolution_forward.3} parent=11 // pred_check_branch
        %173 = sbr.rel (%p171) target = $region16
      $region15: #{offset_convolution_forward.3} parent=11 // pred_region
        %p174 = scmp.lt.s32.totalorder %s19, 0
        %s175 = scalar_select %p174, %s19, 0
        %s176 = smul.addr %s175, 3
        %s177 = smul.addr %s176, 4
        %s178 = scalar_lea.vmem %s1, %s177
      $region16: #{offset_convolution_forward.3} parent=11 // pred_fallthru
        _
      // Predicated region
      $region17: #{offset_convolution_forward.3} parent=11 // pred_check
        %p179 = pneg %p102
      $region18: #{offset_convolution_forward.3} parent=11 // pred_check_branch
        %181 = sbr.rel (%p179) target = $region20
      $region19: #{offset_convolution_forward.3} parent=11 // pred_region
        %p182 = scmp.lt.s32.totalorder %s19, 0
        %s183 = scalar_select %p182, %s19, 0
        %s184 = smul.addr %s183, 8
        %s185 = scalar_lea.vmem %s2, %s184
      $region20: #{offset_convolution_forward.3} parent=11 // pred_fallthru
        _
      // Predicated region
      $region21: #{offset_convolution_forward.3} parent=11 // pred_check
        %p186 = pneg %p128
      $region22: #{offset_convolution_forward.3} parent=11 // pred_check_branch
        %188 = sbr.rel (%p186) target = $region24
      $region23: #{offset_convolution_forward.3} parent=11 // pred_region
        %p189 = scmp.lt.s32.totalorder %s19, 0
        %s190 = scalar_select %p189, %s19, 0
        %s191 = smul.addr %s190, 8
        %s192 = scalar_lea.vmem %s3, %s191
      $region24: #{offset_convolution_forward.3} parent=11 // pred_fallthru
        _
    $region12: #{offset_convolution_forward.3} parent=5 // pred_fallthru
      _
    %p193 = scmp.lt.s32.totalorder %s10, 2
    // Predicated region
    $region25: #{offset_convolution_forward.3} parent=5 // pred_check
      %p194 = pneg %p193
    $region26: #{offset_convolution_forward.3} parent=5 // pred_check_branch
      %196 = sbr.rel (%p194) target = $region28
    $region27: #{offset_convolution_forward.3} parent=5 // pred_region
      // Predicated region
      $region29: #{offset_convolution_forward.3} parent=27 // pred_check
        %p197 = pneg %p44
      $region30: #{offset_convolution_forward.3} parent=27 // pred_check_branch
        %199 = sbr.rel (%p197) target = $region32
      $region31: #{offset_convolution_forward.3} parent=27 // pred_region
        %p200 = scmp.lt.s32.totalorder %s17, 0
        %s201 = scalar_select %p200, %s17, 0
        %p202 = scmp.lt.s32.totalorder %s18, 1
        %s203 = scalar_select %p202, %s18, 1
        %s204 = smul.addr %s203, 16
        %s205 = smul.addr %s201, 32
        %s206 = sadd.s32 %s204, %s205
        %s207 = smul.addr %s206, 4
        %s208 = scalar_lea.vmem %s0, %s207
      $region32: #{offset_convolution_forward.3} parent=27 // pred_fallthru
        _
    $region28: #{offset_convolution_forward.3} parent=5 // pred_fallthru
      _
    %p209 = scmp.le.s32.totalorder 1, %s10
    %p210 = scmp.lt.s32.totalorder %s10, 3
    %p211 = pnand %p209, %p210
    %p212 = pneg %p211
    // Predicated region
    $region33: #{offset_convolution_forward.3} parent=5 // pred_check
      _
    $region34: #{offset_convolution_forward.3} parent=5 // pred_check_branch
      %214 = sbr.rel (%p211) target = $region36
    $region35: #{offset_convolution_forward.3} parent=5 // pred_region
      %s215 = ssub.s32 %s10, 1
      %p216 = scmp.lt.s32.totalorder %s19, 0
      %s217 = scalar_select %p216, %s19, 0
      %p218 = scmp.lt.s32.totalorder %s20, 1
      %s219 = scalar_select %p218, %s20, 1
      %s220 = smul.addr %s219, 16
      %s221 = smul.addr %s217, 32
      %s222 = sadd.s32 %s220, %s221
      %s223 = smul.addr %s222, 4
      %s224 = scalar_lea.vmem %s0, %s223
      %p225 = pneg %p50
      %p226 = pneg %p47
      %p227 = scmp.lt.s32.totalorder %s19, 0
      %s228 = scalar_select %p227, %s19, 0
      %s229 = smul.addr %s228, 3
      %s230 = smul.addr %s229, 4
      %s231 = scalar_lea.vmem %s1, %s230
      %p232 = pneg %p76
      %p233 = pneg %p73
      %p234 = scmp.lt.s32.totalorder %s19, 0
      %s235 = scalar_select %p234, %s19, 0
      %s236 = smul.addr %s235, 8
      %s237 = scalar_lea.vmem %s2, %s236
      %p238 = pneg %p102
      %p239 = pneg %p99
      %p240 = scmp.lt.s32.totalorder %s19, 0
      %s241 = scalar_select %p240, %s19, 0
      %s242 = smul.addr %s241, 8
      %s243 = scalar_lea.vmem %s3, %s242
      %p244 = pneg %p128
      %p245 = pneg %p125
      %p246 = pneg %p156
      %p247 = pneg %p153
      %p248 = scmp.lt.s32.totalorder %s20, 1
      %s249 = scalar_select %p248, %s20, 1
      %p250 = scmp.lt.s32.totalorder %s19, 0
      %s251 = scalar_select %p250, %s19, 0
      %s252 = smul.addr %s251, 3
      %s253 = smul.addr %s249, 3
      %s254 = sadd.s32 %s252, %s253
      %s255 = smul.addr %s254, 8
      %s256 = scalar_lea.vmem %s4, %s255
      %p257 = scmp.lt.s32.totalorder %s19, 0
      %s258 = scalar_select %p257, %s19, 0
      %p259 = scmp.lt.s32.totalorder %s20, 1
      %s260 = scalar_select %p259, %s20, 1
      %s261 = smul.addr %s260, 16
      %s262 = smul.addr %s258, 32
      %s263 = sadd.s32 %s261, %s262
      %s264 = smul.addr %s263, 4
      %s265 = scalar_lea.vmem %s0, %s264
      %p266 = scmp.lt.s32.totalorder %s19, 0
      %s267 = scalar_select %p266, %s19, 0
      %s268 = smul.addr %s267, 3
      %s269 = smul.addr %s268, 4
      %s270 = scalar_lea.vmem %s1, %s269
      %p271 = scmp.lt.s32.totalorder %s19, 0
      %s272 = scalar_select %p271, %s19, 0
      %s273 = smul.addr %s272, 8
      %s274 = scalar_lea.vmem %s2, %s273
      %p275 = scmp.lt.s32.totalorder %s19, 0
      %s276 = scalar_select %p275, %s19, 0
      %s277 = smul.addr %s276, 8
      %s278 = scalar_lea.vmem %s3, %s277
      %p279 = scmp.lt.s32.totalorder %s20, 1
      %s280 = scalar_select %p279, %s20, 1
      %p281 = scmp.lt.s32.totalorder %s19, 0
      %s282 = scalar_select %p281, %s19, 0
      %s283 = smul.addr %s282, 3
      %s284 = smul.addr %s280, 3
      %s285 = sadd.s32 %s283, %s284
      %s286 = smul.addr %s285, 8
      %s287 = scalar_lea.vmem %s4, %s286
      %v289 = vld [vmem:[%s265] sm:$0xff]
      %v290 = vld [vmem:[%s265 + $0x8] sm:$0xf]
      %v291 = vld [vmem:[%s265 + $0x10] sm:$0xff]
      %v292 = vld [vmem:[%s265 + $0x18] sm:$0xf]
      %v293 = vld [vmem:[%s265 + $0x20] sm:$0xff]
      %v294 = vld [vmem:[%s265 + $0x28] sm:$0xf]
      %v295 = vld [vmem:[%s265 + $0x30] sm:$0xff]
      %v296 = vld [vmem:[%s265 + $0x38] sm:$0xf]
      %v305 = vunpack.c.l.b16 %v289
      %v306 = vunpack.c.h.b16 %v289
      %v307 = vunpack.c.l.b16 %v290
      %v308 = vunpack.c.l.b16 %v291
      %v309 = vunpack.c.h.b16 %v291
      %v310 = vunpack.c.l.b16 %v292
      %v311 = vunpack.c.l.b16 %v293
      %v312 = vunpack.c.h.b16 %v293
      %v313 = vunpack.c.l.b16 %v294
      %v314 = vunpack.c.l.b16 %v295
      %v315 = vunpack.c.h.b16 %v295
      %v316 = vunpack.c.l.b16 %v296
      %v317 = vpack.c.b16 %v308, %v305
      %v318 = vpack.c.b16 %v309, %v306
      %v319 = vpack.c.b16 %v310, %v307
      %v320 = vpack.c.b16 %v314, %v311
      %v321 = vpack.c.b16 %v315, %v312
      %v322 = vpack.c.b16 %v316, %v313
      %329 = vst [vmem:[#allocation2] sm:$0xff] %v317
      %330 = vst [vmem:[#allocation2 + $0x8] sm:$0xff] %v318
      %331 = vst [vmem:[#allocation2 + $0x10] sm:$0xff] %v319
      %332 = vst [vmem:[#allocation2 + $0x18] sm:$0xff] %v320
      %333 = vst [vmem:[#allocation2 + $0x20] sm:$0xff] %v321
      %334 = vst [vmem:[#allocation2 + $0x28] sm:$0xff] %v322
      %v335 = vld [vmem:[%s265] sm:$0xff]
      %v336 = vld [vmem:[%s265 + $0x8] sm:$0xff]
      %v337 = vld [vmem:[%s265 + $0x10] sm:$0xff]
      %v338 = vld [vmem:[%s265 + $0x18] sm:$0xff]
      %v339 = vld [vmem:[%s265 + $0x20] sm:$0xff]
      %v340 = vld [vmem:[%s265 + $0x28] sm:$0xff]
      %v341 = vld [vmem:[%s265 + $0x30] sm:$0xff]
      %v342 = vld [vmem:[%s265 + $0x38] sm:$0xff]
      %v351 = vunpack.c.l.b16 %v335
      %v352 = vunpack.c.h.b16 %v335
      %v353 = vunpack.c.l.b16 %v336
      %v354 = vunpack.c.h.b16 %v336
      %v355 = vunpack.c.l.b16 %v337
      %v356 = vunpack.c.h.b16 %v337
      %v357 = vunpack.c.l.b16 %v338
      %v358 = vunpack.c.h.b16 %v338
      %v359 = vunpack.c.l.b16 %v339
      %v360 = vunpack.c.h.b16 %v339
      %v361 = vunpack.c.l.b16 %v340
      %v362 = vunpack.c.h.b16 %v340
      %v363 = vunpack.c.l.b16 %v341
      %v364 = vunpack.c.h.b16 %v341
      %v365 = vunpack.c.l.b16 %v342
      %v366 = vunpack.c.h.b16 %v342
      %v367 = vpack.c.b16 %v355, %v351
      %v368 = vpack.c.b16 %v356, %v352
      %v369 = vpack.c.b16 %v357, %v353
      %v370 = vpack.c.b16 %v358, %v354
      %v371 = vpack.c.b16 %v363, %v359
      %v372 = vpack.c.b16 %v364, %v360
      %v373 = vpack.c.b16 %v365, %v361
      %v374 = vpack.c.b16 %v366, %v362
      %375 = vrot.lane.b32.xlu0 %v367, 127
      %v376 = vpop.permute.xlu0 %375
      %377 = vrot.lane.b32.xlu0 %v368, 127
      %v378 = vpop.permute.xlu0 %377
      %379 = vrot.lane.b32.xlu0 %v369, 127
      %v380 = vpop.permute.xlu0 %379
      %381 = vrot.lane.b32.xlu0 %v370, 127
      %v382 = vpop.permute.xlu0 %381
      %383 = vrot.lane.b32.xlu0 %v371, 127
      %v384 = vpop.permute.xlu0 %383
      %385 = vrot.lane.b32.xlu0 %v372, 127
      %v386 = vpop.permute.xlu0 %385
      %387 = vrot.lane.b32.xlu0 %v373, 127
      %v388 = vpop.permute.xlu0 %387
      %389 = vrot.lane.b32.xlu0 %v374, 127
      %v390 = vpop.permute.xlu0 %389
      %vm391 = vcmask 1039360
      %v392 = vsel %vm391, %v376, %v378
      %v393 = vsel %vm391, %v378, %v380
      %v394 = vsel %vm391, %v380, %v382
      %v395 = vsel %vm391, %v384, %v386
      %v396 = vsel %vm391, %v386, %v388
      %v397 = vsel %vm391, %v388, %v390
      %404 = vst [vmem:[#allocation2 + $0x30] sm:$0xff] %v392
      %405 = vst [vmem:[#allocation2 + $0x38] sm:$0xff] %v393
      %406 = vst [vmem:[#allocation2 + $0x40] sm:$0xff] %v394
      %407 = vst [vmem:[#allocation2 + $0x48] sm:$0xff] %v395
      %408 = vst [vmem:[#allocation2 + $0x50] sm:$0xff] %v396
      %409 = vst [vmem:[#allocation2 + $0x58] sm:$0xff] %v397
      %v410 = vld [vmem:[%s265] sm:$0xff]
      %v411 = vld [vmem:[%s265 + $0x8] sm:$0xff]
      %v412 = vld [vmem:[%s265 + $0x10] sm:$0xff]
      %v413 = vld [vmem:[%s265 + $0x18] sm:$0xff]
      %v414 = vld [vmem:[%s265 + $0x20] sm:$0xff]
      %v415 = vld [vmem:[%s265 + $0x28] sm:$0xff]
      %v416 = vld [vmem:[%s265 + $0x30] sm:$0xff]
      %v417 = vld [vmem:[%s265 + $0x38] sm:$0xff]
      %v426 = vunpack.c.l.b16 %v410
      %v427 = vunpack.c.h.b16 %v410
      %v428 = vunpack.c.l.b16 %v411
      %v429 = vunpack.c.h.b16 %v411
      %v430 = vunpack.c.l.b16 %v412
      %v431 = vunpack.c.h.b16 %v412
      %v432 = vunpack.c.l.b16 %v413
      %v433 = vunpack.c.h.b16 %v413
      %v434 = vunpack.c.l.b16 %v414
      %v435 = vunpack.c.h.b16 %v414
      %v436 = vunpack.c.l.b16 %v415
      %v437 = vunpack.c.h.b16 %v415
      %v438 = vunpack.c.l.b16 %v416
      %v439 = vunpack.c.h.b16 %v416
      %v440 = vunpack.c.l.b16 %v417
      %v441 = vunpack.c.h.b16 %v417
      %v442 = vpack.c.b16 %v430, %v426
      %v443 = vpack.c.b16 %v431, %v427
      %v444 = vpack.c.b16 %v432, %v428
      %v445 = vpack.c.b16 %v433, %v429
      %v446 = vpack.c.b16 %v438, %v434
      %v447 = vpack.c.b16 %v439, %v435
      %v448 = vpack.c.b16 %v440, %v436
      %v449 = vpack.c.b16 %v441, %v437
      %450 = vrot.lane.b32.xlu0 %v442, 126
      %v451 = vpop.permute.xlu0 %450
      %452 = vrot.lane.b32.xlu0 %v443, 126
      %v453 = vpop.permute.xlu0 %452
      %454 = vrot.lane.b32.xlu0 %v444, 126
      %v455 = vpop.permute.xlu0 %454
      %456 = vrot.lane.b32.xlu0 %v445, 126
      %v457 = vpop.permute.xlu0 %456
      %458 = vrot.lane.b32.xlu0 %v446, 126
      %v459 = vpop.permute.xlu0 %458
      %460 = vrot.lane.b32.xlu0 %v447, 126
      %v461 = vpop.permute.xlu0 %460
      %462 = vrot.lane.b32.xlu0 %v448, 126
      %v463 = vpop.permute.xlu0 %462
      %464 = vrot.lane.b32.xlu0 %v449, 126
      %v465 = vpop.permute.xlu0 %464
      %vm466 = vcmask 1031168
      %v467 = vsel %vm466, %v451, %v453
      %v468 = vsel %vm466, %v453, %v455
      %v469 = vsel %vm466, %v455, %v457
      %v470 = vsel %vm466, %v459, %v461
      %v471 = vsel %vm466, %v461, %v463
      %v472 = vsel %vm466, %v463, %v465
      %479 = vst [vmem:[#allocation2 + $0x60] sm:$0xff] %v467
      %480 = vst [vmem:[#allocation2 + $0x68] sm:$0xff] %v468
      %481 = vst [vmem:[#allocation2 + $0x70] sm:$0xff] %v469
      %482 = vst [vmem:[#allocation2 + $0x78] sm:$0xff] %v470
      %483 = vst [vmem:[#allocation2 + $0x80] sm:$0xff] %v471
      %484 = vst [vmem:[#allocation2 + $0x88] sm:$0xff] %v472
      %v485 = vld [vmem:[%s265] sm:$0xff]
      %v486 = vld [vmem:[%s265 + $0x8] sm:$0xff]
      %v487 = vld [vmem:[%s265 + $0x10] sm:$0xff]
      %v488 = vld [vmem:[%s265 + $0x18] sm:$0xff]
      %v489 = vld [vmem:[%s265 + $0x20] sm:$0xff]
      %v490 = vld [vmem:[%s265 + $0x28] sm:$0xff]
      %v491 = vld [vmem:[%s265 + $0x30] sm:$0xff]
      %v492 = vld [vmem:[%s265 + $0x38] sm:$0xff]
      %v501 = vunpack.c.l.b16 %v485
      %v502 = vunpack.c.h.b16 %v485
      %v503 = vunpack.c.l.b16 %v486
      %v504 = vunpack.c.h.b16 %v486
      %v505 = vunpack.c.l.b16 %v487
      %v506 = vunpack.c.h.b16 %v487
      %v507 = vunpack.c.l.b16 %v488
      %v508 = vunpack.c.h.b16 %v488
      %v509 = vunpack.c.l.b16 %v489
      %v510 = vunpack.c.h.b16 %v489
      %v511 = vunpack.c.l.b16 %v490
      %v512 = vunpack.c.h.b16 %v490
      %v513 = vunpack.c.l.b16 %v491
      %v514 = vunpack.c.h.b16 %v491
      %v515 = vunpack.c.l.b16 %v492
      %v516 = vunpack.c.h.b16 %v492
      %v517 = vpack.c.b16 %v505, %v501
      %v518 = vpack.c.b16 %v506, %v502
      %v519 = vpack.c.b16 %v507, %v503
      %v520 = vpack.c.b16 %v508, %v504
      %v521 = vpack.c.b16 %v513, %v509
      %v522 = vpack.c.b16 %v514, %v510
      %v523 = vpack.c.b16 %v515, %v511
      %v524 = vpack.c.b16 %v516, %v512
      %525 = vrot.lane.b32.xlu0 %v517, 110
      %v526 = vpop.permute.xlu0 %525
      %527 = vrot.lane.b32.xlu0 %v518, 110
      %v528 = vpop.permute.xlu0 %527
      %529 = vrot.lane.b32.xlu0 %v519, 110
      %v530 = vpop.permute.xlu0 %529
      %531 = vrot.lane.b32.xlu0 %v520, 110
      %v532 = vpop.permute.xlu0 %531
      %533 = vrot.lane.b32.xlu0 %v521, 110
      %v534 = vpop.permute.xlu0 %533
      %535 = vrot.lane.b32.xlu0 %v522, 110
      %v536 = vpop.permute.xlu0 %535
      %537 = vrot.lane.b32.xlu0 %v523, 110
      %v538 = vpop.permute.xlu0 %537
      %539 = vrot.lane.b32.xlu0 %v524, 110
      %v540 = vpop.permute.xlu0 %539
      %vm541 = vcmask 900096
      %v542 = vsel %vm541, %v526, %v528
      %v543 = vsel %vm541, %v528, %v530
      %v544 = vsel %vm541, %v530, %v532
      %v545 = vsel %vm541, %v534, %v536
      %v546 = vsel %vm541, %v536, %v538
      %v547 = vsel %vm541, %v538, %v540
      %554 = vst [vmem:[#allocation2 + $0x90] sm:$0xff] %v542
      %555 = vst [vmem:[#allocation2 + $0x98] sm:$0xff] %v543
      %556 = vst [vmem:[#allocation2 + $0xa0] sm:$0xff] %v544
      %557 = vst [vmem:[#allocation2 + $0xa8] sm:$0xff] %v545
      %558 = vst [vmem:[#allocation2 + $0xb0] sm:$0xff] %v546
      %559 = vst [vmem:[#allocation2 + $0xb8] sm:$0xff] %v547
      %v560 = vld [vmem:[%s265] sm:$0xff]
      %v561 = vld [vmem:[%s265 + $0x8] sm:$0xff]
      %v562 = vld [vmem:[%s265 + $0x10] sm:$0xff]
      %v563 = vld [vmem:[%s265 + $0x18] sm:$0xff]
      %v564 = vld [vmem:[%s265 + $0x20] sm:$0xff]
      %v565 = vld [vmem:[%s265 + $0x28] sm:$0xff]
      %v566 = vld [vmem:[%s265 + $0x30] sm:$0xff]
      %v567 = vld [vmem:[%s265 + $0x38] sm:$0xff]
      %v576 = vunpack.c.l.b16 %v560
      %v577 = vunpack.c.h.b16 %v560
      %v578 = vunpack.c.l.b16 %v561
      %v579 = vunpack.c.h.b16 %v561
      %v580 = vunpack.c.l.b16 %v562
      %v581 = vunpack.c.h.b16 %v562
      %v582 = vunpack.c.l.b16 %v563
      %v583 = vunpack.c.h.b16 %v563
      %v584 = vunpack.c.l.b16 %v564
      %v585 = vunpack.c.h.b16 %v564
      %v586 = vunpack.c.l.b16 %v565
      %v587 = vunpack.c.h.b16 %v565
      %v588 = vunpack.c.l.b16 %v566
      %v589 = vunpack.c.h.b16 %v566
      %v590 = vunpack.c.l.b16 %v567
      %v591 = vunpack.c.h.b16 %v567
      %v592 = vpack.c.b16 %v580, %v576
      %v593 = vpack.c.b16 %v581, %v577
      %v594 = vpack.c.b16 %v582, %v578
      %v595 = vpack.c.b16 %v583, %v579
      %v596 = vpack.c.b16 %v588, %v584
      %v597 = vpack.c.b16 %v589, %v585
      %v598 = vpack.c.b16 %v590, %v586
      %v599 = vpack.c.b16 %v591, %v587
      %600 = vrot.lane.b32.xlu0 %v592, 109
      %v601 = vpop.permute.xlu0 %600
      %602 = vrot.lane.b32.xlu0 %v593, 109
      %v603 = vpop.permute.xlu0 %602
      %604 = vrot.lane.b32.xlu0 %v594, 109
      %v605 = vpop.permute.xlu0 %604
      %606 = vrot.lane.b32.xlu0 %v595, 109
      %v607 = vpop.permute.xlu0 %606
      %608 = vrot.lane.b32.xlu0 %v596, 109
      %v609 = vpop.permute.xlu0 %608
      %610 = vrot.lane.b32.xlu0 %v597, 109
      %v611 = vpop.permute.xlu0 %610
      %612 = vrot.lane.b32.xlu0 %v598, 109
      %v613 = vpop.permute.xlu0 %612
      %614 = vrot.lane.b32.xlu0 %v599, 109
      %v615 = vpop.permute.xlu0 %614
      %vm616 = vcmask 891904
      %v617 = vsel %vm616, %v601, %v603
      %v618 = vsel %vm616, %v603, %v605
      %v619 = vsel %vm616, %v605, %v607
      %v620 = vsel %vm616, %v609, %v611
      %v621 = vsel %vm616, %v611, %v613
      %v622 = vsel %vm616, %v613, %v615
      %629 = vst [vmem:[#allocation2 + $0xc0] sm:$0xff] %v617
      %630 = vst [vmem:[#allocation2 + $0xc8] sm:$0xff] %v618
      %631 = vst [vmem:[#allocation2 + $0xd0] sm:$0xff] %v619
      %632 = vst [vmem:[#allocation2 + $0xd8] sm:$0xff] %v620
      %633 = vst [vmem:[#allocation2 + $0xe0] sm:$0xff] %v621
      %634 = vst [vmem:[#allocation2 + $0xe8] sm:$0xff] %v622
      %v635 = vld [vmem:[%s265] sm:$0xff]
      %v636 = vld [vmem:[%s265 + $0x8] sm:$0xff]
      %v637 = vld [vmem:[%s265 + $0x10] sm:$0xff]
      %v638 = vld [vmem:[%s265 + $0x18] sm:$0xff]
      %v639 = vld [vmem:[%s265 + $0x20] sm:$0xff]
      %v640 = vld [vmem:[%s265 + $0x28] sm:$0xff]
      %v641 = vld [vmem:[%s265 + $0x30] sm:$0xff]
      %v642 = vld [vmem:[%s265 + $0x38] sm:$0xff]
      %v651 = vunpack.c.l.b16 %v635
      %v652 = vunpack.c.h.b16 %v635
      %v653 = vunpack.c.l.b16 %v636
      %v654 = vunpack.c.h.b16 %v636
      %v655 = vunpack.c.l.b16 %v637
      %v656 = vunpack.c.h.b16 %v637
      %v657 = vunpack.c.l.b16 %v638
      %v658 = vunpack.c.h.b16 %v638
      %v659 = vunpack.c.l.b16 %v639
      %v660 = vunpack.c.h.b16 %v639
      %v661 = vunpack.c.l.b16 %v640
      %v662 = vunpack.c.h.b16 %v640
      %v663 = vunpack.c.l.b16 %v641
      %v664 = vunpack.c.h.b16 %v641
      %v665 = vunpack.c.l.b16 %v642
      %v666 = vunpack.c.h.b16 %v642
      %v667 = vpack.c.b16 %v655, %v651
      %v668 = vpack.c.b16 %v656, %v652
      %v669 = vpack.c.b16 %v657, %v653
      %v670 = vpack.c.b16 %v658, %v654
      %v671 = vpack.c.b16 %v663, %v659
      %v672 = vpack.c.b16 %v664, %v660
      %v673 = vpack.c.b16 %v665, %v661
      %v674 = vpack.c.b16 %v666, %v662
      %675 = vrot.lane.b32.xlu0 %v667, 108
      %v676 = vpop.permute.xlu0 %675
      %677 = vrot.lane.b32.xlu0 %v668, 108
      %v678 = vpop.permute.xlu0 %677
      %679 = vrot.lane.b32.xlu0 %v669, 108
      %v680 = vpop.permute.xlu0 %679
      %681 = vrot.lane.b32.xlu0 %v670, 108
      %v682 = vpop.permute.xlu0 %681
      %683 = vrot.lane.b32.xlu0 %v671, 108
      %v684 = vpop.permute.xlu0 %683
      %685 = vrot.lane.b32.xlu0 %v672, 108
      %v686 = vpop.permute.xlu0 %685
      %687 = vrot.lane.b32.xlu0 %v673, 108
      %v688 = vpop.permute.xlu0 %687
      %689 = vrot.lane.b32.xlu0 %v674, 108
      %v690 = vpop.permute.xlu0 %689
      %vm691 = vcmask 883712
      %v692 = vsel %vm691, %v676, %v678
      %v693 = vsel %vm691, %v678, %v680
      %v694 = vsel %vm691, %v680, %v682
      %v695 = vsel %vm691, %v684, %v686
      %v696 = vsel %vm691, %v686, %v688
      %v697 = vsel %vm691, %v688, %v690
      %704 = vst [vmem:[#allocation2 + $0xf0] sm:$0xff] %v692
      %705 = vst [vmem:[#allocation2 + $0xf8] sm:$0xff] %v693
      %706 = vst [vmem:[#allocation2 + $0x100] sm:$0xff] %v694
      %707 = vst [vmem:[#allocation2 + $0x108] sm:$0xff] %v695
      %708 = vst [vmem:[#allocation2 + $0x110] sm:$0xff] %v696
      %709 = vst [vmem:[#allocation2 + $0x118] sm:$0xff] %v697
      %v710 = vld [vmem:[%s265] sm:$0xff]
      %v711 = vld [vmem:[%s265 + $0x8] sm:$0xff]
      %v712 = vld [vmem:[%s265 + $0x10] sm:$0xff]
      %v713 = vld [vmem:[%s265 + $0x18] sm:$0xff]
      %v714 = vld [vmem:[%s265 + $0x20] sm:$0xff]
      %v715 = vld [vmem:[%s265 + $0x28] sm:$0xff]
      %v716 = vld [vmem:[%s265 + $0x30] sm:$0xff]
      %v717 = vld [vmem:[%s265 + $0x38] sm:$0xff]
      %v726 = vunpack.c.l.b16 %v710
      %v727 = vunpack.c.h.b16 %v710
      %v728 = vunpack.c.l.b16 %v711
      %v729 = vunpack.c.h.b16 %v711
      %v730 = vunpack.c.l.b16 %v712
      %v731 = vunpack.c.h.b16 %v712
      %v732 = vunpack.c.l.b16 %v713
      %v733 = vunpack.c.h.b16 %v713
      %v734 = vunpack.c.l.b16 %v714
      %v735 = vunpack.c.h.b16 %v714
      %v736 = vunpack.c.l.b16 %v715
      %v737 = vunpack.c.h.b16 %v715
      %v738 = vunpack.c.l.b16 %v716
      %v739 = vunpack.c.h.b16 %v716
      %v740 = vunpack.c.l.b16 %v717
      %v741 = vunpack.c.h.b16 %v717
      %v742 = vpack.c.b16 %v730, %v726
      %v743 = vpack.c.b16 %v731, %v727
      %v744 = vpack.c.b16 %v732, %v728
      %v745 = vpack.c.b16 %v733, %v729
      %v746 = vpack.c.b16 %v738, %v734
      %v747 = vpack.c.b16 %v739, %v735
      %v748 = vpack.c.b16 %v740, %v736
      %v749 = vpack.c.b16 %v741, %v737
      %750 = vrot.lane.b32.xlu0 %v742, 92
      %v751 = vpop.permute.xlu0 %750
      %752 = vrot.lane.b32.xlu0 %v743, 92
      %v753 = vpop.permute.xlu0 %752
      %754 = vrot.lane.b32.xlu0 %v744, 92
      %v755 = vpop.permute.xlu0 %754
      %756 = vrot.lane.b32.xlu0 %v745, 92
      %v757 = vpop.permute.xlu0 %756
      %758 = vrot.lane.b32.xlu0 %v746, 92
      %v759 = vpop.permute.xlu0 %758
      %760 = vrot.lane.b32.xlu0 %v747, 92
      %v761 = vpop.permute.xlu0 %760
      %762 = vrot.lane.b32.xlu0 %v748, 92
      %v763 = vpop.permute.xlu0 %762
      %764 = vrot.lane.b32.xlu0 %v749, 92
      %v765 = vpop.permute.xlu0 %764
      %vm766 = vcmask 752640
      %v767 = vsel %vm766, %v751, %v753
      %v768 = vsel %vm766, %v753, %v755
      %v769 = vsel %vm766, %v755, %v757
      %v770 = vsel %vm766, %v759, %v761
      %v771 = vsel %vm766, %v761, %v763
      %v772 = vsel %vm766, %v763, %v765
      %779 = vst [vmem:[#allocation2 + $0x120] sm:$0xff] %v767
      %780 = vst [vmem:[#allocation2 + $0x128] sm:$0xff] %v768
      %781 = vst [vmem:[#allocation2 + $0x130] sm:$0xff] %v769
      %782 = vst [vmem:[#allocation2 + $0x138] sm:$0xff] %v770
      %783 = vst [vmem:[#allocation2 + $0x140] sm:$0xff] %v771
      %784 = vst [vmem:[#allocation2 + $0x148] sm:$0xff] %v772
      %v785 = vld [vmem:[%s265] sm:$0xff]
      %v786 = vld [vmem:[%s265 + $0x8] sm:$0xff]
      %v787 = vld [vmem:[%s265 + $0x10] sm:$0xff]
      %v788 = vld [vmem:[%s265 + $0x18] sm:$0xff]
      %v789 = vld [vmem:[%s265 + $0x20] sm:$0xff]
      %v790 = vld [vmem:[%s265 + $0x28] sm:$0xff]
      %v791 = vld [vmem:[%s265 + $0x30] sm:$0xff]
      %v792 = vld [vmem:[%s265 + $0x38] sm:$0xff]
      %v801 = vunpack.c.l.b16 %v785
      %v802 = vunpack.c.h.b16 %v785
      %v803 = vunpack.c.l.b16 %v786
      %v804 = vunpack.c.h.b16 %v786
      %v805 = vunpack.c.l.b16 %v787
      %v806 = vunpack.c.h.b16 %v787
      %v807 = vunpack.c.l.b16 %v788
      %v808 = vunpack.c.h.b16 %v788
      %v809 = vunpack.c.l.b16 %v789
      %v810 = vunpack.c.h.b16 %v789
      %v811 = vunpack.c.l.b16 %v790
      %v812 = vunpack.c.h.b16 %v790
      %v813 = vunpack.c.l.b16 %v791
      %v814 = vunpack.c.h.b16 %v791
      %v815 = vunpack.c.l.b16 %v792
      %v816 = vunpack.c.h.b16 %v792
      %v817 = vpack.c.b16 %v805, %v801
      %v818 = vpack.c.b16 %v806, %v802
      %v819 = vpack.c.b16 %v807, %v803
      %v820 = vpack.c.b16 %v808, %v804
      %v821 = vpack.c.b16 %v813, %v809
      %v822 = vpack.c.b16 %v814, %v810
      %v823 = vpack.c.b16 %v815, %v811
      %v824 = vpack.c.b16 %v816, %v812
      %825 = vrot.lane.b32.xlu0 %v817, 91
      %v826 = vpop.permute.xlu0 %825
      %827 = vrot.lane.b32.xlu0 %v818, 91
      %v828 = vpop.permute.xlu0 %827
      %829 = vrot.lane.b32.xlu0 %v819, 91
      %v830 = vpop.permute.xlu0 %829
      %831 = vrot.lane.b32.xlu0 %v820, 91
      %v832 = vpop.permute.xlu0 %831
      %833 = vrot.lane.b32.xlu0 %v821, 91
      %v834 = vpop.permute.xlu0 %833
      %835 = vrot.lane.b32.xlu0 %v822, 91
      %v836 = vpop.permute.xlu0 %835
      %837 = vrot.lane.b32.xlu0 %v823, 91
      %v838 = vpop.permute.xlu0 %837
      %839 = vrot.lane.b32.xlu0 %v824, 91
      %v840 = vpop.permute.xlu0 %839
      %vm841 = vcmask 744448
      %v842 = vsel %vm841, %v826, %v828
      %v843 = vsel %vm841, %v828, %v830
      %v844 = vsel %vm841, %v830, %v832
      %v845 = vsel %vm841, %v834, %v836
      %v846 = vsel %vm841, %v836, %v838
      %v847 = vsel %vm841, %v838, %v840
      %854 = vst [vmem:[#allocation2 + $0x150] sm:$0xff] %v842
      %855 = vst [vmem:[#allocation2 + $0x158] sm:$0xff] %v843
      %856 = vst [vmem:[#allocation2 + $0x160] sm:$0xff] %v844
      %857 = vst [vmem:[#allocation2 + $0x168] sm:$0xff] %v845
      %858 = vst [vmem:[#allocation2 + $0x170] sm:$0xff] %v846
      %859 = vst [vmem:[#allocation2 + $0x178] sm:$0xff] %v847
      %v860 = vld [vmem:[%s265] sm:$0xff]
      %v861 = vld [vmem:[%s265 + $0x8] sm:$0xff]
      %v862 = vld [vmem:[%s265 + $0x10] sm:$0xff]
      %v863 = vld [vmem:[%s265 + $0x18] sm:$0xff]
      %v864 = vld [vmem:[%s265 + $0x20] sm:$0xff]
      %v865 = vld [vmem:[%s265 + $0x28] sm:$0xff]
      %v866 = vld [vmem:[%s265 + $0x30] sm:$0xff]
      %v867 = vld [vmem:[%s265 + $0x38] sm:$0xff]
      %v876 = vunpack.c.l.b16 %v860
      %v877 = vunpack.c.h.b16 %v860
      %v878 = vunpack.c.l.b16 %v861
      %v879 = vunpack.c.h.b16 %v861
      %v880 = vunpack.c.l.b16 %v862
      %v881 = vunpack.c.h.b16 %v862
      %v882 = vunpack.c.l.b16 %v863
      %v883 = vunpack.c.h.b16 %v863
      %v884 = vunpack.c.l.b16 %v864
      %v885 = vunpack.c.h.b16 %v864
      %v886 = vunpack.c.l.b16 %v865
      %v887 = vunpack.c.h.b16 %v865
      %v888 = vunpack.c.l.b16 %v866
      %v889 = vunpack.c.h.b16 %v866
      %v890 = vunpack.c.l.b16 %v867
      %v891 = vunpack.c.h.b16 %v867
      %v892 = vpack.c.b16 %v880, %v876
      %v893 = vpack.c.b16 %v881, %v877
      %v894 = vpack.c.b16 %v882, %v878
      %v895 = vpack.c.b16 %v883, %v879
      %v896 = vpack.c.b16 %v888, %v884
      %v897 = vpack.c.b16 %v889, %v885
      %v898 = vpack.c.b16 %v890, %v886
      %v899 = vpack.c.b16 %v891, %v887
      %900 = vrot.lane.b32.xlu0 %v892, 90
      %v901 = vpop.permute.xlu0 %900
      %902 = vrot.lane.b32.xlu0 %v893, 90
      %v903 = vpop.permute.xlu0 %902
      %904 = vrot.lane.b32.xlu0 %v894, 90
      %v905 = vpop.permute.xlu0 %904
      %906 = vrot.lane.b32.xlu0 %v895, 90
      %v907 = vpop.permute.xlu0 %906
      %908 = vrot.lane.b32.xlu0 %v896, 90
      %v909 = vpop.permute.xlu0 %908
      %910 = vrot.lane.b32.xlu0 %v897, 90
      %v911 = vpop.permute.xlu0 %910
      %912 = vrot.lane.b32.xlu0 %v898, 90
      %v913 = vpop.permute.xlu0 %912
      %914 = vrot.lane.b32.xlu0 %v899, 90
      %v915 = vpop.permute.xlu0 %914
      %vm916 = vcmask 736256
      %v917 = vsel %vm916, %v901, %v903
      %v918 = vsel %vm916, %v903, %v905
      %v919 = vsel %vm916, %v905, %v907
      %v920 = vsel %vm916, %v909, %v911
      %v921 = vsel %vm916, %v911, %v913
      %v922 = vsel %vm916, %v913, %v915
      %929 = vst [vmem:[#allocation2 + $0x180] sm:$0xff] %v917
      %930 = vst [vmem:[#allocation2 + $0x188] sm:$0xff] %v918
      %931 = vst [vmem:[#allocation2 + $0x190] sm:$0xff] %v919
      %932 = vst [vmem:[#allocation2 + $0x198] sm:$0xff] %v920
      %933 = vst [vmem:[#allocation2 + $0x1a0] sm:$0xff] %v921
      %934 = vst [vmem:[#allocation2 + $0x1a8] sm:$0xff] %v922
      %935 = vst [vmem:[#allocation2 + $0x1b0] sm:$0xff] 0
      %936 = vst [vmem:[#allocation2 + $0x1b8] sm:$0xff] 0
      %937 = vst [vmem:[#allocation2 + $0x1c0] sm:$0xff] 0
      %938 = vst [vmem:[#allocation2 + $0x1c8] sm:$0xff] 0
      %939 = vst [vmem:[#allocation2 + $0x1d0] sm:$0xff] 0
      %940 = vst [vmem:[#allocation2 + $0x1d8] sm:$0xff] 0
      %941 = vst [vmem:[#allocation2 + $0x1e0] sm:$0xff] 0
      %942 = vst [vmem:[#allocation2 + $0x1e8] sm:$0xff] 0
      %943 = vst [vmem:[#allocation2 + $0x1f0] sm:$0xff] 0
      %944 = vst [vmem:[#allocation2 + $0x1f8] sm:$0xff] 0
      %945 = vst [vmem:[#allocation2 + $0x200] sm:$0xff] 0
      %946 = vst [vmem:[#allocation2 + $0x208] sm:$0xff] 0
      %947 = vst [vmem:[#allocation2 + $0x210] sm:$0xff] 0
      %948 = vst [vmem:[#allocation2 + $0x218] sm:$0xff] 0
      %949 = vst [vmem:[#allocation2 + $0x220] sm:$0xff] 0
      %950 = vst [vmem:[#allocation2 + $0x228] sm:$0xff] 0
      %951 = vst [vmem:[#allocation2 + $0x230] sm:$0xff] 0
      %952 = vst [vmem:[#allocation2 + $0x238] sm:$0xff] 0
      %v953 = vld [vmem:[%s270] sm:$0xff]
      %v954 = vld [vmem:[%s270 + $0x8] sm:$0xf]
      %v955 = vld [vmem:[#allocation2] sm:$0xff]
      %v956 = vld [vmem:[#allocation2 + $0x8] sm:$0xff]
      %v957 = vld [vmem:[#allocation2 + $0x10] sm:$0xff]
      %v958 = vld [vmem:[#allocation2 + $0x18] sm:$0xff]
      %v959 = vld [vmem:[#allocation2 + $0x20] sm:$0xff]
      %v960 = vld [vmem:[#allocation2 + $0x28] sm:$0xff]
      %v961 = vld [vmem:[#allocation2 + $0x30] sm:$0xff]
      %v962 = vld [vmem:[#allocation2 + $0x38] sm:$0xff]
      %v963 = vld [vmem:[#allocation2 + $0x40] sm:$0xff]
      %v964 = vld [vmem:[#allocation2 + $0x48] sm:$0xff]
      %v965 = vld [vmem:[#allocation2 + $0x50] sm:$0xff]
      %v966 = vld [vmem:[#allocation2 + $0x58] sm:$0xff]
      %v967 = vld [vmem:[#allocation2 + $0x60] sm:$0xff]
      %v968 = vld [vmem:[#allocation2 + $0x68] sm:$0xff]
      %v969 = vld [vmem:[#allocation2 + $0x70] sm:$0xff]
      %v970 = vld [vmem:[#allocation2 + $0x78] sm:$0xff]
      %v971 = vld [vmem:[#allocation2 + $0x80] sm:$0xff]
      %v972 = vld [vmem:[#allocation2 + $0x88] sm:$0xff]
      %v973 = vld [vmem:[#allocation2 + $0x90] sm:$0xff]
      %v974 = vld [vmem:[#allocation2 + $0x98] sm:$0xff]
      %v975 = vld [vmem:[#allocation2 + $0xa0] sm:$0xff]
      %v976 = vld [vmem:[#allocation2 + $0xa8] sm:$0xff]
      %v977 = vld [vmem:[#allocation2 + $0xb0] sm:$0xff]
      %v978 = vld [vmem:[#allocation2 + $0xb8] sm:$0xff]
      %v979 = vld [vmem:[#allocation2 + $0xc0] sm:$0xff]
      %v980 = vld [vmem:[#allocation2 + $0xc8] sm:$0xff]
      %v981 = vld [vmem:[#allocation2 + $0xd0] sm:$0xff]
      %v982 = vld [vmem:[#allocation2 + $0xd8] sm:$0xff]
      %v983 = vld [vmem:[#allocation2 + $0xe0] sm:$0xff]
      %v984 = vld [vmem:[#allocation2 + $0xe8] sm:$0xff]
      %v985 = vld [vmem:[#allocation2 + $0xf0] sm:$0xff]
      %v986 = vld [vmem:[#allocation2 + $0xf8] sm:$0xff]
      %v987 = vld [vmem:[#allocation2 + $0x100] sm:$0xff]
      %v988 = vld [vmem:[#allocation2 + $0x108] sm:$0xff]
      %v989 = vld [vmem:[#allocation2 + $0x110] sm:$0xff]
      %v990 = vld [vmem:[#allocation2 + $0x118] sm:$0xff]
      %v991 = vld [vmem:[#allocation2 + $0x120] sm:$0xff]
      %v992 = vld [vmem:[#allocation2 + $0x128] sm:$0xff]
      %v993 = vld [vmem:[#allocation2 + $0x130] sm:$0xff]
      %v994 = vld [vmem:[#allocation2 + $0x138] sm:$0xff]
      %v995 = vld [vmem:[#allocation2 + $0x140] sm:$0xff]
      %v996 = vld [vmem:[#allocation2 + $0x148] sm:$0xff]
      %v997 = vld [vmem:[#allocation2 + $0x150] sm:$0xff]
      %v998 = vld [vmem:[#allocation2 + $0x158] sm:$0xff]
      %v999 = vld [vmem:[#allocation2 + $0x160] sm:$0xff]
      %v1000 = vld [vmem:[#allocation2 + $0x168] sm:$0xff]
      %v1001 = vld [vmem:[#allocation2 + $0x170] sm:$0xff]
      %v1002 = vld [vmem:[#allocation2 + $0x178] sm:$0xff]
      %v1003 = vld [vmem:[#allocation2 + $0x180] sm:$0xff]
      %v1004 = vld [vmem:[#allocation2 + $0x188] sm:$0xff]
      %v1005 = vld [vmem:[#allocation2 + $0x190] sm:$0xff]
      %v1006 = vld [vmem:[#allocation2 + $0x198] sm:$0xff]
      %v1007 = vld [vmem:[#allocation2 + $0x1a0] sm:$0xff]
      %v1008 = vld [vmem:[#allocation2 + $0x1a8] sm:$0xff]
      %v1009 = vld [vmem:[#allocation2 + $0x1b0] sm:$0xff]
      %v1010 = vld [vmem:[#allocation2 + $0x1b8] sm:$0xff]
      %v1011 = vld [vmem:[#allocation2 + $0x1c0] sm:$0xff]
      %v1012 = vld [vmem:[#allocation2 + $0x1c8] sm:$0xff]
      %v1013 = vld [vmem:[#allocation2 + $0x1d0] sm:$0xff]
      %v1014 = vld [vmem:[#allocation2 + $0x1d8] sm:$0xff]
      %v1015 = vld [vmem:[#allocation2 + $0x1e0] sm:$0xff]
      %v1016 = vld [vmem:[#allocation2 + $0x1e8] sm:$0xff]
      %v1017 = vld [vmem:[#allocation2 + $0x1f0] sm:$0xff]
      %v1018 = vld [vmem:[#allocation2 + $0x1f8] sm:$0xff]
      %v1019 = vld [vmem:[#allocation2 + $0x200] sm:$0xff]
      %v1020 = vld [vmem:[#allocation2 + $0x208] sm:$0xff]
      %v1021 = vld [vmem:[#allocation2 + $0x210] sm:$0xff]
      %v1022 = vld [vmem:[#allocation2 + $0x218] sm:$0xff]
      %v1023 = vld [vmem:[#allocation2 + $0x220] sm:$0xff]
      %v1024 = vld [vmem:[#allocation2 + $0x228] sm:$0xff]
      %v1025 = vld [vmem:[#allocation2 + $0x230] sm:$0xff]
      %v1026 = vld [vmem:[#allocation2 + $0x238] sm:$0xff]
      %v1029 = vunpack.c.l.b16 %v953
      %v1030 = vunpack.c.h.b16 %v953
      %v1031 = vunpack.c.l.b16 %v954
      %v1032 = vpack.c.b16 %v1029, %v1029
      %v1033 = vpack.c.b16 %v1030, %v1030
      %v1034 = vpack.c.b16 %v1031, %v1031
      %1038 = vmatprep.subr.bf16.mxu0 %v956
      %1039 = vmatpush1.bf16.msra.mxu0 %v955
      %1040 = vmatprep.subr.bf16.mxu0 %v959
      %1041 = vmatpush1.bf16.msra.mxu0 %v958
      %1042 = vmatprep.subr.bf16.mxu0 %v962
      %1043 = vmatpush1.bf16.msra.mxu0 %v961
      %1044 = vmatprep.subr.bf16.mxu0 %v965
      %1045 = vmatpush1.bf16.msra.mxu0 %v964
      %1046 = vmatprep.subr.bf16.mxu0 %v968
      %1047 = vmatpush1.bf16.msra.mxu0 %v967
      %1048 = vmatprep.subr.bf16.mxu0 %v971
      %1049 = vmatpush1.bf16.msra.mxu0 %v970
      %1050 = vmatprep.subr.bf16.mxu0 %v974
      %1051 = vmatpush1.bf16.msra.mxu0 %v973
      %1052 = vmatprep.subr.bf16.mxu0 %v977
      %1053 = vmatpush1.bf16.msra.mxu0 %v976
      %1054 = vmatprep.subr.bf16.mxu0 %v980
      %1055 = vmatpush1.bf16.msra.mxu0 %v979
      %1056 = vmatprep.subr.bf16.mxu0 %v983
      %1057 = vmatpush1.bf16.msra.mxu0 %v982
      %1058 = vmatprep.subr.bf16.mxu0 %v986
      %1059 = vmatpush1.bf16.msra.mxu0 %v985
      %1060 = vmatprep.subr.bf16.mxu0 %v989
      %1061 = vmatpush1.bf16.msra.mxu0 %v988
      %1062 = vmatprep.subr.bf16.mxu0 %v992
      %1063 = vmatpush1.bf16.msra.mxu0 %v991
      %1064 = vmatprep.subr.bf16.mxu0 %v995
      %1065 = vmatpush1.bf16.msra.mxu0 %v994
      %1066 = vmatprep.subr.bf16.mxu0 %v998
      %1067 = vmatpush1.bf16.msra.mxu0 %v997
      %1068 = vmatprep.subr.bf16.mxu0 %v1001
      %1069 = vmatpush1.bf16.msra.mxu0 %v1000
      %1070 = vmatprep.mubr.bf16.mxu0 %v1033
      %1071 = vmatmul.mubr.bf16.gmra.mrb[0].mxu0 %v1032
      %v1072 = vpop.f32.mrb[0].mxu0
      %v1073 = vadd.f32 0.0, %v1072
      %v1074 = vpop.f32.mrb[0].mxu0
      %v1075 = vadd.f32 0.0, %v1074
      %v1076 = vpop.f32.mrb[0].mxu0
      %v1077 = vpop.f32.mrb[0].mxu0
      %1078 = vdwg.mxu0
      %1079 = vmatprep.subr.bf16.mxu0 %v1004
      %1080 = vmatpush1.bf16.msra.mxu0 %v1003
      %1081 = vmatprep.subr.bf16.mxu0 %v1007
      %1082 = vmatpush1.bf16.msra.mxu0 %v1006
      %1083 = vmatprep.subr.bf16.mxu0 %v1010
      %1084 = vmatpush1.bf16.msra.mxu0 %v1009
      %1085 = vmatprep.subr.bf16.mxu0 %v1013
      %1086 = vmatpush1.bf16.msra.mxu0 %v1012
      %1087 = vmatprep.subr.bf16.mxu0 %v1016
      %1088 = vmatpush1.bf16.msra.mxu0 %v1015
      %1089 = vmatprep.subr.bf16.mxu0 %v1019
      %1090 = vmatpush1.bf16.msra.mxu0 %v1018
      %1091 = vmatprep.subr.bf16.mxu0 %v1022
      %1092 = vmatpush1.bf16.msra.mxu0 %v1021
      %1093 = vmatprep.subr.bf16.mxu0 %v1025
      %1094 = vmatpush1.bf16.msra.mxu0 %v1024
      %1095 = vmatprep.subr.bf16.mxu0 0
      %1096 = vmatpush1.bf16.msra.mxu0 0
      %1097 = vmatprep.subr.bf16.mxu0 0
      %1098 = vmatpush1.bf16.msra.mxu0 0
      %1099 = vmatprep.subr.bf16.mxu0 0
      %1100 = vmatpush1.bf16.msra.mxu0 0
      %1101 = vmatprep.subr.bf16.mxu0 0
      %1102 = vmatpush1.bf16.msra.mxu0 0
      %1103 = vmatprep.subr.bf16.mxu0 0
      %1104 = vmatpush1.bf16.msra.mxu0 0
      %1105 = vmatprep.subr.bf16.mxu0 0
      %1106 = vmatpush1.bf16.msra.mxu0 0
      %1107 = vmatprep.subr.bf16.mxu0 0
      %1108 = vmatpush1.bf16.msra.mxu0 0
      %1109 = vmatprep.subr.bf16.mxu0 0
      %1110 = vmatpush1.bf16.msra.mxu0 0
      %1111 = vmatprep.mubr.bf16.mxu0 0
      %1112 = vmatmul.mubr.bf16.gmra.mrb[0].mxu0 %v1034
      %v1113 = vpop.f32.mrb[0].mxu0
      %v1114 = vadd.f32 %v1073, %v1113
      %v1115 = vpop.f32.mrb[0].mxu0
      %v1116 = vadd.f32 %v1075, %v1115
      %v1117 = vpop.f32.mrb[0].mxu0
      %v1118 = vpop.f32.mrb[0].mxu0
      %1119 = vdwg.mxu0
      %1120 = vmatprep.subr.bf16.mxu0 0
      %1121 = vmatpush1.bf16.msra.mxu0 %v957
      %1122 = vmatprep.subr.bf16.mxu0 0
      %1123 = vmatpush1.bf16.msra.mxu0 %v960
      %1124 = vmatprep.subr.bf16.mxu0 0
      %1125 = vmatpush1.bf16.msra.mxu0 %v963
      %1126 = vmatprep.subr.bf16.mxu0 0
      %1127 = vmatpush1.bf16.msra.mxu0 %v966
      %1128 = vmatprep.subr.bf16.mxu0 0
      %1129 = vmatpush1.bf16.msra.mxu0 %v969
      %1130 = vmatprep.subr.bf16.mxu0 0
      %1131 = vmatpush1.bf16.msra.mxu0 %v972
      %1132 = vmatprep.subr.bf16.mxu0 0
      %1133 = vmatpush1.bf16.msra.mxu0 %v975
      %1134 = vmatprep.subr.bf16.mxu0 0
      %1135 = vmatpush1.bf16.msra.mxu0 %v978
      %1136 = vmatprep.subr.bf16.mxu0 0
      %1137 = vmatpush1.bf16.msra.mxu0 %v981
      %1138 = vmatprep.subr.bf16.mxu0 0
      %1139 = vmatpush1.bf16.msra.mxu0 %v984
      %1140 = vmatprep.subr.bf16.mxu0 0
      %1141 = vmatpush1.bf16.msra.mxu0 %v987
      %1142 = vmatprep.subr.bf16.mxu0 0
      %1143 = vmatpush1.bf16.msra.mxu0 %v990
      %1144 = vmatprep.subr.bf16.mxu0 0
      %1145 = vmatpush1.bf16.msra.mxu0 %v993
      %1146 = vmatprep.subr.bf16.mxu0 0
      %1147 = vmatpush1.bf16.msra.mxu0 %v996
      %1148 = vmatprep.subr.bf16.mxu0 0
      %1149 = vmatpush1.bf16.msra.mxu0 %v999
      %1150 = vmatprep.subr.bf16.mxu0 0
      %1151 = vmatpush1.bf16.msra.mxu0 %v1002
      %1152 = vmatprep.mubr.bf16.mxu0 %v1033
      %1153 = vmatmul.mubr.bf16.gmra.mrb[0].mxu0 %v1032
      %v1154 = vpop.f32.mrb[0].mxu0
      %v1155 = vadd.f32 0.0, %v1154
      %v1156 = vpop.f32.mrb[0].mxu0
      %v1157 = vpop.f32.mrb[0].mxu0
      %v1158 = vpop.f32.mrb[0].mxu0
      %1159 = vdwg.mxu0
      %1160 = vmatprep.subr.bf16.mxu0 0
      %1161 = vmatpush1.bf16.msra.mxu0 %v1005
      %1162 = vmatprep.subr.bf16.mxu0 0
      %1163 = vmatpush1.bf16.msra.mxu0 %v1008
      %1164 = vmatprep.subr.bf16.mxu0 0
      %1165 = vmatpush1.bf16.msra.mxu0 %v1011
      %1166 = vmatprep.subr.bf16.mxu0 0
      %1167 = vmatpush1.bf16.msra.mxu0 %v1014
      %1168 = vmatprep.subr.bf16.mxu0 0
      %1169 = vmatpush1.bf16.msra.mxu0 %v1017
      %1170 = vmatprep.subr.bf16.mxu0 0
      %1171 = vmatpush1.bf16.msra.mxu0 %v1020
      %1172 = vmatprep.subr.bf16.mxu0 0
      %1173 = vmatpush1.bf16.msra.mxu0 %v1023
      %1174 = vmatprep.subr.bf16.mxu0 0
      %1175 = vmatpush1.bf16.msra.mxu0 %v1026
      %1176 = vmatprep.subr.bf16.mxu0 0
      %1177 = vmatpush1.bf16.msra.mxu0 0
      %1178 = vmatprep.subr.bf16.mxu0 0
      %1179 = vmatpush1.bf16.msra.mxu0 0
      %1180 = vmatprep.subr.bf16.mxu0 0
      %1181 = vmatpush1.bf16.msra.mxu0 0
      %1182 = vmatprep.subr.bf16.mxu0 0
      %1183 = vmatpush1.bf16.msra.mxu0 0
      %1184 = vmatprep.subr.bf16.mxu0 0
      %1185 = vmatpush1.bf16.msra.mxu0 0
      %1186 = vmatprep.subr.bf16.mxu0 0
      %1187 = vmatpush1.bf16.msra.mxu0 0
      %1188 = vmatprep.subr.bf16.mxu0 0
      %1189 = vmatpush1.bf16.msra.mxu0 0
      %1190 = vmatprep.subr.bf16.mxu0 0
      %1191 = vmatpush1.bf16.msra.mxu0 0
      %1192 = vmatprep.mubr.bf16.mxu0 0
      %1193 = vmatmul.mubr.bf16.gmra.mrb[0].mxu0 %v1034
      %v1194 = vpop.f32.mrb[0].mxu0
      %v1195 = vadd.f32 %v1155, %v1194
      %v1196 = vpop.f32.mrb[0].mxu0
      %v1197 = vpop.f32.mrb[0].mxu0
      %v1198 = vpop.f32.mrb[0].mxu0
      %1199 = vdwg.mxu0
      %v1200 = vld [vmem:[%s274] sm:$0xff]
      %1202 = vset.pattern.permute.xlu0 0
      %1203 = vperm.xlu0 %1202, %v1200
      %v1204 = vpop.permute.xlu0 %1203
      %v1206 = vmul.f32 %v1114, %v1204
      %v1207 = vmul.f32 %v1116, %v1204
      %v1208 = vmul.f32 %v1195, %v1204
      %v1209 = vld [vmem:[%s278] sm:$0xff]
      %1211 = vset.pattern.permute.xlu0 0
      %1212 = vperm.xlu0 %1211, %v1209
      %v1213 = vpop.permute.xlu0 %1212
      %v1215 = vadd.f32 %v1206, %v1213
      %v1216 = vadd.f32 %v1207, %v1213
      %v1217 = vadd.f32 %v1208, %v1213
      %v1218 = vmax.f32 %v1215, 0.0
      %v1219 = vmax.f32 %v1216, 0.0
      %v1220 = vmax.f32 %v1217, 0.0
      %1221 = vst [vmem:[%s287] sm:$0xff] %v1218
      %1222 = vst [vmem:[%s287 + $0x8] sm:$0xff] %v1219
      %1223 = vst [vmem:[%s287 + $0x10] sm:$0xff] %v1220
      %p1224 = scmp.lt.s32.totalorder %s20, 1
      %s1225 = scalar_select %p1224, %s20, 1
      %p1226 = scmp.lt.s32.totalorder %s19, 0
      %s1227 = scalar_select %p1226, %s19, 0
      %s1228 = smul.addr %s1227, 3
      %s1229 = smul.addr %s1225, 3
      %s1230 = sadd.s32 %s1228, %s1229
      %s1231 = smul.addr %s1230, 8
      %s1232 = scalar_lea.vmem %s4, %s1231
      // Predicated region
      $region37: #{offset_convolution_forward.3} parent=35 // pred_check
        %p1233 = pneg %p153
      $region38: #{offset_convolution_forward.3} parent=35 // pred_check_branch
        %1235 = sbr.rel (%p1233) target = $region40
      $region39: #{offset_convolution_forward.3} parent=35 // pred_region
        _
      $region40: #{offset_convolution_forward.3} parent=35 // pred_fallthru
        _
    $region36: #{offset_convolution_forward.3} parent=5 // pred_fallthru
      _
    %p1236 = scmp.le.s32.totalorder 2, %s10
    // Predicated region
    $region41: #{offset_convolution_forward.3} parent=5 // pred_check
      %p1237 = pneg %p1236
    $region42: #{offset_convolution_forward.3} parent=5 // pred_check_branch
      %1239 = sbr.rel (%p1237) target = $region44
    $region43: #{offset_convolution_forward.3} parent=5 // pred_region
      %s1240 = ssub.s32 %s10, 2
      // Predicated region
      $region45: #{offset_convolution_forward.3} parent=43 // pred_check
        %p1241 = pneg %p159
      $region46: #{offset_convolution_forward.3} parent=43 // pred_check_branch
        %1243 = sbr.rel (%p1241) target = $region48
      $region47: #{offset_convolution_forward.3} parent=43 // pred_region
        %p1244 = scmp.lt.s32.totalorder %s22, 1
        %s1245 = scalar_select %p1244, %s22, 1
        %p1246 = scmp.lt.s32.totalorder %s21, 0
        %s1247 = scalar_select %p1246, %s21, 0
        %s1248 = smul.addr %s1247, 3
        %s1249 = smul.addr %s1245, 3
        %s1250 = sadd.s32 %s1248, %s1249
        %s1251 = smul.addr %s1250, 8
        %s1252 = scalar_lea.vmem %s4, %s1251
      $region48: #{offset_convolution_forward.3} parent=43 // pred_fallthru
        _
    $region44: #{offset_convolution_forward.3} parent=5 // pred_fallthru
      _
  $region6: #{offset_convolution_forward.3} parent=0 // loop_footer
    %s14 = sadd.s32 1, %s10
  $region7: #{offset_convolution_forward.3} parent=0 // loop_footer_branch
    %9 = sbr.rel target = $region3
  $region8: #{offset_convolution_forward.3} parent=0 // loop_exit
    _

</llo_original>
